<compile_context>
chip_gen: v5e
topology: v5e:2x2
jax: 0.10.0
libtpu: 0.0.40
codegen_flags: <defaults>
</compile_context>

<pallas_src>
import functools
import math

import jax
import jax.numpy as jnp
from jax.experimental import pallas as pl
from jax.experimental.pallas import tpu as pltpu

H_PAD = 128              # uniform padded hidden / feature width (lanes)
DOUT_PAD = 128           # padded output width (lane-dense final store)
N_GATES = 4
GATE_PERM = (0, 1, 3, 2)  # dest gate block (i,f,o,g) <- PyTorch src (i,f,g,o)
SUBLANE = 8


# ------------------------------- Pallas kernel ------------------------------

def _make_kernel(T, B_pad):
    """Kernel body for one grid step == one LSTM layer."""

    def kernel(x_ref, wih_ref, whh_ref, b_ref, wout_ref, bout_ref,
               y_ref, act_ref, pre_ref):
        # x_ref:    (T*B_pad, H_PAD)           padded input slab (resident)
        # wih_ref:  (1, H_PAD, 4*H_PAD) bf16   this layer's input->gate weights
        # whh_ref:  (1, H_PAD, 4*H_PAD) bf16   this layer's hidden->gate weights
        # b_ref:    (1, 1, 4*H_PAD) f32        this layer's gate bias
        # wout_ref: (H_PAD, DOUT_PAD) bf16     folded linear3 @ linear2 weight
        # bout_ref: (1, DOUT_PAD) f32          folded linear3 @ linear2 bias
        # y_ref:    (T*B_pad, DOUT_PAD)        output (written on last layer)
        # act_ref:  (T*B_pad, H_PAD)   scratch resident activation slab
        # pre_ref:  (T*B_pad, 4*H_PAD) scratch hoisted pre-gates
        l = pl.program_id(0)
        n_layers = pl.num_programs(0)

        # ---- hoisted input projection: one big matmul per layer ----------
        def project(src_ref):
            pre_ref[...] = (
                jnp.dot(src_ref[...].astype(jnp.bfloat16), wih_ref[0],
                        preferred_element_type=jnp.float32)
                + b_ref[0])

        @pl.when(l == 0)
        def _():
            project(x_ref)        # layer 0 reads the input slab directly

        @pl.when(l > 0)
        def _():
            project(act_ref)      # later layers read previous layer's output

        # ---- serial recurrence: only h @ w_hh on the critical path -------
        h = jnp.zeros((B_pad, H_PAD), jnp.float32)
        c = jnp.zeros((B_pad, H_PAD), jnp.float32)
        for t in range(T):                          # statically unrolled
            gates = (pre_ref[t * B_pad:(t + 1) * B_pad, :]
                     + jnp.dot(h.astype(jnp.bfloat16), whh_ref[0],
                               preferred_element_type=jnp.float32))
            sig = jax.nn.sigmoid(gates[:, :3 * H_PAD])   # i | f | o contiguous
            i_g = sig[:, 0 * H_PAD:1 * H_PAD]
            f_g = sig[:, 1 * H_PAD:2 * H_PAD]
            o_g = sig[:, 2 * H_PAD:3 * H_PAD]
            g_g = jnp.tanh(gates[:, 3 * H_PAD:4 * H_PAD])
            c = f_g * c + i_g * g_g
            h = o_g * jnp.tanh(c)
            act_ref[t * B_pad:(t + 1) * B_pad, :] = h

        # ---- folded linear2->linear3: one whole-slab matmul, last layer --
        @pl.when(l == n_layers - 1)
        def _():
            y_ref[...] = (
                jnp.dot(act_ref[...].astype(jnp.bfloat16), wout_ref[...],
                        preferred_element_type=jnp.float32)
                + bout_ref[...]).astype(y_ref.dtype)

    return kernel


def fused_forward(packed, x, dout):
    """x: (B, T, input_size) f32 -> (B, T, dout) f32."""
    B, T, din = x.shape
    assert din <= H_PAD
    B_pad = ((B + SUBLANE - 1) // SUBLANE) * SUBLANE
    n_layers = packed["wih"].shape[0]

    # time-major, batch padded to a sublane multiple, features zero-padded,
    # flattened to a 2D (T*B_pad, H_PAD) slab (sublane-aligned timestep rows).
    x_tm = jnp.transpose(x, (1, 0, 2)).astype(jnp.float32)
    x_tm = jnp.pad(x_tm, ((0, 0), (0, B_pad - B), (0, H_PAD - din)))
    x_slab = x_tm.reshape(T * B_pad, H_PAD)

    grid_spec = pltpu.PrefetchScalarGridSpec(
        num_scalar_prefetch=0,
        grid=(n_layers,),
        in_specs=[
            pl.BlockSpec((T * B_pad, H_PAD), lambda l: (0, 0)),              # x slab
            pl.BlockSpec((1, H_PAD, N_GATES * H_PAD), lambda l: (l, 0, 0)),  # w_ih
            pl.BlockSpec((1, H_PAD, N_GATES * H_PAD), lambda l: (l, 0, 0)),  # w_hh
            pl.BlockSpec((1, 1, N_GATES * H_PAD), lambda l: (l, 0, 0)),      # bias
            pl.BlockSpec((H_PAD, DOUT_PAD), lambda l: (0, 0)),               # w_out
            pl.BlockSpec((1, DOUT_PAD), lambda l: (0, 0)),                   # b_out
        ],
        out_specs=pl.BlockSpec((T * B_pad, DOUT_PAD), lambda l: (0, 0)),
        scratch_shapes=[
            pltpu.VMEM((T * B_pad, H_PAD), jnp.float32),            # activation slab
            pltpu.VMEM((T * B_pad, N_GATES * H_PAD), jnp.float32),  # pre-gates
        ],
    )

    y_slab = pl.pallas_call(
        _make_kernel(T, B_pad),
        out_shape=jax.ShapeDtypeStruct((T * B_pad, DOUT_PAD), jnp.float32),
        grid_spec=grid_spec,
        compiler_params=pltpu.CompilerParams(
            dimension_semantics=("arbitrary",),       # layers are sequential
            vmem_limit_bytes=32 * 1024 * 1024),
    )(x_slab, packed["wih"], packed["whh"], packed["b"],
      packed["wout"], packed["bout"])

    y = y_slab.reshape(T, B_pad, DOUT_PAD)[:, :B, :dout]
    return jnp.transpose(y, (1, 0, 2))


# --------------------------- parameter construction -------------------------

def _uniform(key, shape, bound):
    return jax.random.uniform(key, shape, jnp.float32, -bound, bound)


def init_raw_params(key, input_size=9, output_size=1):
    """PyTorch-layout parameters (weights (out, in), gate order i, f, g, o)."""
    def init_linear(k, in_f, out_f):
        kw, kb = jax.random.split(k)
        bound = 1.0 / math.sqrt(in_f)
        return _uniform(kw, (out_f, in_f), bound), _uniform(kb, (out_f,), bound)

    def init_lstm(k, in_size, hidden, num_layers):
        layers = []
        bound = 1.0 / math.sqrt(hidden)
        for layer_idx in range(num_layers):
            k, k1, k2, k3, k4 = jax.random.split(k, 5)
            din = in_size if layer_idx == 0 else hidden
            layers.append(dict(
                w_ih=_uniform(k1, (4 * hidden, din), bound),
                w_hh=_uniform(k2, (4 * hidden, hidden), bound),
                b_ih=_uniform(k3, (4 * hidden,), bound),
                b_hh=_uniform(k4, (4 * hidden,), bound)))
        return layers

    keys = jax.random.split(key, 6)
    return {
        "l1": init_linear(keys[0], input_size, 16),
        "lstm1": init_lstm(keys[1], 16, 64, 3),
        "lstm2": init_lstm(keys[2], 64, 128, 3),
        "lstm3": init_lstm(keys[3], 128, 64, 3),
        "l2": init_linear(keys[4], 64, 32),
        "l3": init_linear(keys[5], 32, output_size),
    }


def _pad_gate_cols(w2d, hidden):
    """(rows, 4*hidden) in PyTorch gate order (i,f,g,o) ->
       (rows, 4*H_PAD) in kernel gate order (i,f,o,g), 128-lane-aligned blocks."""
    rows = w2d.shape[0]
    out = jnp.zeros((rows, N_GATES * H_PAD), w2d.dtype)
    for dst, src in enumerate(GATE_PERM):
        out = out.at[:, dst * H_PAD:dst * H_PAD + hidden].set(
            w2d[:, src * hidden:(src + 1) * hidden])
    return out


def _pad_rows(w2d, rows_pad):
    return jnp.zeros((rows_pad, w2d.shape[1]), w2d.dtype).at[:w2d.shape[0]].set(w2d)


def _assert_pad_invariant(w_padded, hidden, real_rows):
    """Padded weight rows and padded gate lanes must be exactly zero so the
    pad lanes of h/c stay zero through the recurrence (numerical exactness)."""
    assert bool(jnp.all(w_padded[real_rows:, :] == 0))
    for g in range(N_GATES):
        assert bool(jnp.all(w_padded[:, g * H_PAD + hidden:(g + 1) * H_PAD] == 0))


def pack_params(raw):
    """Fold linear1 / (linear2@linear3), pad all 9 LSTM layers to a uniform
    (H_PAD, 4*H_PAD) layout with 128-lane-aligned (i,f,o,g) gate blocks, and
    cast matmul weights to bf16 (biases stay f32)."""
    W1, b1 = raw["l1"]

    layers = []
    for stack in ("lstm1", "lstm2", "lstm3"):
        layers.extend(raw[stack])

    wih_list, whh_list, b_list = [], [], []
    for idx, layer in enumerate(layers):
        w_ih, w_hh = layer["w_ih"], layer["w_hh"]
        bias = layer["b_ih"] + layer["b_hh"]
        if idx == 0:
            # Fold linear1 into lstm1 layer 0 (exact, no nonlinearity between):
            #   (x @ W1.T + b1) @ Wih.T  ==  x @ (Wih @ W1).T + Wih @ b1
            bias = bias + w_ih @ b1
            w_ih = w_ih @ W1                         # (4H, 16)@(16, 9) -> (4H, 9)
        hidden = w_hh.shape[1]
        wih_p = _pad_rows(_pad_gate_cols(w_ih.T, hidden), H_PAD)
        whh_p = _pad_rows(_pad_gate_cols(w_hh.T, hidden), H_PAD)
        b_p = _pad_gate_cols(bias.reshape(1, -1), hidden)
        _assert_pad_invariant(wih_p, hidden, w_ih.shape[1])
        _assert_pad_invariant(whh_p, hidden, hidden)
        _assert_pad_invariant(b_p, hidden, 1)
        wih_list.append(wih_p)
        whh_list.append(whh_p)
        b_list.append(b_p)

    # Fold linear2 -> linear3 (exact): h @ (W3 @ W2).T + (W3 @ b2 + b3)
    W2, b2 = raw["l2"]
    W3, b3 = raw["l3"]
    w_out = (W3 @ W2).T                              # (64, dout)
    dout = w_out.shape[1]
    wout_p = jnp.zeros((H_PAD, DOUT_PAD), jnp.float32
                       ).at[:w_out.shape[0], :dout].set(w_out)
    bout_p = jnp.zeros((1, DOUT_PAD), jnp.float32).at[0, :dout].set(W3 @ b2 + b3)

    return {
        "wih": jnp.stack(wih_list).astype(jnp.bfloat16),   # (9, 128, 512)
        "whh": jnp.stack(whh_list).astype(jnp.bfloat16),   # (9, 128, 512)
        "b": jnp.stack(b_list),                            # (9, 1, 512) f32
        "wout": wout_p.astype(jnp.bfloat16),               # (128, 128)
        "bout": bout_p,                                    # (1, 128) f32
    }


# ------------------------------ plain-JAX reference --------------------------

def reference_forward(raw, x):
    """Straightforward f32 JAX mirror of the PyTorch module (eval mode)."""
    W1, b1 = raw["l1"]
    h = x @ W1.T + b1                                   # (B, T, 16)
    for stack in ("lstm1", "lstm2", "lstm3"):
        for layer in raw[stack]:
            w_ih, w_hh = layer["w_ih"], layer["w_hh"]
            bias = layer["b_ih"] + layer["b_hh"]
            hidden = w_hh.shape[1]
            B, T, _ = h.shape
            ht = jnp.zeros((B, hidden), jnp.float32)
            ct = jnp.zeros((B, hidden), jnp.float32)
            outs = []
            for t in range(T):
                gates = h[:, t, :] @ w_ih.T + ht @ w_hh.T + bias
                i_g = jax.nn.sigmoid(gates[:, 0 * hidden:1 * hidden])
                f_g = jax.nn.sigmoid(gates[:, 1 * hidden:2 * hidden])
                g_g = jnp.tanh(gates[:, 2 * hidden:3 * hidden])
                o_g = jax.nn.sigmoid(gates[:, 3 * hidden:4 * hidden])
                ct = f_g * ct + i_g * g_g
                ht = o_g * jnp.tanh(ct)
                outs.append(ht)
            h = jnp.stack(outs, axis=1)                 # (B, T, hidden)
    W2, b2 = raw["l2"]
    W3, b3 = raw["l3"]
    h = h @ W2.T + b2
    return h @ W3.T + b3


# ----------------------------------- main ------------------------------------

if __name__ == "__main__":
    key = jax.random.PRNGKey(0)
    k_param, k_in = jax.random.split(key)

    B, T, INPUT_SIZE, OUTPUT_SIZE = 2, 8, 9, 1
    raw = init_raw_params(k_param, INPUT_SIZE, OUTPUT_SIZE)
    packed = pack_params(raw)
    x = jax.random.normal(k_in, (B, T, INPUT_SIZE), dtype=jnp.float32)

    fwd = jax.jit(functools.partial(fused_forward, dout=OUTPUT_SIZE))
    y = jax.block_until_ready(fwd(packed, x))
    assert y.shape == (B, T, OUTPUT_SIZE), y.shape
    assert y.dtype == jnp.float32

    y_ref = jax.block_until_ready(reference_forward(raw, x))
    max_err = float(jnp.max(jnp.abs(y - y_ref)))
    # bf16 matmul operands vs. the pure-f32 reference -> modest tolerance.
    assert max_err < 1e-2, f"kernel/reference mismatch: max abs err = {max_err}"

    print("KERNEL_OK")
</pallas_src>

<mosaic_0001>
module attributes {stable_mosaic.version = 11 : i64} {
  func.func @kernel(%arg0: i32, %arg1: memref<64x128xf32, #tpu.memory_space<vmem>>, %arg2: memref<1x128x512xbf16, #tpu.memory_space<vmem>>, %arg3: memref<1x128x512xbf16, #tpu.memory_space<vmem>>, %arg4: memref<1x1x512xf32, #tpu.memory_space<vmem>>, %arg5: memref<128x128xbf16, #tpu.memory_space<vmem>>, %arg6: memref<1x128xf32, #tpu.memory_space<vmem>>, %arg7: memref<64x128xf32, #tpu.memory_space<vmem>>, %arg8: memref<64x128xf32, #tpu.memory_space<vmem>>, %arg9: memref<64x512xf32, #tpu.memory_space<vmem>>) attributes {dimension_semantics = [#tpu.dimension_semantics<arbitrary>], iteration_bounds = array<i64: 9>, scalar_prefetch = 0 : i64, scratch_operands = 2 : i64, tpu.core_type = #tpu.core_type<tc>, window_params = [{pipeline_mode = #tpu.pipeline_mode<synchronous>, transform_indices = @transform_0, window_bounds = array<i64: 64, 128>}, {transform_indices = @transform_1, window_bounds = array<i64: 1, 128, 512>}, {transform_indices = @transform_2, window_bounds = array<i64: 1, 128, 512>}, {transform_indices = @transform_3, window_bounds = array<i64: 1, 1, 512>}, {pipeline_mode = #tpu.pipeline_mode<synchronous>, transform_indices = @transform_4, window_bounds = array<i64: 128, 128>}, {pipeline_mode = #tpu.pipeline_mode<synchronous>, transform_indices = @transform_5, window_bounds = array<i64: 1, 128>}, {pipeline_mode = #tpu.pipeline_mode<synchronous>, transform_indices = @transform_6, window_bounds = array<i64: 64, 128>}]} {
    %c0_i32 = arith.constant 0 : i32
    %0 = arith.cmpi eq, %arg0, %c0_i32 : i32
    %1 = arith.extui %0 : i1 to i32
    %c0_i32_0 = arith.constant 0 : i32
    %2 = arith.cmpi ne, %1, %c0_i32_0 : i32
    scf.if %2 {
      %c0_69 = arith.constant 0 : index
      %c0_70 = arith.constant 0 : index
      %195 = vector.load %arg1[%c0_69, %c0_70] : memref<64x128xf32, #tpu.memory_space<vmem>>, vector<64x128xf32>
      %196 = arith.truncf %195 : vector<64x128xf32> to vector<64x128xbf16>
      %c0_71 = arith.constant 0 : index
      %c0_72 = arith.constant 0 : index
      %c0_73 = arith.constant 0 : index
      %197 = vector.load %arg2[%c0_71, %c0_72, %c0_73] : memref<1x128x512xbf16, #tpu.memory_space<vmem>>, vector<1x128x512xbf16>
      %198 = vector.shape_cast %197 : vector<1x128x512xbf16> to vector<128x512xbf16>
      %cst_74 = arith.constant dense<0.000000e+00> : vector<64x512xf32>
      %199 = tpu.matmul %196, %198, %cst_74 {dimension_numbers = #tpu.dot_dimension_numbers<[1], [0], [0], [1], [0, 0, 1, 1], [], []>} : vector<64x128xbf16>, vector<128x512xbf16>, vector<64x512xf32> -> vector<64x512xf32>
      %c0_75 = arith.constant 0 : index
      %c0_76 = arith.constant 0 : index
      %c0_77 = arith.constant 0 : index
      %200 = vector.load %arg4[%c0_75, %c0_76, %c0_77] : memref<1x1x512xf32, #tpu.memory_space<vmem>>, vector<1x1x512xf32>
      %201 = vector.shape_cast %200 : vector<1x1x512xf32> to vector<1x512xf32>
      %202 = vector.broadcast %201 : vector<1x512xf32> to vector<64x512xf32>
      %203 = arith.addf %199, %202 : vector<64x512xf32>
      %c0_78 = arith.constant 0 : index
      %c0_79 = arith.constant 0 : index
      %204 = vector.load %arg9[%c0_78, %c0_79] : memref<64x512xf32, #tpu.memory_space<vmem>>, vector<64x512xf32>
      tpu.vector_store %arg9[%c0_78, %c0_79], %203 {strides = array<i32>} : memref<64x512xf32, #tpu.memory_space<vmem>>, vector<64x512xf32>,
    } else {
    }
    %c0_i32_1 = arith.constant 0 : i32
    %3 = arith.cmpi sgt, %arg0, %c0_i32_1 : i32
    %4 = arith.extui %3 : i1 to i32
    %c0_i32_2 = arith.constant 0 : i32
    %5 = arith.cmpi ne, %4, %c0_i32_2 : i32
    scf.if %5 {
      %c0_69 = arith.constant 0 : index
      %c0_70 = arith.constant 0 : index
      %195 = vector.load %arg8[%c0_69, %c0_70] : memref<64x128xf32, #tpu.memory_space<vmem>>, vector<64x128xf32>
      %196 = arith.truncf %195 : vector<64x128xf32> to vector<64x128xbf16>
      %c0_71 = arith.constant 0 : index
      %c0_72 = arith.constant 0 : index
      %c0_73 = arith.constant 0 : index
      %197 = vector.load %arg2[%c0_71, %c0_72, %c0_73] : memref<1x128x512xbf16, #tpu.memory_space<vmem>>, vector<1x128x512xbf16>
      %198 = vector.shape_cast %197 : vector<1x128x512xbf16> to vector<128x512xbf16>
      %cst_74 = arith.constant dense<0.000000e+00> : vector<64x512xf32>
      %199 = tpu.matmul %196, %198, %cst_74 {dimension_numbers = #tpu.dot_dimension_numbers<[1], [0], [0], [1], [0, 0, 1, 1], [], []>} : vector<64x128xbf16>, vector<128x512xbf16>, vector<64x512xf32> -> vector<64x512xf32>
      %c0_75 = arith.constant 0 : index
      %c0_76 = arith.constant 0 : index
      %c0_77 = arith.constant 0 : index
      %200 = vector.load %arg4[%c0_75, %c0_76, %c0_77] : memref<1x1x512xf32, #tpu.memory_space<vmem>>, vector<1x1x512xf32>
      %201 = vector.shape_cast %200 : vector<1x1x512xf32> to vector<1x512xf32>
      %202 = vector.broadcast %201 : vector<1x512xf32> to vector<64x512xf32>
      %203 = arith.addf %199, %202 : vector<64x512xf32>
      %c0_78 = arith.constant 0 : index
      %c0_79 = arith.constant 0 : index
      %204 = vector.load %arg9[%c0_78, %c0_79] : memref<64x512xf32, #tpu.memory_space<vmem>>, vector<64x512xf32>
      tpu.vector_store %arg9[%c0_78, %c0_79], %203 {strides = array<i32>} : memref<64x512xf32, #tpu.memory_space<vmem>>, vector<64x512xf32>,
    } else {
    }
    %cst = arith.constant 0.000000e+00 : f32
    %6 = vector.broadcast %cst : f32 to vector<8x128xf32>
    %cst_3 = arith.constant 0.000000e+00 : f32
    %7 = vector.broadcast %cst_3 : f32 to vector<8x128xf32>
    %c0 = arith.constant 0 : index
    %c0_4 = arith.constant 0 : index
    %8 = vector.load %arg9[%c0, %c0_4] : memref<64x512xf32, #tpu.memory_space<vmem>>, vector<8x512xf32>
    %9 = arith.truncf %6 : vector<8x128xf32> to vector<8x128xbf16>
    %c0_5 = arith.constant 0 : index
    %c0_6 = arith.constant 0 : index
    %c0_7 = arith.constant 0 : index
    %10 = vector.load %arg3[%c0_5, %c0_6, %c0_7] : memref<1x128x512xbf16, #tpu.memory_space<vmem>>, vector<1x128x512xbf16>
    %11 = vector.shape_cast %10 : vector<1x128x512xbf16> to vector<128x512xbf16>
    %cst_8 = arith.constant dense<0.000000e+00> : vector<8x512xf32>
    %12 = tpu.matmul %9, %11, %cst_8 {dimension_numbers = #tpu.dot_dimension_numbers<[1], [0], [0], [1], [0, 0, 1, 1], [], []>} : vector<8x128xbf16>, vector<128x512xbf16>, vector<8x512xf32> -> vector<8x512xf32>
    %13 = arith.addf %8, %12 : vector<8x512xf32>
    %14 = vector.extract_strided_slice %13 {offsets = [0, 0], sizes = [8, 384], strides = [1, 1]} : vector<8x512xf32> to vector<8x384xf32>
    %15 = arith.negf %14 : vector<8x384xf32>
    %16 = math.exp %15 : vector<8x384xf32>
    %cst_9 = arith.constant 1.000000e+00 : f32
    %17 = vector.broadcast %cst_9 : f32 to vector<8x384xf32>
    %18 = arith.addf %17, %16 : vector<8x384xf32>
    %19 = arith.divf %17, %18 : vector<8x384xf32>
    %20 = vector.extract_strided_slice %19 {offsets = [0, 0], sizes = [8, 128], strides = [1, 1]} : vector<8x384xf32> to vector<8x128xf32>
    %21 = vector.extract_strided_slice %19 {offsets = [0, 128], sizes = [8, 128], strides = [1, 1]} : vector<8x384xf32> to vector<8x128xf32>
    %22 = vector.extract_strided_slice %19 {offsets = [0, 256], sizes = [8, 128], strides = [1, 1]} : vector<8x384xf32> to vector<8x128xf32>
    %23 = vector.extract_strided_slice %13 {offsets = [0, 384], sizes = [8, 128], strides = [1, 1]} : vector<8x512xf32> to vector<8x128xf32>
    %24 = math.tanh %23 : vector<8x128xf32>
    %25 = arith.mulf %21, %7 : vector<8x128xf32>
    %26 = arith.mulf %20, %24 : vector<8x128xf32>
    %27 = arith.addf %25, %26 : vector<8x128xf32>
    %28 = math.tanh %27 : vector<8x128xf32>
    %29 = arith.mulf %22, %28 : vector<8x128xf32>
    %c0_10 = arith.constant 0 : index
    %c0_11 = arith.constant 0 : index
    %30 = vector.load %arg8[%c0_10, %c0_11] : memref<64x128xf32, #tpu.memory_space<vmem>>, vector<8x128xf32>
    tpu.vector_store %arg8[%c0_10, %c0_11], %29 {strides = array<i32>} : memref<64x128xf32, #tpu.memory_space<vmem>>, vector<8x128xf32>,
    %c8 = arith.constant 8 : index
    %c0_12 = arith.constant 0 : index
    %31 = vector.load %arg9[%c8, %c0_12] : memref<64x512xf32, #tpu.memory_space<vmem>>, vector<8x512xf32>
    %32 = arith.truncf %29 : vector<8x128xf32> to vector<8x128xbf16>
    %c0_13 = arith.constant 0 : index
    %c0_14 = arith.constant 0 : index
    %c0_15 = arith.constant 0 : index
    %33 = vector.load %arg3[%c0_13, %c0_14, %c0_15] : memref<1x128x512xbf16, #tpu.memory_space<vmem>>, vector<1x128x512xbf16>
    %34 = vector.shape_cast %33 : vector<1x128x512xbf16> to vector<128x512xbf16>
    %cst_16 = arith.constant dense<0.000000e+00> : vector<8x512xf32>
    %35 = tpu.matmul %32, %34, %cst_16 {dimension_numbers = #tpu.dot_dimension_numbers<[1], [0], [0], [1], [0, 0, 1, 1], [], []>} : vector<8x128xbf16>, vector<128x512xbf16>, vector<8x512xf32> -> vector<8x512xf32>
    %36 = arith.addf %31, %35 : vector<8x512xf32>
    %37 = vector.extract_strided_slice %36 {offsets = [0, 0], sizes = [8, 384], strides = [1, 1]} : vector<8x512xf32> to vector<8x384xf32>
    %38 = arith.negf %37 : vector<8x384xf32>
    %39 = math.exp %38 : vector<8x384xf32>
    %cst_17 = arith.constant 1.000000e+00 : f32
    %40 = vector.broadcast %cst_17 : f32 to vector<8x384xf32>
    %41 = arith.addf %40, %39 : vector<8x384xf32>
    %42 = arith.divf %40, %41 : vector<8x384xf32>
    %43 = vector.extract_strided_slice %42 {offsets = [0, 0], sizes = [8, 128], strides = [1, 1]} : vector<8x384xf32> to vector<8x128xf32>
    %44 = vector.extract_strided_slice %42 {offsets = [0, 128], sizes = [8, 128], strides = [1, 1]} : vector<8x384xf32> to vector<8x128xf32>
    %45 = vector.extract_strided_slice %42 {offsets = [0, 256], sizes = [8, 128], strides = [1, 1]} : vector<8x384xf32> to vector<8x128xf32>
    %46 = vector.extract_strided_slice %36 {offsets = [0, 384], sizes = [8, 128], strides = [1, 1]} : vector<8x512xf32> to vector<8x128xf32>
    %47 = math.tanh %46 : vector<8x128xf32>
    %48 = arith.mulf %44, %27 : vector<8x128xf32>
    %49 = arith.mulf %43, %47 : vector<8x128xf32>
    %50 = arith.addf %48, %49 : vector<8x128xf32>
    %51 = math.tanh %50 : vector<8x128xf32>
    %52 = arith.mulf %45, %51 : vector<8x128xf32>
    %c8_18 = arith.constant 8 : index
    %c0_19 = arith.constant 0 : index
    %53 = vector.load %arg8[%c8_18, %c0_19] : memref<64x128xf32, #tpu.memory_space<vmem>>, vector<8x128xf32>
    tpu.vector_store %arg8[%c8_18, %c0_19], %52 {strides = array<i32>} : memref<64x128xf32, #tpu.memory_space<vmem>>, vector<8x128xf32>,
    %c16 = arith.constant 16 : index
    %c0_20 = arith.constant 0 : index
    %54 = vector.load %arg9[%c16, %c0_20] : memref<64x512xf32, #tpu.memory_space<vmem>>, vector<8x512xf32>
    %55 = arith.truncf %52 : vector<8x128xf32> to vector<8x128xbf16>
    %c0_21 = arith.constant 0 : index
    %c0_22 = arith.constant 0 : index
    %c0_23 = arith.constant 0 : index
    %56 = vector.load %arg3[%c0_21, %c0_22, %c0_23] : memref<1x128x512xbf16, #tpu.memory_space<vmem>>, vector<1x128x512xbf16>
    %57 = vector.shape_cast %56 : vector<1x128x512xbf16> to vector<128x512xbf16>
    %cst_24 = arith.constant dense<0.000000e+00> : vector<8x512xf32>
    %58 = tpu.matmul %55, %57, %cst_24 {dimension_numbers = #tpu.dot_dimension_numbers<[1], [0], [0], [1], [0, 0, 1, 1], [], []>} : vector<8x128xbf16>, vector<128x512xbf16>, vector<8x512xf32> -> vector<8x512xf32>
    %59 = arith.addf %54, %58 : vector<8x512xf32>
    %60 = vector.extract_strided_slice %59 {offsets = [0, 0], sizes = [8, 384], strides = [1, 1]} : vector<8x512xf32> to vector<8x384xf32>
    %61 = arith.negf %60 : vector<8x384xf32>
    %62 = math.exp %61 : vector<8x384xf32>
    %cst_25 = arith.constant 1.000000e+00 : f32
    %63 = vector.broadcast %cst_25 : f32 to vector<8x384xf32>
    %64 = arith.addf %63, %62 : vector<8x384xf32>
    %65 = arith.divf %63, %64 : vector<8x384xf32>
    %66 = vector.extract_strided_slice %65 {offsets = [0, 0], sizes = [8, 128], strides = [1, 1]} : vector<8x384xf32> to vector<8x128xf32>
    %67 = vector.extract_strided_slice %65 {offsets = [0, 128], sizes = [8, 128], strides = [1, 1]} : vector<8x384xf32> to vector<8x128xf32>
    %68 = vector.extract_strided_slice %65 {offsets = [0, 256], sizes = [8, 128], strides = [1, 1]} : vector<8x384xf32> to vector<8x128xf32>
    %69 = vector.extract_strided_slice %59 {offsets = [0, 384], sizes = [8, 128], strides = [1, 1]} : vector<8x512xf32> to vector<8x128xf32>
    %70 = math.tanh %69 : vector<8x128xf32>
    %71 = arith.mulf %67, %50 : vector<8x128xf32>
    %72 = arith.mulf %66, %70 : vector<8x128xf32>
    %73 = arith.addf %71, %72 : vector<8x128xf32>
    %74 = math.tanh %73 : vector<8x128xf32>
    %75 = arith.mulf %68, %74 : vector<8x128xf32>
    %c16_26 = arith.constant 16 : index
    %c0_27 = arith.constant 0 : index
    %76 = vector.load %arg8[%c16_26, %c0_27] : memref<64x128xf32, #tpu.memory_space<vmem>>, vector<8x128xf32>
    tpu.vector_store %arg8[%c16_26, %c0_27], %75 {strides = array<i32>} : memref<64x128xf32, #tpu.memory_space<vmem>>, vector<8x128xf32>,
    %c24 = arith.constant 24 : index
    %c0_28 = arith.constant 0 : index
    %77 = vector.load %arg9[%c24, %c0_28] : memref<64x512xf32, #tpu.memory_space<vmem>>, vector<8x512xf32>
    %78 = arith.truncf %75 : vector<8x128xf32> to vector<8x128xbf16>
    %c0_29 = arith.constant 0 : index
    %c0_30 = arith.constant 0 : index
    %c0_31 = arith.constant 0 : index
    %79 = vector.load %arg3[%c0_29, %c0_30, %c0_31] : memref<1x128x512xbf16, #tpu.memory_space<vmem>>, vector<1x128x512xbf16>
    %80 = vector.shape_cast %79 : vector<1x128x512xbf16> to vector<128x512xbf16>
    %cst_32 = arith.constant dense<0.000000e+00> : vector<8x512xf32>
    %81 = tpu.matmul %78, %80, %cst_32 {dimension_numbers = #tpu.dot_dimension_numbers<[1], [0], [0], [1], [0, 0, 1, 1], [], []>} : vector<8x128xbf16>, vector<128x512xbf16>, vector<8x512xf32> -> vector<8x512xf32>
    %82 = arith.addf %77, %81 : vector<8x512xf32>
    %83 = vector.extract_strided_slice %82 {offsets = [0, 0], sizes = [8, 384], strides = [1, 1]} : vector<8x512xf32> to vector<8x384xf32>
    %84 = arith.negf %83 : vector<8x384xf32>
    %85 = math.exp %84 : vector<8x384xf32>
    %cst_33 = arith.constant 1.000000e+00 : f32
    %86 = vector.broadcast %cst_33 : f32 to vector<8x384xf32>
    %87 = arith.addf %86, %85 : vector<8x384xf32>
    %88 = arith.divf %86, %87 : vector<8x384xf32>
    %89 = vector.extract_strided_slice %88 {offsets = [0, 0], sizes = [8, 128], strides = [1, 1]} : vector<8x384xf32> to vector<8x128xf32>
    %90 = vector.extract_strided_slice %88 {offsets = [0, 128], sizes = [8, 128], strides = [1, 1]} : vector<8x384xf32> to vector<8x128xf32>
    %91 = vector.extract_strided_slice %88 {offsets = [0, 256], sizes = [8, 128], strides = [1, 1]} : vector<8x384xf32> to vector<8x128xf32>
    %92 = vector.extract_strided_slice %82 {offsets = [0, 384], sizes = [8, 128], strides = [1, 1]} : vector<8x512xf32> to vector<8x128xf32>
    %93 = math.tanh %92 : vector<8x128xf32>
    %94 = arith.mulf %90, %73 : vector<8x128xf32>
    %95 = arith.mulf %89, %93 : vector<8x128xf32>
    %96 = arith.addf %94, %95 : vector<8x128xf32>
    %97 = math.tanh %96 : vector<8x128xf32>
    %98 = arith.mulf %91, %97 : vector<8x128xf32>
    %c24_34 = arith.constant 24 : index
    %c0_35 = arith.constant 0 : index
    %99 = vector.load %arg8[%c24_34, %c0_35] : memref<64x128xf32, #tpu.memory_space<vmem>>, vector<8x128xf32>
    tpu.vector_store %arg8[%c24_34, %c0_35], %98 {strides = array<i32>} : memref<64x128xf32, #tpu.memory_space<vmem>>, vector<8x128xf32>,
    %c32 = arith.constant 32 : index
    %c0_36 = arith.constant 0 : index
    %100 = vector.load %arg9[%c32, %c0_36] : memref<64x512xf32, #tpu.memory_space<vmem>>, vector<8x512xf32>
    %101 = arith.truncf %98 : vector<8x128xf32> to vector<8x128xbf16>
    %c0_37 = arith.constant 0 : index
    %c0_38 = arith.constant 0 : index
    %c0_39 = arith.constant 0 : index
    %102 = vector.load %arg3[%c0_37, %c0_38, %c0_39] : memref<1x128x512xbf16, #tpu.memory_space<vmem>>, vector<1x128x512xbf16>
    %103 = vector.shape_cast %102 : vector<1x128x512xbf16> to vector<128x512xbf16>
    %cst_40 = arith.constant dense<0.000000e+00> : vector<8x512xf32>
    %104 = tpu.matmul %101, %103, %cst_40 {dimension_numbers = #tpu.dot_dimension_numbers<[1], [0], [0], [1], [0, 0, 1, 1], [], []>} : vector<8x128xbf16>, vector<128x512xbf16>, vector<8x512xf32> -> vector<8x512xf32>
    %105 = arith.addf %100, %104 : vector<8x512xf32>
    %106 = vector.extract_strided_slice %105 {offsets = [0, 0], sizes = [8, 384], strides = [1, 1]} : vector<8x512xf32> to vector<8x384xf32>
    %107 = arith.negf %106 : vector<8x384xf32>
    %108 = math.exp %107 : vector<8x384xf32>
    %cst_41 = arith.constant 1.000000e+00 : f32
    %109 = vector.broadcast %cst_41 : f32 to vector<8x384xf32>
    %110 = arith.addf %109, %108 : vector<8x384xf32>
    %111 = arith.divf %109, %110 : vector<8x384xf32>
    %112 = vector.extract_strided_slice %111 {offsets = [0, 0], sizes = [8, 128], strides = [1, 1]} : vector<8x384xf32> to vector<8x128xf32>
    %113 = vector.extract_strided_slice %111 {offsets = [0, 128], sizes = [8, 128], strides = [1, 1]} : vector<8x384xf32> to vector<8x128xf32>
    %114 = vector.extract_strided_slice %111 {offsets = [0, 256], sizes = [8, 128], strides = [1, 1]} : vector<8x384xf32> to vector<8x128xf32>
    %115 = vector.extract_strided_slice %105 {offsets = [0, 384], sizes = [8, 128], strides = [1, 1]} : vector<8x512xf32> to vector<8x128xf32>
    %116 = math.tanh %115 : vector<8x128xf32>
    %117 = arith.mulf %113, %96 : vector<8x128xf32>
    %118 = arith.mulf %112, %116 : vector<8x128xf32>
    %119 = arith.addf %117, %118 : vector<8x128xf32>
    %120 = math.tanh %119 : vector<8x128xf32>
    %121 = arith.mulf %114, %120 : vector<8x128xf32>
    %c32_42 = arith.constant 32 : index
    %c0_43 = arith.constant 0 : index
    %122 = vector.load %arg8[%c32_42, %c0_43] : memref<64x128xf32, #tpu.memory_space<vmem>>, vector<8x128xf32>
    tpu.vector_store %arg8[%c32_42, %c0_43], %121 {strides = array<i32>} : memref<64x128xf32, #tpu.memory_space<vmem>>, vector<8x128xf32>,
    %c40 = arith.constant 40 : index
    %c0_44 = arith.constant 0 : index
    %123 = vector.load %arg9[%c40, %c0_44] : memref<64x512xf32, #tpu.memory_space<vmem>>, vector<8x512xf32>
    %124 = arith.truncf %121 : vector<8x128xf32> to vector<8x128xbf16>
    %c0_45 = arith.constant 0 : index
    %c0_46 = arith.constant 0 : index
    %c0_47 = arith.constant 0 : index
    %125 = vector.load %arg3[%c0_45, %c0_46, %c0_47] : memref<1x128x512xbf16, #tpu.memory_space<vmem>>, vector<1x128x512xbf16>
    %126 = vector.shape_cast %125 : vector<1x128x512xbf16> to vector<128x512xbf16>
    %cst_48 = arith.constant dense<0.000000e+00> : vector<8x512xf32>
    %127 = tpu.matmul %124, %126, %cst_48 {dimension_numbers = #tpu.dot_dimension_numbers<[1], [0], [0], [1], [0, 0, 1, 1], [], []>} : vector<8x128xbf16>, vector<128x512xbf16>, vector<8x512xf32> -> vector<8x512xf32>
    %128 = arith.addf %123, %127 : vector<8x512xf32>
    %129 = vector.extract_strided_slice %128 {offsets = [0, 0], sizes = [8, 384], strides = [1, 1]} : vector<8x512xf32> to vector<8x384xf32>
    %130 = arith.negf %129 : vector<8x384xf32>
    %131 = math.exp %130 : vector<8x384xf32>
    %cst_49 = arith.constant 1.000000e+00 : f32
    %132 = vector.broadcast %cst_49 : f32 to vector<8x384xf32>
    %133 = arith.addf %132, %131 : vector<8x384xf32>
    %134 = arith.divf %132, %133 : vector<8x384xf32>
    %135 = vector.extract_strided_slice %134 {offsets = [0, 0], sizes = [8, 128], strides = [1, 1]} : vector<8x384xf32> to vector<8x128xf32>
    %136 = vector.extract_strided_slice %134 {offsets = [0, 128], sizes = [8, 128], strides = [1, 1]} : vector<8x384xf32> to vector<8x128xf32>
    %137 = vector.extract_strided_slice %134 {offsets = [0, 256], sizes = [8, 128], strides = [1, 1]} : vector<8x384xf32> to vector<8x128xf32>
    %138 = vector.extract_strided_slice %128 {offsets = [0, 384], sizes = [8, 128], strides = [1, 1]} : vector<8x512xf32> to vector<8x128xf32>
    %139 = math.tanh %138 : vector<8x128xf32>
    %140 = arith.mulf %136, %119 : vector<8x128xf32>
    %141 = arith.mulf %135, %139 : vector<8x128xf32>
    %142 = arith.addf %140, %141 : vector<8x128xf32>
    %143 = math.tanh %142 : vector<8x128xf32>
    %144 = arith.mulf %137, %143 : vector<8x128xf32>
    %c40_50 = arith.constant 40 : index
    %c0_51 = arith.constant 0 : index
    %145 = vector.load %arg8[%c40_50, %c0_51] : memref<64x128xf32, #tpu.memory_space<vmem>>, vector<8x128xf32>
    tpu.vector_store %arg8[%c40_50, %c0_51], %144 {strides = array<i32>} : memref<64x128xf32, #tpu.memory_space<vmem>>, vector<8x128xf32>,
    %c48 = arith.constant 48 : index
    %c0_52 = arith.constant 0 : index
    %146 = vector.load %arg9[%c48, %c0_52] : memref<64x512xf32, #tpu.memory_space<vmem>>, vector<8x512xf32>
    %147 = arith.truncf %144 : vector<8x128xf32> to vector<8x128xbf16>
    %c0_53 = arith.constant 0 : index
    %c0_54 = arith.constant 0 : index
    %c0_55 = arith.constant 0 : index
    %148 = vector.load %arg3[%c0_53, %c0_54, %c0_55] : memref<1x128x512xbf16, #tpu.memory_space<vmem>>, vector<1x128x512xbf16>
    %149 = vector.shape_cast %148 : vector<1x128x512xbf16> to vector<128x512xbf16>
    %cst_56 = arith.constant dense<0.000000e+00> : vector<8x512xf32>
    %150 = tpu.matmul %147, %149, %cst_56 {dimension_numbers = #tpu.dot_dimension_numbers<[1], [0], [0], [1], [0, 0, 1, 1], [], []>} : vector<8x128xbf16>, vector<128x512xbf16>, vector<8x512xf32> -> vector<8x512xf32>
    %151 = arith.addf %146, %150 : vector<8x512xf32>
    %152 = vector.extract_strided_slice %151 {offsets = [0, 0], sizes = [8, 384], strides = [1, 1]} : vector<8x512xf32> to vector<8x384xf32>
    %153 = arith.negf %152 : vector<8x384xf32>
    %154 = math.exp %153 : vector<8x384xf32>
    %cst_57 = arith.constant 1.000000e+00 : f32
    %155 = vector.broadcast %cst_57 : f32 to vector<8x384xf32>
    %156 = arith.addf %155, %154 : vector<8x384xf32>
    %157 = arith.divf %155, %156 : vector<8x384xf32>
    %158 = vector.extract_strided_slice %157 {offsets = [0, 0], sizes = [8, 128], strides = [1, 1]} : vector<8x384xf32> to vector<8x128xf32>
    %159 = vector.extract_strided_slice %157 {offsets = [0, 128], sizes = [8, 128], strides = [1, 1]} : vector<8x384xf32> to vector<8x128xf32>
    %160 = vector.extract_strided_slice %157 {offsets = [0, 256], sizes = [8, 128], strides = [1, 1]} : vector<8x384xf32> to vector<8x128xf32>
    %161 = vector.extract_strided_slice %151 {offsets = [0, 384], sizes = [8, 128], strides = [1, 1]} : vector<8x512xf32> to vector<8x128xf32>
    %162 = math.tanh %161 : vector<8x128xf32>
    %163 = arith.mulf %159, %142 : vector<8x128xf32>
    %164 = arith.mulf %158, %162 : vector<8x128xf32>
    %165 = arith.addf %163, %164 : vector<8x128xf32>
    %166 = math.tanh %165 : vector<8x128xf32>
    %167 = arith.mulf %160, %166 : vector<8x128xf32>
    %c48_58 = arith.constant 48 : index
    %c0_59 = arith.constant 0 : index
    %168 = vector.load %arg8[%c48_58, %c0_59] : memref<64x128xf32, #tpu.memory_space<vmem>>, vector<8x128xf32>
    tpu.vector_store %arg8[%c48_58, %c0_59], %167 {strides = array<i32>} : memref<64x128xf32, #tpu.memory_space<vmem>>, vector<8x128xf32>,
    %c56 = arith.constant 56 : index
    %c0_60 = arith.constant 0 : index
    %169 = vector.load %arg9[%c56, %c0_60] : memref<64x512xf32, #tpu.memory_space<vmem>>, vector<8x512xf32>
    %170 = arith.truncf %167 : vector<8x128xf32> to vector<8x128xbf16>
    %c0_61 = arith.constant 0 : index
    %c0_62 = arith.constant 0 : index
    %c0_63 = arith.constant 0 : index
    %171 = vector.load %arg3[%c0_61, %c0_62, %c0_63] : memref<1x128x512xbf16, #tpu.memory_space<vmem>>, vector<1x128x512xbf16>
    %172 = vector.shape_cast %171 : vector<1x128x512xbf16> to vector<128x512xbf16>
    %cst_64 = arith.constant dense<0.000000e+00> : vector<8x512xf32>
    %173 = tpu.matmul %170, %172, %cst_64 {dimension_numbers = #tpu.dot_dimension_numbers<[1], [0], [0], [1], [0, 0, 1, 1], [], []>} : vector<8x128xbf16>, vector<128x512xbf16>, vector<8x512xf32> -> vector<8x512xf32>
    %174 = arith.addf %169, %173 : vector<8x512xf32>
    %175 = vector.extract_strided_slice %174 {offsets = [0, 0], sizes = [8, 384], strides = [1, 1]} : vector<8x512xf32> to vector<8x384xf32>
    %176 = arith.negf %175 : vector<8x384xf32>
    %177 = math.exp %176 : vector<8x384xf32>
    %cst_65 = arith.constant 1.000000e+00 : f32
    %178 = vector.broadcast %cst_65 : f32 to vector<8x384xf32>
    %179 = arith.addf %178, %177 : vector<8x384xf32>
    %180 = arith.divf %178, %179 : vector<8x384xf32>
    %181 = vector.extract_strided_slice %180 {offsets = [0, 0], sizes = [8, 128], strides = [1, 1]} : vector<8x384xf32> to vector<8x128xf32>
    %182 = vector.extract_strided_slice %180 {offsets = [0, 128], sizes = [8, 128], strides = [1, 1]} : vector<8x384xf32> to vector<8x128xf32>
    %183 = vector.extract_strided_slice %180 {offsets = [0, 256], sizes = [8, 128], strides = [1, 1]} : vector<8x384xf32> to vector<8x128xf32>
    %184 = vector.extract_strided_slice %174 {offsets = [0, 384], sizes = [8, 128], strides = [1, 1]} : vector<8x512xf32> to vector<8x128xf32>
    %185 = math.tanh %184 : vector<8x128xf32>
    %186 = arith.mulf %182, %165 : vector<8x128xf32>
    %187 = arith.mulf %181, %185 : vector<8x128xf32>
    %188 = arith.addf %186, %187 : vector<8x128xf32>
    %189 = math.tanh %188 : vector<8x128xf32>
    %190 = arith.mulf %183, %189 : vector<8x128xf32>
    %c56_66 = arith.constant 56 : index
    %c0_67 = arith.constant 0 : index
    %191 = vector.load %arg8[%c56_66, %c0_67] : memref<64x128xf32, #tpu.memory_space<vmem>>, vector<8x128xf32>
    tpu.vector_store %arg8[%c56_66, %c0_67], %190 {strides = array<i32>} : memref<64x128xf32, #tpu.memory_space<vmem>>, vector<8x128xf32>,
    %c8_i32 = arith.constant 8 : i32
    %192 = arith.cmpi eq, %arg0, %c8_i32 : i32
    %193 = arith.extui %192 : i1 to i32
    %c0_i32_68 = arith.constant 0 : i32
    %194 = arith.cmpi ne, %193, %c0_i32_68 : i32
    scf.if %194 {
      %c0_69 = arith.constant 0 : index
      %c0_70 = arith.constant 0 : index
      %195 = vector.load %arg8[%c0_69, %c0_70] : memref<64x128xf32, #tpu.memory_space<vmem>>, vector<64x128xf32>
      %196 = arith.truncf %195 : vector<64x128xf32> to vector<64x128xbf16>
      %c0_71 = arith.constant 0 : index
      %c0_72 = arith.constant 0 : index
      %197 = vector.load %arg5[%c0_71, %c0_72] : memref<128x128xbf16, #tpu.memory_space<vmem>>, vector<128x128xbf16>
      %cst_73 = arith.constant dense<0.000000e+00> : vector<64x128xf32>
      %198 = tpu.matmul %196, %197, %cst_73 {dimension_numbers = #tpu.dot_dimension_numbers<[1], [0], [0], [1], [0, 0, 1, 1], [], []>} : vector<64x128xbf16>, vector<128x128xbf16>, vector<64x128xf32> -> vector<64x128xf32>
      %c0_74 = arith.constant 0 : index
      %c0_75 = arith.constant 0 : index
      %199 = vector.load %arg6[%c0_74, %c0_75] : memref<1x128xf32, #tpu.memory_space<vmem>>, vector<1x128xf32>
      %200 = vector.broadcast %199 : vector<1x128xf32> to vector<64x128xf32>
      %201 = arith.addf %198, %200 : vector<64x128xf32>
      %c0_76 = arith.constant 0 : index
      %c0_77 = arith.constant 0 : index
      %202 = vector.load %arg7[%c0_76, %c0_77] : memref<64x128xf32, #tpu.memory_space<vmem>>, vector<64x128xf32>
      tpu.vector_store %arg7[%c0_76, %c0_77], %201 {strides = array<i32>} : memref<64x128xf32, #tpu.memory_space<vmem>>, vector<64x128xf32>,
    } else {
    }
    return
  }
  func.func @transform_0(%arg0: i32) -> (i32, i32) {
    %c0_i32 = arith.constant 0 : i32
    %c0_i32_0 = arith.constant 0 : i32
    %c0_i32_1 = arith.constant 0 : i32
    return %c0_i32, %c0_i32_0 : i32, i32
  }
  func.func @transform_1(%arg0: i32) -> (i32, i32, i32) {
    %c0_i32 = arith.constant 0 : i32
    %c0_i32_0 = arith.constant 0 : i32
    %c0_i32_1 = arith.constant 0 : i32
    return %arg0, %c0_i32, %c0_i32_0 : i32, i32, i32
  }
  func.func @transform_2(%arg0: i32) -> (i32, i32, i32) {
    %c0_i32 = arith.constant 0 : i32
    %c0_i32_0 = arith.constant 0 : i32
    %c0_i32_1 = arith.constant 0 : i32
    return %arg0, %c0_i32, %c0_i32_0 : i32, i32, i32
  }
  func.func @transform_3(%arg0: i32) -> (i32, i32, i32) {
    %c0_i32 = arith.constant 0 : i32
    %c0_i32_0 = arith.constant 0 : i32
    %c0_i32_1 = arith.constant 0 : i32
    return %arg0, %c0_i32, %c0_i32_0 : i32, i32, i32
  }
  func.func @transform_4(%arg0: i32) -> (i32, i32) {
    %c0_i32 = arith.constant 0 : i32
    %c0_i32_0 = arith.constant 0 : i32
    %c0_i32_1 = arith.constant 0 : i32
    return %c0_i32, %c0_i32_0 : i32, i32
  }
  func.func @transform_5(%arg0: i32) -> (i32, i32) {
    %c0_i32 = arith.constant 0 : i32
    %c0_i32_0 = arith.constant 0 : i32
    %c0_i32_1 = arith.constant 0 : i32
    return %c0_i32, %c0_i32_0 : i32, i32
  }
  func.func @transform_6(%arg0: i32) -> (i32, i32) {
    %c0_i32 = arith.constant 0 : i32
    %c0_i32_0 = arith.constant 0 : i32
    %c0_i32_1 = arith.constant 0 : i32
    return %c0_i32, %c0_i32_0 : i32, i32
  }
}

</mosaic_0001>

<llo_original>
// kernel: fused_forward.1
$region0: #{fused_forward.1}
  #allocation0 [shape = 'u32[]', space=smem, size = 0x4, offset = 0x4, fixed_abs, tag = 'smem constant byte address 0x4 - core index']
  #allocation1 [shape = 'u32[72,128]{1,0:T(1,128)}', space=vmem, size = 0x9000, scoped, tag = 'internal scratch']
  #allocation2 [shape = 'f32[64,128]{1,0:T(8,128)}', space=vmem, size = 0x8000, scoped, tag = 'scratch operand']
  #allocation3 [shape = 'f32[64,512]{1,0:T(8,128)}', space=vmem, size = 0x20000, scoped, tag = 'scratch operand']
  %s0 = inlined_call_operand.vmem [shape: f32[64,128], index: 0, kind: input, shape index: {}]
  %s1 = inlined_call_operand.hbm [shape: bf16[9,128,512], index: 1, kind: input, shape index: {}]
  %s2 = inlined_call_operand.hbm [shape: bf16[9,128,512], index: 2, kind: input, shape index: {}]
  %s3 = inlined_call_operand.hbm [shape: f32[9,1,512], index: 3, kind: input, shape index: {}]
  %s4 = inlined_call_operand.hbm [shape: bf16[128,128], index: 4, kind: input, shape index: {}]
  %s5 = inlined_call_operand.hbm [shape: f32[1,128], index: 5, kind: input, shape index: {}]
  %s6 = inlined_call_operand.vmem [shape: f32[64,128], index: 6, kind: output, shape index: {}]
  %s7 = sld [smem:[#allocation0]]
  $region89: #{fused_forward.1} parent=0
    _
  %s9 = ssub.s32 1, %s7
  %s10 = scalar_select 0, %s9, %s7
  $region1: #{fused_forward.1} parent=0
    #allocation4 [shape = 'u8[262144]{0}', space=vmem, size = 0x40000, scoped, tag = 'input window, operand 1']
    #allocation5 [shape = 's32[2]{0}', space=sflag, size = 0x8, scoped, tag = 'scoped memory for fused_forward.1']
    #allocation6 [shape = 'u8[262144]{0}', space=vmem, size = 0x40000, scoped, tag = 'input window, operand 2']
    #allocation7 [shape = 's32[2]{0}', space=sflag, size = 0x8, scoped, tag = 'scoped memory for fused_forward.1']
    #allocation8 [shape = 'u8[4096]{0}', space=vmem, size = 0x1000, scoped, tag = 'input window, operand 3']
    #allocation9 [shape = 'u8[32768]{0}', space=vmem, size = 0x8000, scoped, tag = 'input window, operand 4, single buffered']
    #allocation10 [shape = 's32[1]{0}', space=sflag, size = 0x4, scoped, tag = 'scoped memory for fused_forward.1']
    #allocation11 [shape = 'u8[512]{0}', space=vmem, size = 0x400, scoped, tag = 'input window, operand 5, single buffered']
    %11 = vsyncpa [#allocation5], 0
    %s12 = scalar_lea.sflag [#allocation5], 1
    %13 = vsyncpa %s12, 0
    %14 = vsyncpa [#allocation7], 0
    %s15 = scalar_lea.sflag [#allocation7], 1
    %16 = vsyncpa %s15, 0
    %17 = vsyncpa [#allocation10], 0
    loop: start=0, step=1, limit=11
    $region2: #{fused_forward.1} parent=1 // loop_pre_header
      _
    $region3: #{fused_forward.1} parent=1 // loop_header
      %s19 = sphi 0, %s23
      %p20 = scmp.ge.s32.totalorder %s19, 11
      %s27 = sphi 0, %s27
      %s29 = sphi 0, %s27
      %s30 = sphi 0, %s29
      %s44 = sphi 0, %s30
      %s50 = sphi 0, %s52
      %s53 = sphi 0, %s50
      %s54 = sphi 0, %s53
      %s70 = sphi 0, %s54
      %s76 = sphi 0, %s78
      %s79 = sphi 0, %s76
      %s80 = sphi 0, %s79
      %s96 = sphi 0, %s80
      %s102 = sphi 0, %s104
      %s105 = sphi 0, %s102
      %s106 = sphi 0, %s105
      %s122 = sphi 0, %s106
      %s126 = sphi 0, %s126
      %s128 = sphi 0, %s126
      %s129 = sphi 0, %s128
      %s143 = sphi 0, %s129
      %s147 = sphi 0, %s147
      %s149 = sphi 0, %s147
      %s150 = sphi 0, %s149
      %s164 = sphi 0, %s150
      %s168 = sphi 0, %s168
      %s170 = sphi 0, %s168
      %s171 = sphi 0, %s170
      %s185 = sphi 0, %s171
    $region4: #{fused_forward.1} parent=1 // loop_header_branch
      %22 = sbr.rel (%p20) target = $region8
    $region5: #{fused_forward.1} parent=1 // loop_body
      %s24 = ssub.s32 %s19, 1
      %s25 = ssub.s32 %s19, 2
      %s26 = sadd.s32 %s19, 1
      %s28 = sadd.s32 %s27, 1
      %p31 = scmp.eq.s32.totalorder %s19, 8
      %p32 = scmp.ne.s32.totalorder %s27, %s29
      %p33 = scmp.eq.s32.totalorder %s19, 0
      %p34 = por %p32, %p33
      %p35 = scmp.ne.s32.totalorder %s27, %s29
      %p36 = scmp.eq.s32.totalorder %s24, 8
      %p37 = por %p35, %p36
      %p38 = scmp.ne.s32.totalorder %s29, %s30
      %p39 = scmp.eq.s32.totalorder %s24, 0
      %p40 = por %p38, %p39
      %p41 = scmp.ne.s32.totalorder %s29, %s30
      %p42 = scmp.eq.s32.totalorder %s25, 8
      %p43 = por %p41, %p42
      %p45 = scmp.ne.s32.totalorder %s30, %s44
      %p46 = scmp.eq.s32.totalorder %s25, 0
      %p47 = por %p45, %p46
      %s48 = ssub.s32 %s19, %s26
      %p49 = scmp.eq.s32.totalorder %s48, 0
      %s51 = sadd.s32 %s50, 1
      %s52 = scalar_select %p49, %s50, %s51
      %p55 = pneg %p49
      %p56 = scmp.eq.s32.totalorder %s19, 8
      %p57 = por %p55, %p56
      %p58 = scmp.ne.s32.totalorder %s50, %s53
      %p59 = scmp.eq.s32.totalorder %s19, 0
      %p60 = por %p58, %p59
      %p61 = scmp.ne.s32.totalorder %s50, %s53
      %p62 = scmp.eq.s32.totalorder %s24, 8
      %p63 = por %p61, %p62
      %p64 = scmp.ne.s32.totalorder %s53, %s54
      %p65 = scmp.eq.s32.totalorder %s24, 0
      %p66 = por %p64, %p65
      %p67 = scmp.ne.s32.totalorder %s53, %s54
      %p68 = scmp.eq.s32.totalorder %s25, 8
      %p69 = por %p67, %p68
      %p71 = scmp.ne.s32.totalorder %s54, %s70
      %p72 = scmp.eq.s32.totalorder %s25, 0
      %p73 = por %p71, %p72
      %s74 = ssub.s32 %s19, %s26
      %p75 = scmp.eq.s32.totalorder %s74, 0
      %s77 = sadd.s32 %s76, 1
      %s78 = scalar_select %p75, %s76, %s77
      %p81 = pneg %p75
      %p82 = scmp.eq.s32.totalorder %s19, 8
      %p83 = por %p81, %p82
      %p84 = scmp.ne.s32.totalorder %s76, %s79
      %p85 = scmp.eq.s32.totalorder %s19, 0
      %p86 = por %p84, %p85
      %p87 = scmp.ne.s32.totalorder %s76, %s79
      %p88 = scmp.eq.s32.totalorder %s24, 8
      %p89 = por %p87, %p88
      %p90 = scmp.ne.s32.totalorder %s79, %s80
      %p91 = scmp.eq.s32.totalorder %s24, 0
      %p92 = por %p90, %p91
      %p93 = scmp.ne.s32.totalorder %s79, %s80
      %p94 = scmp.eq.s32.totalorder %s25, 8
      %p95 = por %p93, %p94
      %p97 = scmp.ne.s32.totalorder %s80, %s96
      %p98 = scmp.eq.s32.totalorder %s25, 0
      %p99 = por %p97, %p98
      %s100 = ssub.s32 %s19, %s26
      %p101 = scmp.eq.s32.totalorder %s100, 0
      %s103 = sadd.s32 %s102, 1
      %s104 = scalar_select %p101, %s102, %s103
      %p107 = pneg %p101
      %p108 = scmp.eq.s32.totalorder %s19, 8
      %p109 = por %p107, %p108
      %p110 = scmp.ne.s32.totalorder %s102, %s105
      %p111 = scmp.eq.s32.totalorder %s19, 0
      %p112 = por %p110, %p111
      %p113 = scmp.ne.s32.totalorder %s102, %s105
      %p114 = scmp.eq.s32.totalorder %s24, 8
      %p115 = por %p113, %p114
      %p116 = scmp.ne.s32.totalorder %s105, %s106
      %p117 = scmp.eq.s32.totalorder %s24, 0
      %p118 = por %p116, %p117
      %p119 = scmp.ne.s32.totalorder %s105, %s106
      %p120 = scmp.eq.s32.totalorder %s25, 8
      %p121 = por %p119, %p120
      %p123 = scmp.ne.s32.totalorder %s106, %s122
      %p124 = scmp.eq.s32.totalorder %s25, 0
      %p125 = por %p123, %p124
      %s127 = sadd.s32 %s126, 1
      %p130 = scmp.eq.s32.totalorder %s19, 8
      %p131 = scmp.ne.s32.totalorder %s126, %s128
      %p132 = scmp.eq.s32.totalorder %s19, 0
      %p133 = por %p131, %p132
      %p134 = scmp.ne.s32.totalorder %s126, %s128
      %p135 = scmp.eq.s32.totalorder %s24, 8
      %p136 = por %p134, %p135
      %p137 = scmp.ne.s32.totalorder %s128, %s129
      %p138 = scmp.eq.s32.totalorder %s24, 0
      %p139 = por %p137, %p138
      %p140 = scmp.ne.s32.totalorder %s128, %s129
      %p141 = scmp.eq.s32.totalorder %s25, 8
      %p142 = por %p140, %p141
      %p144 = scmp.ne.s32.totalorder %s129, %s143
      %p145 = scmp.eq.s32.totalorder %s25, 0
      %p146 = por %p144, %p145
      %s148 = sadd.s32 %s147, 1
      %p151 = scmp.eq.s32.totalorder %s19, 8
      %p152 = scmp.ne.s32.totalorder %s147, %s149
      %p153 = scmp.eq.s32.totalorder %s19, 0
      %p154 = por %p152, %p153
      %p155 = scmp.ne.s32.totalorder %s147, %s149
      %p156 = scmp.eq.s32.totalorder %s24, 8
      %p157 = por %p155, %p156
      %p158 = scmp.ne.s32.totalorder %s149, %s150
      %p159 = scmp.eq.s32.totalorder %s24, 0
      %p160 = por %p158, %p159
      %p161 = scmp.ne.s32.totalorder %s149, %s150
      %p162 = scmp.eq.s32.totalorder %s25, 8
      %p163 = por %p161, %p162
      %p165 = scmp.ne.s32.totalorder %s150, %s164
      %p166 = scmp.eq.s32.totalorder %s25, 0
      %p167 = por %p165, %p166
      %s169 = sadd.s32 %s168, 1
      %p172 = scmp.eq.s32.totalorder %s19, 8
      %p173 = scmp.ne.s32.totalorder %s168, %s170
      %p174 = scmp.eq.s32.totalorder %s19, 0
      %p175 = por %p173, %p174
      %p176 = scmp.ne.s32.totalorder %s168, %s170
      %p177 = scmp.eq.s32.totalorder %s24, 8
      %p178 = por %p176, %p177
      %p179 = scmp.ne.s32.totalorder %s170, %s171
      %p180 = scmp.eq.s32.totalorder %s24, 0
      %p181 = por %p179, %p180
      %p182 = scmp.ne.s32.totalorder %s170, %s171
      %p183 = scmp.eq.s32.totalorder %s25, 8
      %p184 = por %p182, %p183
      %p186 = scmp.ne.s32.totalorder %s171, %s185
      %p187 = scmp.eq.s32.totalorder %s25, 0
      %p188 = por %p186, %p187
      %p189 = scmp.le.s32.totalorder 1, %s19
      %p190 = scmp.lt.s32.totalorder %s19, 10
      %p191 = pnand %p189, %p190
      %p192 = pneg %p191
      // Predicated region
      $region9: #{fused_forward.1} parent=5 // pred_check
        _
      $region10: #{fused_forward.1} parent=5 // pred_check_branch
        %194 = sbr.rel (%p191) target = $region12
      $region11: #{fused_forward.1} parent=5 // pred_region
        %s195 = ssub.s32 %s19, 1
        // Predicated region
        $region13: #{fused_forward.1} parent=11 // pred_check
          %p196 = pneg %p40
        $region14: #{fused_forward.1} parent=11 // pred_check_branch
          %198 = sbr.rel (%p196) target = $region16
        $region15: #{fused_forward.1} parent=11 // pred_region
          _
        $region16: #{fused_forward.1} parent=11 // pred_fallthru
          _
        // Predicated region
        $region17: #{fused_forward.1} parent=11 // pred_check
          %p199 = pneg %p139
        $region18: #{fused_forward.1} parent=11 // pred_check_branch
          %201 = sbr.rel (%p199) target = $region20
        $region19: #{fused_forward.1} parent=11 // pred_region
          %203 = vsyncadd [#allocation10], 0
          %s204 = sshll.u32 %s4, 4
          %s205 = int_to_ptr.hbm [resolvable:$true] %s204
          %s206 = sshll.u32 [#allocation9], 4
          %s207 = int_to_ptr.vmem [resolvable:$true] %s206
          %212 = dma.hbm_to_vmem [thread:$0]  %s205, 1024, %s207, [#allocation10], 64, 64, 4
        $region20: #{fused_forward.1} parent=11 // pred_fallthru
          _
        // Predicated region
        $region21: #{fused_forward.1} parent=11 // pred_check
          %p213 = pneg %p160
        $region22: #{fused_forward.1} parent=11 // pred_check_branch
          %215 = sbr.rel (%p213) target = $region24
        $region23: #{fused_forward.1} parent=11 // pred_region
          %217 = vsyncadd [#allocation10], 0
          %s219 = sshll.u32 %s5, 4
          %s220 = int_to_ptr.hbm [resolvable:$true] %s219
          %s221 = sshll.u32 [#allocation11], 4
          %s222 = int_to_ptr.vmem [resolvable:$true] %s221
          %224 = dma.hbm_to_vmem [thread:$0]  %s220, 16, %s222, [#allocation10]
        $region24: #{fused_forward.1} parent=11 // pred_fallthru
          _
      $region12: #{fused_forward.1} parent=5 // pred_fallthru
        _
      %p225 = scmp.lt.s32.totalorder %s19, 9
      // Predicated region
      $region25: #{fused_forward.1} parent=5 // pred_check
        %p226 = pneg %p225
      $region26: #{fused_forward.1} parent=5 // pred_check_branch
        %228 = sbr.rel (%p226) target = $region28
      $region27: #{fused_forward.1} parent=5 // pred_region
        // Predicated region
        $region29: #{fused_forward.1} parent=27 // pred_check
          %p229 = pneg %p60
        $region30: #{fused_forward.1} parent=27 // pred_check_branch
          %231 = sbr.rel (%p229) target = $region32
        $region31: #{fused_forward.1} parent=27 // pred_region
          %s232 = sand.u32 %s50, 1
          %s233 = scalar_lea.sflag [#allocation5], %s232
          %s234 = sand.u32 %s50, 1
          %s235 = smul.addr %s234, 256
          %s236 = scalar_lea.vmem [#allocation4], %s235
          %238 = vsyncadd %s233, 0
          %s239 = smul.addr %s19, 64
          %s240 = smul.addr %s239, 4
          %s241 = scalar_lea.hbm %s1, %s240
          %s242 = sshll.u32 %s241, 4
          %s243 = int_to_ptr.hbm [resolvable:$true] %s242
          %s244 = sshll.u32 %s236, 4
          %s245 = int_to_ptr.vmem [resolvable:$true] %s244
          %250 = dma.hbm_to_vmem [thread:$0]  %s243, 4096, %s245, %s233, 256, 256, 16
        $region32: #{fused_forward.1} parent=27 // pred_fallthru
          _
        // Predicated region
        $region33: #{fused_forward.1} parent=27 // pred_check
          %p251 = pneg %p86
        $region34: #{fused_forward.1} parent=27 // pred_check_branch
          %253 = sbr.rel (%p251) target = $region36
        $region35: #{fused_forward.1} parent=27 // pred_region
          %s254 = sand.u32 %s19, 1
          %s255 = scalar_lea.sflag [#allocation7], %s254
          %s256 = sand.u32 %s76, 1
          %s257 = smul.addr %s256, 256
          %s258 = scalar_lea.vmem [#allocation6], %s257
          %260 = vsyncadd %s255, 0
          %s261 = smul.addr %s19, 64
          %s262 = smul.addr %s261, 4
          %s263 = scalar_lea.hbm %s2, %s262
          %s264 = sshll.u32 %s263, 4
          %s265 = int_to_ptr.hbm [resolvable:$true] %s264
          %s266 = sshll.u32 %s258, 4
          %s267 = int_to_ptr.vmem [resolvable:$true] %s266
          %272 = dma.hbm_to_vmem [thread:$0]  %s265, 4096, %s267, %s255, 256, 256, 16
        $region36: #{fused_forward.1} parent=27 // pred_fallthru
          _
        // Predicated region
        $region37: #{fused_forward.1} parent=27 // pred_check
          %p273 = pneg %p112
        $region38: #{fused_forward.1} parent=27 // pred_check_branch
          %275 = sbr.rel (%p273) target = $region40
        $region39: #{fused_forward.1} parent=27 // pred_region
          %s276 = sand.u32 %s19, 1
          %s277 = scalar_lea.sflag [#allocation7], %s276
          %s278 = sand.u32 %s102, 1
          %s279 = smul.addr %s278, 4
          %s280 = scalar_lea.vmem [#allocation8], %s279
          %282 = vsyncadd %s277, 0
          %s283 = smul.addr %s19, 4
          %s284 = scalar_lea.hbm %s3, %s283
          %s286 = sshll.u32 %s284, 4
          %s287 = int_to_ptr.hbm [resolvable:$true] %s286
          %s288 = sshll.u32 %s280, 4
          %s289 = int_to_ptr.vmem [resolvable:$true] %s288
          %291 = dma.hbm_to_vmem [thread:$0]  %s287, 64, %s289, %s277
        $region40: #{fused_forward.1} parent=27 // pred_fallthru
          _
      $region28: #{fused_forward.1} parent=5 // pred_fallthru
        _
      %p292 = scmp.le.s32.totalorder 1, %s19
      %p293 = scmp.lt.s32.totalorder %s19, 10
      %p294 = pnand %p292, %p293
      %p295 = pneg %p294
      // Predicated region
      $region41: #{fused_forward.1} parent=5 // pred_check
        _
      $region42: #{fused_forward.1} parent=5 // pred_check_branch
        %297 = sbr.rel (%p294) target = $region44
      $region43: #{fused_forward.1} parent=5 // pred_region
        %s298 = ssub.s32 %s19, 1
        %s299 = sand.u32 %s53, 1
        %s300 = scalar_lea.sflag [#allocation5], %s299
        %s301 = sand.u32 %s53, 1
        %s302 = smul.addr %s301, 256
        %s303 = scalar_lea.vmem [#allocation4], %s302
        // Predicated region
        $region45: #{fused_forward.1} parent=43 // pred_check
          %p304 = pneg %p66
        $region46: #{fused_forward.1} parent=43 // pred_check_branch
          %306 = sbr.rel (%p304) target = $region48
        $region47: #{fused_forward.1} parent=43 // pred_region
          %308 = dma.done %s300, 4096
        $region48: #{fused_forward.1} parent=43 // pred_fallthru
          _
        %s309 = sand.u32 %s24, 1
        %s310 = scalar_lea.sflag [#allocation7], %s309
        %s311 = sand.u32 %s79, 1
        %s312 = smul.addr %s311, 256
        %s313 = scalar_lea.vmem [#allocation6], %s312
        // Predicated region
        $region49: #{fused_forward.1} parent=43 // pred_check
          %p314 = pneg %p92
        $region50: #{fused_forward.1} parent=43 // pred_check_branch
          %316 = sbr.rel (%p314) target = $region52
        $region51: #{fused_forward.1} parent=43 // pred_region
          %318 = dma.done %s310, 4096
        $region52: #{fused_forward.1} parent=43 // pred_fallthru
          _
        %s319 = sand.u32 %s24, 1
        %s320 = scalar_lea.sflag [#allocation7], %s319
        %s321 = sand.u32 %s105, 1
        %s322 = smul.addr %s321, 4
        %s323 = scalar_lea.vmem [#allocation8], %s322
        // Predicated region
        $region53: #{fused_forward.1} parent=43 // pred_check
          %p324 = pneg %p118
        $region54: #{fused_forward.1} parent=43 // pred_check_branch
          %326 = sbr.rel (%p324) target = $region56
        $region55: #{fused_forward.1} parent=43 // pred_region
          %328 = dma.done %s320, 64
        $region56: #{fused_forward.1} parent=43 // pred_fallthru
          _
        // Predicated region
        $region57: #{fused_forward.1} parent=43 // pred_check
          %p329 = pneg %p139
        $region58: #{fused_forward.1} parent=43 // pred_check_branch
          %331 = sbr.rel (%p329) target = $region60
        $region59: #{fused_forward.1} parent=43 // pred_region
          %333 = dma.done [#allocation10], 1024
        $region60: #{fused_forward.1} parent=43 // pred_fallthru
          _
        // Predicated region
        $region61: #{fused_forward.1} parent=43 // pred_check
          %p334 = pneg %p160
        $region62: #{fused_forward.1} parent=43 // pred_check_branch
          %336 = sbr.rel (%p334) target = $region64
        $region63: #{fused_forward.1} parent=43 // pred_region
          %338 = dma.done [#allocation10], 16
        $region64: #{fused_forward.1} parent=43 // pred_fallthru
          _
        %p339 = pneg %p40
        %p340 = pneg %p37
        %s341 = sand.u32 %s53, 1
        %s342 = scalar_lea.sflag [#allocation5], %s341
        %s343 = sand.u32 %s53, 1
        %s344 = smul.addr %s343, 256
        %s345 = scalar_lea.vmem [#allocation4], %s344
        %p346 = pneg %p66
        %p347 = pneg %p63
        %s348 = sand.u32 %s24, 1
        %s349 = scalar_lea.sflag [#allocation7], %s348
        %s350 = sand.u32 %s79, 1
        %s351 = smul.addr %s350, 256
        %s352 = scalar_lea.vmem [#allocation6], %s351
        %p353 = pneg %p92
        %p354 = pneg %p89
        %s355 = sand.u32 %s24, 1
        %s356 = scalar_lea.sflag [#allocation7], %s355
        %s357 = sand.u32 %s105, 1
        %s358 = smul.addr %s357, 4
        %s359 = scalar_lea.vmem [#allocation8], %s358
        %p360 = pneg %p118
        %p361 = pneg %p115
        %p362 = pneg %p139
        %p363 = pneg %p136
        %p364 = pneg %p160
        %p365 = pneg %p157
        %p366 = pneg %p181
        %p367 = pneg %p178
        %p369 = scmp.eq.s32.totalorder %s24, 0
        // Predicated region
        $region65: #{fused_forward.1} parent=43 // pred_check
          %p370 = pneg %p369
        $region66: #{fused_forward.1} parent=43 // pred_check_branch
          %372 = sbr.rel (%p370) target = $region68
        $region67: #{fused_forward.1} parent=43 // pred_region
          %v373 = vld [vmem:[%s0] sm:$0xff]
          %v374 = vld [vmem:[%s0 + $0x8] sm:$0xff]
          %v375 = vld [vmem:[%s0 + $0x10] sm:$0xff]
          %v376 = vld [vmem:[%s0 + $0x18] sm:$0xff]
          %v377 = vld [vmem:[%s0 + $0x20] sm:$0xff]
          %v378 = vld [vmem:[%s0 + $0x28] sm:$0xff]
          %v379 = vld [vmem:[%s0 + $0x30] sm:$0xff]
          %v380 = vld [vmem:[%s0 + $0x38] sm:$0xff]
          %v381 = vpack.c.bf16 %v374, %v373
          %v382 = vpack.c.bf16 %v376, %v375
          %v383 = vpack.c.bf16 %v378, %v377
          %v384 = vpack.c.bf16 %v380, %v379
          %v385 = vld [vmem:[%s303] sm:$0xff]
          %v386 = vld [vmem:[%s303 + $0x8] sm:$0xff]
          %v387 = vld [vmem:[%s303 + $0x10] sm:$0xff]
          %v388 = vld [vmem:[%s303 + $0x18] sm:$0xff]
          %v389 = vld [vmem:[%s303 + $0x20] sm:$0xff]
          %v390 = vld [vmem:[%s303 + $0x28] sm:$0xff]
          %v391 = vld [vmem:[%s303 + $0x30] sm:$0xff]
          %v392 = vld [vmem:[%s303 + $0x38] sm:$0xff]
          %v393 = vld [vmem:[%s303 + $0x40] sm:$0xff]
          %v394 = vld [vmem:[%s303 + $0x48] sm:$0xff]
          %v395 = vld [vmem:[%s303 + $0x50] sm:$0xff]
          %v396 = vld [vmem:[%s303 + $0x58] sm:$0xff]
          %v397 = vld [vmem:[%s303 + $0x60] sm:$0xff]
          %v398 = vld [vmem:[%s303 + $0x68] sm:$0xff]
          %v399 = vld [vmem:[%s303 + $0x70] sm:$0xff]
          %v400 = vld [vmem:[%s303 + $0x78] sm:$0xff]
          %v401 = vld [vmem:[%s303 + $0x80] sm:$0xff]
          %v402 = vld [vmem:[%s303 + $0x88] sm:$0xff]
          %v403 = vld [vmem:[%s303 + $0x90] sm:$0xff]
          %v404 = vld [vmem:[%s303 + $0x98] sm:$0xff]
          %v405 = vld [vmem:[%s303 + $0xa0] sm:$0xff]
          %v406 = vld [vmem:[%s303 + $0xa8] sm:$0xff]
          %v407 = vld [vmem:[%s303 + $0xb0] sm:$0xff]
          %v408 = vld [vmem:[%s303 + $0xb8] sm:$0xff]
          %v409 = vld [vmem:[%s303 + $0xc0] sm:$0xff]
          %v410 = vld [vmem:[%s303 + $0xc8] sm:$0xff]
          %v411 = vld [vmem:[%s303 + $0xd0] sm:$0xff]
          %v412 = vld [vmem:[%s303 + $0xd8] sm:$0xff]
          %v413 = vld [vmem:[%s303 + $0xe0] sm:$0xff]
          %v414 = vld [vmem:[%s303 + $0xe8] sm:$0xff]
          %v415 = vld [vmem:[%s303 + $0xf0] sm:$0xff]
          %v416 = vld [vmem:[%s303 + $0xf8] sm:$0xff]
          %v417 = vld [vmem:[%s323] sm:$0xf]
          %v419 = vperm.slane %v417, 0
          %v420 = vperm.slane %v417, 1
          %v421 = vperm.slane %v417, 2
          %v422 = vperm.slane %v417, 3
          %v459 = vunpack.c.l.b16 %v385
          %v460 = vunpack.c.h.b16 %v385
          %v461 = vunpack.c.l.b16 %v386
          %v462 = vunpack.c.h.b16 %v386
          %v463 = vunpack.c.l.b16 %v387
          %v464 = vunpack.c.h.b16 %v387
          %v465 = vunpack.c.l.b16 %v388
          %v466 = vunpack.c.h.b16 %v388
          %v467 = vunpack.c.l.b16 %v389
          %v468 = vunpack.c.h.b16 %v389
          %v469 = vunpack.c.l.b16 %v390
          %v470 = vunpack.c.h.b16 %v390
          %v471 = vunpack.c.l.b16 %v391
          %v472 = vunpack.c.h.b16 %v391
          %v473 = vunpack.c.l.b16 %v392
          %v474 = vunpack.c.h.b16 %v392
          %v475 = vunpack.c.l.b16 %v393
          %v476 = vunpack.c.h.b16 %v393
          %v477 = vunpack.c.l.b16 %v394
          %v478 = vunpack.c.h.b16 %v394
          %v479 = vunpack.c.l.b16 %v395
          %v480 = vunpack.c.h.b16 %v395
          %v481 = vunpack.c.l.b16 %v396
          %v482 = vunpack.c.h.b16 %v396
          %v483 = vunpack.c.l.b16 %v397
          %v484 = vunpack.c.h.b16 %v397
          %v485 = vunpack.c.l.b16 %v398
          %v486 = vunpack.c.h.b16 %v398
          %v487 = vunpack.c.l.b16 %v399
          %v488 = vunpack.c.h.b16 %v399
          %v489 = vunpack.c.l.b16 %v400
          %v490 = vunpack.c.h.b16 %v400
          %v491 = vunpack.c.l.b16 %v401
          %v492 = vunpack.c.h.b16 %v401
          %v493 = vunpack.c.l.b16 %v402
          %v494 = vunpack.c.h.b16 %v402
          %v495 = vunpack.c.l.b16 %v403
          %v496 = vunpack.c.h.b16 %v403
          %v497 = vunpack.c.l.b16 %v404
          %v498 = vunpack.c.h.b16 %v404
          %v499 = vunpack.c.l.b16 %v405
          %v500 = vunpack.c.h.b16 %v405
          %v501 = vunpack.c.l.b16 %v406
          %v502 = vunpack.c.h.b16 %v406
          %v503 = vunpack.c.l.b16 %v407
          %v504 = vunpack.c.h.b16 %v407
          %v505 = vunpack.c.l.b16 %v408
          %v506 = vunpack.c.h.b16 %v408
          %v507 = vunpack.c.l.b16 %v409
          %v508 = vunpack.c.h.b16 %v409
          %v509 = vunpack.c.l.b16 %v410
          %v510 = vunpack.c.h.b16 %v410
          %v511 = vunpack.c.l.b16 %v411
          %v512 = vunpack.c.h.b16 %v411
          %v513 = vunpack.c.l.b16 %v412
          %v514 = vunpack.c.h.b16 %v412
          %v515 = vunpack.c.l.b16 %v413
          %v516 = vunpack.c.h.b16 %v413
          %v517 = vunpack.c.l.b16 %v414
          %v518 = vunpack.c.h.b16 %v414
          %v519 = vunpack.c.l.b16 %v415
          %v520 = vunpack.c.h.b16 %v415
          %v521 = vunpack.c.l.b16 %v416
          %v522 = vunpack.c.h.b16 %v416
          %v523 = vpack.c.b16 %v463, %v459
          %v524 = vpack.c.b16 %v464, %v460
          %v525 = vpack.c.b16 %v465, %v461
          %v526 = vpack.c.b16 %v466, %v462
          %v527 = vpack.c.b16 %v471, %v467
          %v528 = vpack.c.b16 %v472, %v468
          %v529 = vpack.c.b16 %v473, %v469
          %v530 = vpack.c.b16 %v474, %v470
          %v531 = vpack.c.b16 %v479, %v475
          %v532 = vpack.c.b16 %v480, %v476
          %v533 = vpack.c.b16 %v481, %v477
          %v534 = vpack.c.b16 %v482, %v478
          %v535 = vpack.c.b16 %v487, %v483
          %v536 = vpack.c.b16 %v488, %v484
          %v537 = vpack.c.b16 %v489, %v485
          %v538 = vpack.c.b16 %v490, %v486
          %v539 = vpack.c.b16 %v495, %v491
          %v540 = vpack.c.b16 %v496, %v492
          %v541 = vpack.c.b16 %v497, %v493
          %v542 = vpack.c.b16 %v498, %v494
          %v543 = vpack.c.b16 %v503, %v499
          %v544 = vpack.c.b16 %v504, %v500
          %v545 = vpack.c.b16 %v505, %v501
          %v546 = vpack.c.b16 %v506, %v502
          %v547 = vpack.c.b16 %v511, %v507
          %v548 = vpack.c.b16 %v512, %v508
          %v549 = vpack.c.b16 %v513, %v509
          %v550 = vpack.c.b16 %v514, %v510
          %v551 = vpack.c.b16 %v519, %v515
          %v552 = vpack.c.b16 %v520, %v516
          %v553 = vpack.c.b16 %v521, %v517
          %v554 = vpack.c.b16 %v522, %v518
          %587 = vmatpush.bf16.msra.mxu0 %v551
          %588 = vmatpush.bf16.msra.mxu0 %v547
          %589 = vmatpush.bf16.msra.mxu0 %v543
          %590 = vmatpush.bf16.msra.mxu0 %v539
          %591 = vmatpush.bf16.msra.mxu0 %v535
          %592 = vmatpush.bf16.msra.mxu0 %v531
          %593 = vmatpush.bf16.msra.mxu0 %v527
          %594 = vmatpush.bf16.msra.mxu0 %v523
          %595 = vmatmul.bf16.gmra.mxu0 %v381
          %v596 = vpop.f32.mrf.mxu0
          %v597 = vadd.f32 %v419, %v596
          %v598 = vpop.f32.mrf.mxu0
          %v599 = vadd.f32 %v419, %v598
          %600 = vmatmul.bf16.gmra.mxu0 %v382
          %v601 = vpop.f32.mrf.mxu0
          %v602 = vadd.f32 %v419, %v601
          %v603 = vpop.f32.mrf.mxu0
          %v604 = vadd.f32 %v419, %v603
          %605 = vmatmul.bf16.gmra.mxu0 %v383
          %v606 = vpop.f32.mrf.mxu0
          %v607 = vadd.f32 %v419, %v606
          %v608 = vpop.f32.mrf.mxu0
          %v609 = vadd.f32 %v419, %v608
          %610 = vmatmul.bf16.gmra.mxu0 %v384
          %v611 = vpop.f32.mrf.mxu0
          %v612 = vadd.f32 %v419, %v611
          %v613 = vpop.f32.mrf.mxu0
          %v614 = vadd.f32 %v419, %v613
          %615 = vdwg.mxu0
          %616 = vmatpush.bf16.msra.mxu0 %v552
          %617 = vmatpush.bf16.msra.mxu0 %v548
          %618 = vmatpush.bf16.msra.mxu0 %v544
          %619 = vmatpush.bf16.msra.mxu0 %v540
          %620 = vmatpush.bf16.msra.mxu0 %v536
          %621 = vmatpush.bf16.msra.mxu0 %v532
          %622 = vmatpush.bf16.msra.mxu0 %v528
          %623 = vmatpush.bf16.msra.mxu0 %v524
          %624 = vmatmul.bf16.gmra.mxu0 %v381
          %v625 = vpop.f32.mrf.mxu0
          %v626 = vadd.f32 %v420, %v625
          %v627 = vpop.f32.mrf.mxu0
          %v628 = vadd.f32 %v420, %v627
          %629 = vmatmul.bf16.gmra.mxu0 %v382
          %v630 = vpop.f32.mrf.mxu0
          %v631 = vadd.f32 %v420, %v630
          %v632 = vpop.f32.mrf.mxu0
          %v633 = vadd.f32 %v420, %v632
          %634 = vmatmul.bf16.gmra.mxu0 %v383
          %v635 = vpop.f32.mrf.mxu0
          %v636 = vadd.f32 %v420, %v635
          %v637 = vpop.f32.mrf.mxu0
          %v638 = vadd.f32 %v420, %v637
          %639 = vmatmul.bf16.gmra.mxu0 %v384
          %v640 = vpop.f32.mrf.mxu0
          %v641 = vadd.f32 %v420, %v640
          %v642 = vpop.f32.mrf.mxu0
          %v643 = vadd.f32 %v420, %v642
          %644 = vdwg.mxu0
          %645 = vmatpush.bf16.msra.mxu0 %v553
          %646 = vmatpush.bf16.msra.mxu0 %v549
          %647 = vmatpush.bf16.msra.mxu0 %v545
          %648 = vmatpush.bf16.msra.mxu0 %v541
          %649 = vmatpush.bf16.msra.mxu0 %v537
          %650 = vmatpush.bf16.msra.mxu0 %v533
          %651 = vmatpush.bf16.msra.mxu0 %v529
          %652 = vmatpush.bf16.msra.mxu0 %v525
          %653 = vmatmul.bf16.gmra.mxu0 %v381
          %v654 = vpop.f32.mrf.mxu0
          %v655 = vadd.f32 %v421, %v654
          %v656 = vpop.f32.mrf.mxu0
          %v657 = vadd.f32 %v421, %v656
          %658 = vmatmul.bf16.gmra.mxu0 %v382
          %v659 = vpop.f32.mrf.mxu0
          %v660 = vadd.f32 %v421, %v659
          %v661 = vpop.f32.mrf.mxu0
          %v662 = vadd.f32 %v421, %v661
          %663 = vmatmul.bf16.gmra.mxu0 %v383
          %v664 = vpop.f32.mrf.mxu0
          %v665 = vadd.f32 %v421, %v664
          %v666 = vpop.f32.mrf.mxu0
          %v667 = vadd.f32 %v421, %v666
          %668 = vmatmul.bf16.gmra.mxu0 %v384
          %v669 = vpop.f32.mrf.mxu0
          %v670 = vadd.f32 %v421, %v669
          %v671 = vpop.f32.mrf.mxu0
          %v672 = vadd.f32 %v421, %v671
          %673 = vdwg.mxu0
          %674 = vmatpush.bf16.msra.mxu0 %v554
          %675 = vmatpush.bf16.msra.mxu0 %v550
          %676 = vmatpush.bf16.msra.mxu0 %v546
          %677 = vmatpush.bf16.msra.mxu0 %v542
          %678 = vmatpush.bf16.msra.mxu0 %v538
          %679 = vmatpush.bf16.msra.mxu0 %v534
          %680 = vmatpush.bf16.msra.mxu0 %v530
          %681 = vmatpush.bf16.msra.mxu0 %v526
          %682 = vmatmul.bf16.gmra.mxu0 %v381
          %v683 = vpop.f32.mrf.mxu0
          %v684 = vadd.f32 %v422, %v683
          %v685 = vpop.f32.mrf.mxu0
          %v686 = vadd.f32 %v422, %v685
          %687 = vmatmul.bf16.gmra.mxu0 %v382
          %v688 = vpop.f32.mrf.mxu0
          %v689 = vadd.f32 %v422, %v688
          %v690 = vpop.f32.mrf.mxu0
          %v691 = vadd.f32 %v422, %v690
          %692 = vmatmul.bf16.gmra.mxu0 %v383
          %v693 = vpop.f32.mrf.mxu0
          %v694 = vadd.f32 %v422, %v693
          %v695 = vpop.f32.mrf.mxu0
          %v696 = vadd.f32 %v422, %v695
          %697 = vmatmul.bf16.gmra.mxu0 %v384
          %v698 = vpop.f32.mrf.mxu0
          %v699 = vadd.f32 %v422, %v698
          %v700 = vpop.f32.mrf.mxu0
          %v701 = vadd.f32 %v422, %v700
          %702 = vdwg.mxu0
          %703 = vst [vmem:[#allocation3] sm:$0xff] %v597
          %704 = vst [vmem:[#allocation3 + $0x8] sm:$0xff] %v626
          %705 = vst [vmem:[#allocation3 + $0x10] sm:$0xff] %v655
          %706 = vst [vmem:[#allocation3 + $0x18] sm:$0xff] %v684
          %707 = vst [vmem:[#allocation3 + $0x20] sm:$0xff] %v599
          %708 = vst [vmem:[#allocation3 + $0x28] sm:$0xff] %v628
          %709 = vst [vmem:[#allocation3 + $0x30] sm:$0xff] %v657
          %710 = vst [vmem:[#allocation3 + $0x38] sm:$0xff] %v686
          %711 = vst [vmem:[#allocation3 + $0x40] sm:$0xff] %v602
          %712 = vst [vmem:[#allocation3 + $0x48] sm:$0xff] %v631
          %713 = vst [vmem:[#allocation3 + $0x50] sm:$0xff] %v660
          %714 = vst [vmem:[#allocation3 + $0x58] sm:$0xff] %v689
          %715 = vst [vmem:[#allocation3 + $0x60] sm:$0xff] %v604
          %716 = vst [vmem:[#allocation3 + $0x68] sm:$0xff] %v633
          %717 = vst [vmem:[#allocation3 + $0x70] sm:$0xff] %v662
          %718 = vst [vmem:[#allocation3 + $0x78] sm:$0xff] %v691
          %719 = vst [vmem:[#allocation3 + $0x80] sm:$0xff] %v607
          %720 = vst [vmem:[#allocation3 + $0x88] sm:$0xff] %v636
          %721 = vst [vmem:[#allocation3 + $0x90] sm:$0xff] %v665
          %722 = vst [vmem:[#allocation3 + $0x98] sm:$0xff] %v694
          %723 = vst [vmem:[#allocation3 + $0xa0] sm:$0xff] %v609
          %724 = vst [vmem:[#allocation3 + $0xa8] sm:$0xff] %v638
          %725 = vst [vmem:[#allocation3 + $0xb0] sm:$0xff] %v667
          %726 = vst [vmem:[#allocation3 + $0xb8] sm:$0xff] %v696
          %727 = vst [vmem:[#allocation3 + $0xc0] sm:$0xff] %v612
          %728 = vst [vmem:[#allocation3 + $0xc8] sm:$0xff] %v641
          %729 = vst [vmem:[#allocation3 + $0xd0] sm:$0xff] %v670
          %730 = vst [vmem:[#allocation3 + $0xd8] sm:$0xff] %v699
          %731 = vst [vmem:[#allocation3 + $0xe0] sm:$0xff] %v614
          %732 = vst [vmem:[#allocation3 + $0xe8] sm:$0xff] %v643
          %733 = vst [vmem:[#allocation3 + $0xf0] sm:$0xff] %v672
          %734 = vst [vmem:[#allocation3 + $0xf8] sm:$0xff] %v701
        $region68: #{fused_forward.1} parent=43 // pred_fallthru
          _
        %p735 = scmp.gt.s32.totalorder %s24, 0
        // Predicated region
        $region69: #{fused_forward.1} parent=43 // pred_check
          %p736 = pneg %p735
        $region70: #{fused_forward.1} parent=43 // pred_check_branch
          %738 = sbr.rel (%p736) target = $region72
        $region71: #{fused_forward.1} parent=43 // pred_region
          %v739 = vld [vmem:[#allocation2] sm:$0xff]
          %v740 = vld [vmem:[#allocation2 + $0x8] sm:$0xff]
          %v741 = vld [vmem:[#allocation2 + $0x10] sm:$0xff]
          %v742 = vld [vmem:[#allocation2 + $0x18] sm:$0xff]
          %v743 = vld [vmem:[#allocation2 + $0x20] sm:$0xff]
          %v744 = vld [vmem:[#allocation2 + $0x28] sm:$0xff]
          %v745 = vld [vmem:[#allocation2 + $0x30] sm:$0xff]
          %v746 = vld [vmem:[#allocation2 + $0x38] sm:$0xff]
          %v747 = vpack.c.bf16 %v740, %v739
          %v748 = vpack.c.bf16 %v742, %v741
          %v749 = vpack.c.bf16 %v744, %v743
          %v750 = vpack.c.bf16 %v746, %v745
          %v751 = vld [vmem:[%s303] sm:$0xff]
          %v752 = vld [vmem:[%s303 + $0x8] sm:$0xff]
          %v753 = vld [vmem:[%s303 + $0x10] sm:$0xff]
          %v754 = vld [vmem:[%s303 + $0x18] sm:$0xff]
          %v755 = vld [vmem:[%s303 + $0x20] sm:$0xff]
          %v756 = vld [vmem:[%s303 + $0x28] sm:$0xff]
          %v757 = vld [vmem:[%s303 + $0x30] sm:$0xff]
          %v758 = vld [vmem:[%s303 + $0x38] sm:$0xff]
          %v759 = vld [vmem:[%s303 + $0x40] sm:$0xff]
          %v760 = vld [vmem:[%s303 + $0x48] sm:$0xff]
          %v761 = vld [vmem:[%s303 + $0x50] sm:$0xff]
          %v762 = vld [vmem:[%s303 + $0x58] sm:$0xff]
          %v763 = vld [vmem:[%s303 + $0x60] sm:$0xff]
          %v764 = vld [vmem:[%s303 + $0x68] sm:$0xff]
          %v765 = vld [vmem:[%s303 + $0x70] sm:$0xff]
          %v766 = vld [vmem:[%s303 + $0x78] sm:$0xff]
          %v767 = vld [vmem:[%s303 + $0x80] sm:$0xff]
          %v768 = vld [vmem:[%s303 + $0x88] sm:$0xff]
          %v769 = vld [vmem:[%s303 + $0x90] sm:$0xff]
          %v770 = vld [vmem:[%s303 + $0x98] sm:$0xff]
          %v771 = vld [vmem:[%s303 + $0xa0] sm:$0xff]
          %v772 = vld [vmem:[%s303 + $0xa8] sm:$0xff]
          %v773 = vld [vmem:[%s303 + $0xb0] sm:$0xff]
          %v774 = vld [vmem:[%s303 + $0xb8] sm:$0xff]
          %v775 = vld [vmem:[%s303 + $0xc0] sm:$0xff]
          %v776 = vld [vmem:[%s303 + $0xc8] sm:$0xff]
          %v777 = vld [vmem:[%s303 + $0xd0] sm:$0xff]
          %v778 = vld [vmem:[%s303 + $0xd8] sm:$0xff]
          %v779 = vld [vmem:[%s303 + $0xe0] sm:$0xff]
          %v780 = vld [vmem:[%s303 + $0xe8] sm:$0xff]
          %v781 = vld [vmem:[%s303 + $0xf0] sm:$0xff]
          %v782 = vld [vmem:[%s303 + $0xf8] sm:$0xff]
          %v783 = vld [vmem:[%s323] sm:$0xf]
          %v785 = vperm.slane %v783, 0
          %v786 = vperm.slane %v783, 1
          %v787 = vperm.slane %v783, 2
          %v788 = vperm.slane %v783, 3
          %v825 = vunpack.c.l.b16 %v751
          %v826 = vunpack.c.h.b16 %v751
          %v827 = vunpack.c.l.b16 %v752
          %v828 = vunpack.c.h.b16 %v752
          %v829 = vunpack.c.l.b16 %v753
          %v830 = vunpack.c.h.b16 %v753
          %v831 = vunpack.c.l.b16 %v754
          %v832 = vunpack.c.h.b16 %v754
          %v833 = vunpack.c.l.b16 %v755
          %v834 = vunpack.c.h.b16 %v755
          %v835 = vunpack.c.l.b16 %v756
          %v836 = vunpack.c.h.b16 %v756
          %v837 = vunpack.c.l.b16 %v757
          %v838 = vunpack.c.h.b16 %v757
          %v839 = vunpack.c.l.b16 %v758
          %v840 = vunpack.c.h.b16 %v758
          %v841 = vunpack.c.l.b16 %v759
          %v842 = vunpack.c.h.b16 %v759
          %v843 = vunpack.c.l.b16 %v760
          %v844 = vunpack.c.h.b16 %v760
          %v845 = vunpack.c.l.b16 %v761
          %v846 = vunpack.c.h.b16 %v761
          %v847 = vunpack.c.l.b16 %v762
          %v848 = vunpack.c.h.b16 %v762
          %v849 = vunpack.c.l.b16 %v763
          %v850 = vunpack.c.h.b16 %v763
          %v851 = vunpack.c.l.b16 %v764
          %v852 = vunpack.c.h.b16 %v764
          %v853 = vunpack.c.l.b16 %v765
          %v854 = vunpack.c.h.b16 %v765
          %v855 = vunpack.c.l.b16 %v766
          %v856 = vunpack.c.h.b16 %v766
          %v857 = vunpack.c.l.b16 %v767
          %v858 = vunpack.c.h.b16 %v767
          %v859 = vunpack.c.l.b16 %v768
          %v860 = vunpack.c.h.b16 %v768
          %v861 = vunpack.c.l.b16 %v769
          %v862 = vunpack.c.h.b16 %v769
          %v863 = vunpack.c.l.b16 %v770
          %v864 = vunpack.c.h.b16 %v770
          %v865 = vunpack.c.l.b16 %v771
          %v866 = vunpack.c.h.b16 %v771
          %v867 = vunpack.c.l.b16 %v772
          %v868 = vunpack.c.h.b16 %v772
          %v869 = vunpack.c.l.b16 %v773
          %v870 = vunpack.c.h.b16 %v773
          %v871 = vunpack.c.l.b16 %v774
          %v872 = vunpack.c.h.b16 %v774
          %v873 = vunpack.c.l.b16 %v775
          %v874 = vunpack.c.h.b16 %v775
          %v875 = vunpack.c.l.b16 %v776
          %v876 = vunpack.c.h.b16 %v776
          %v877 = vunpack.c.l.b16 %v777
          %v878 = vunpack.c.h.b16 %v777
          %v879 = vunpack.c.l.b16 %v778
          %v880 = vunpack.c.h.b16 %v778
          %v881 = vunpack.c.l.b16 %v779
          %v882 = vunpack.c.h.b16 %v779
          %v883 = vunpack.c.l.b16 %v780
          %v884 = vunpack.c.h.b16 %v780
          %v885 = vunpack.c.l.b16 %v781
          %v886 = vunpack.c.h.b16 %v781
          %v887 = vunpack.c.l.b16 %v782
          %v888 = vunpack.c.h.b16 %v782
          %v889 = vpack.c.b16 %v829, %v825
          %v890 = vpack.c.b16 %v830, %v826
          %v891 = vpack.c.b16 %v831, %v827
          %v892 = vpack.c.b16 %v832, %v828
          %v893 = vpack.c.b16 %v837, %v833
          %v894 = vpack.c.b16 %v838, %v834
          %v895 = vpack.c.b16 %v839, %v835
          %v896 = vpack.c.b16 %v840, %v836
          %v897 = vpack.c.b16 %v845, %v841
          %v898 = vpack.c.b16 %v846, %v842
          %v899 = vpack.c.b16 %v847, %v843
          %v900 = vpack.c.b16 %v848, %v844
          %v901 = vpack.c.b16 %v853, %v849
          %v902 = vpack.c.b16 %v854, %v850
          %v903 = vpack.c.b16 %v855, %v851
          %v904 = vpack.c.b16 %v856, %v852
          %v905 = vpack.c.b16 %v861, %v857
          %v906 = vpack.c.b16 %v862, %v858
          %v907 = vpack.c.b16 %v863, %v859
          %v908 = vpack.c.b16 %v864, %v860
          %v909 = vpack.c.b16 %v869, %v865
          %v910 = vpack.c.b16 %v870, %v866
          %v911 = vpack.c.b16 %v871, %v867
          %v912 = vpack.c.b16 %v872, %v868
          %v913 = vpack.c.b16 %v877, %v873
          %v914 = vpack.c.b16 %v878, %v874
          %v915 = vpack.c.b16 %v879, %v875
          %v916 = vpack.c.b16 %v880, %v876
          %v917 = vpack.c.b16 %v885, %v881
          %v918 = vpack.c.b16 %v886, %v882
          %v919 = vpack.c.b16 %v887, %v883
          %v920 = vpack.c.b16 %v888, %v884
          %953 = vmatpush.bf16.msra.mxu0 %v917
          %954 = vmatpush.bf16.msra.mxu0 %v913
          %955 = vmatpush.bf16.msra.mxu0 %v909
          %956 = vmatpush.bf16.msra.mxu0 %v905
          %957 = vmatpush.bf16.msra.mxu0 %v901
          %958 = vmatpush.bf16.msra.mxu0 %v897
          %959 = vmatpush.bf16.msra.mxu0 %v893
          %960 = vmatpush.bf16.msra.mxu0 %v889
          %961 = vmatmul.bf16.gmra.mxu0 %v747
          %v962 = vpop.f32.mrf.mxu0
          %v963 = vadd.f32 %v785, %v962
          %v964 = vpop.f32.mrf.mxu0
          %v965 = vadd.f32 %v785, %v964
          %966 = vmatmul.bf16.gmra.mxu0 %v748
          %v967 = vpop.f32.mrf.mxu0
          %v968 = vadd.f32 %v785, %v967
          %v969 = vpop.f32.mrf.mxu0
          %v970 = vadd.f32 %v785, %v969
          %971 = vmatmul.bf16.gmra.mxu0 %v749
          %v972 = vpop.f32.mrf.mxu0
          %v973 = vadd.f32 %v785, %v972
          %v974 = vpop.f32.mrf.mxu0
          %v975 = vadd.f32 %v785, %v974
          %976 = vmatmul.bf16.gmra.mxu0 %v750
          %v977 = vpop.f32.mrf.mxu0
          %v978 = vadd.f32 %v785, %v977
          %v979 = vpop.f32.mrf.mxu0
          %v980 = vadd.f32 %v785, %v979
          %981 = vdwg.mxu0
          %982 = vmatpush.bf16.msra.mxu0 %v918
          %983 = vmatpush.bf16.msra.mxu0 %v914
          %984 = vmatpush.bf16.msra.mxu0 %v910
          %985 = vmatpush.bf16.msra.mxu0 %v906
          %986 = vmatpush.bf16.msra.mxu0 %v902
          %987 = vmatpush.bf16.msra.mxu0 %v898
          %988 = vmatpush.bf16.msra.mxu0 %v894
          %989 = vmatpush.bf16.msra.mxu0 %v890
          %990 = vmatmul.bf16.gmra.mxu0 %v747
          %v991 = vpop.f32.mrf.mxu0
          %v992 = vadd.f32 %v786, %v991
          %v993 = vpop.f32.mrf.mxu0
          %v994 = vadd.f32 %v786, %v993
          %995 = vmatmul.bf16.gmra.mxu0 %v748
          %v996 = vpop.f32.mrf.mxu0
          %v997 = vadd.f32 %v786, %v996
          %v998 = vpop.f32.mrf.mxu0
          %v999 = vadd.f32 %v786, %v998
          %1000 = vmatmul.bf16.gmra.mxu0 %v749
          %v1001 = vpop.f32.mrf.mxu0
          %v1002 = vadd.f32 %v786, %v1001
          %v1003 = vpop.f32.mrf.mxu0
          %v1004 = vadd.f32 %v786, %v1003
          %1005 = vmatmul.bf16.gmra.mxu0 %v750
          %v1006 = vpop.f32.mrf.mxu0
          %v1007 = vadd.f32 %v786, %v1006
          %v1008 = vpop.f32.mrf.mxu0
          %v1009 = vadd.f32 %v786, %v1008
          %1010 = vdwg.mxu0
          %1011 = vmatpush.bf16.msra.mxu0 %v919
          %1012 = vmatpush.bf16.msra.mxu0 %v915
          %1013 = vmatpush.bf16.msra.mxu0 %v911
          %1014 = vmatpush.bf16.msra.mxu0 %v907
          %1015 = vmatpush.bf16.msra.mxu0 %v903
          %1016 = vmatpush.bf16.msra.mxu0 %v899
          %1017 = vmatpush.bf16.msra.mxu0 %v895
          %1018 = vmatpush.bf16.msra.mxu0 %v891
          %1019 = vmatmul.bf16.gmra.mxu0 %v747
          %v1020 = vpop.f32.mrf.mxu0
          %v1021 = vadd.f32 %v787, %v1020
          %v1022 = vpop.f32.mrf.mxu0
          %v1023 = vadd.f32 %v787, %v1022
          %1024 = vmatmul.bf16.gmra.mxu0 %v748
          %v1025 = vpop.f32.mrf.mxu0
          %v1026 = vadd.f32 %v787, %v1025
          %v1027 = vpop.f32.mrf.mxu0
          %v1028 = vadd.f32 %v787, %v1027
          %1029 = vmatmul.bf16.gmra.mxu0 %v749
          %v1030 = vpop.f32.mrf.mxu0
          %v1031 = vadd.f32 %v787, %v1030
          %v1032 = vpop.f32.mrf.mxu0
          %v1033 = vadd.f32 %v787, %v1032
          %1034 = vmatmul.bf16.gmra.mxu0 %v750
          %v1035 = vpop.f32.mrf.mxu0
          %v1036 = vadd.f32 %v787, %v1035
          %v1037 = vpop.f32.mrf.mxu0
          %v1038 = vadd.f32 %v787, %v1037
          %1039 = vdwg.mxu0
          %1040 = vmatpush.bf16.msra.mxu0 %v920
          %1041 = vmatpush.bf16.msra.mxu0 %v916
          %1042 = vmatpush.bf16.msra.mxu0 %v912
          %1043 = vmatpush.bf16.msra.mxu0 %v908
          %1044 = vmatpush.bf16.msra.mxu0 %v904
          %1045 = vmatpush.bf16.msra.mxu0 %v900
          %1046 = vmatpush.bf16.msra.mxu0 %v896
          %1047 = vmatpush.bf16.msra.mxu0 %v892
          %1048 = vmatmul.bf16.gmra.mxu0 %v747
          %v1049 = vpop.f32.mrf.mxu0
          %v1050 = vadd.f32 %v788, %v1049
          %v1051 = vpop.f32.mrf.mxu0
          %v1052 = vadd.f32 %v788, %v1051
          %1053 = vmatmul.bf16.gmra.mxu0 %v748
          %v1054 = vpop.f32.mrf.mxu0
          %v1055 = vadd.f32 %v788, %v1054
          %v1056 = vpop.f32.mrf.mxu0
          %v1057 = vadd.f32 %v788, %v1056
          %1058 = vmatmul.bf16.gmra.mxu0 %v749
          %v1059 = vpop.f32.mrf.mxu0
          %v1060 = vadd.f32 %v788, %v1059
          %v1061 = vpop.f32.mrf.mxu0
          %v1062 = vadd.f32 %v788, %v1061
          %1063 = vmatmul.bf16.gmra.mxu0 %v750
          %v1064 = vpop.f32.mrf.mxu0
          %v1065 = vadd.f32 %v788, %v1064
          %v1066 = vpop.f32.mrf.mxu0
          %v1067 = vadd.f32 %v788, %v1066
          %1068 = vdwg.mxu0
          %1069 = vst [vmem:[#allocation3] sm:$0xff] %v963
          %1070 = vst [vmem:[#allocation3 + $0x8] sm:$0xff] %v992
          %1071 = vst [vmem:[#allocation3 + $0x10] sm:$0xff] %v1021
          %1072 = vst [vmem:[#allocation3 + $0x18] sm:$0xff] %v1050
          %1073 = vst [vmem:[#allocation3 + $0x20] sm:$0xff] %v965
          %1074 = vst [vmem:[#allocation3 + $0x28] sm:$0xff] %v994
          %1075 = vst [vmem:[#allocation3 + $0x30] sm:$0xff] %v1023
          %1076 = vst [vmem:[#allocation3 + $0x38] sm:$0xff] %v1052
          %1077 = vst [vmem:[#allocation3 + $0x40] sm:$0xff] %v968
          %1078 = vst [vmem:[#allocation3 + $0x48] sm:$0xff] %v997
          %1079 = vst [vmem:[#allocation3 + $0x50] sm:$0xff] %v1026
          %1080 = vst [vmem:[#allocation3 + $0x58] sm:$0xff] %v1055
          %1081 = vst [vmem:[#allocation3 + $0x60] sm:$0xff] %v970
          %1082 = vst [vmem:[#allocation3 + $0x68] sm:$0xff] %v999
          %1083 = vst [vmem:[#allocation3 + $0x70] sm:$0xff] %v1028
          %1084 = vst [vmem:[#allocation3 + $0x78] sm:$0xff] %v1057
          %1085 = vst [vmem:[#allocation3 + $0x80] sm:$0xff] %v973
          %1086 = vst [vmem:[#allocation3 + $0x88] sm:$0xff] %v1002
          %1087 = vst [vmem:[#allocation3 + $0x90] sm:$0xff] %v1031
          %1088 = vst [vmem:[#allocation3 + $0x98] sm:$0xff] %v1060
          %1089 = vst [vmem:[#allocation3 + $0xa0] sm:$0xff] %v975
          %1090 = vst [vmem:[#allocation3 + $0xa8] sm:$0xff] %v1004
          %1091 = vst [vmem:[#allocation3 + $0xb0] sm:$0xff] %v1033
          %1092 = vst [vmem:[#allocation3 + $0xb8] sm:$0xff] %v1062
          %1093 = vst [vmem:[#allocation3 + $0xc0] sm:$0xff] %v978
          %1094 = vst [vmem:[#allocation3 + $0xc8] sm:$0xff] %v1007
          %1095 = vst [vmem:[#allocation3 + $0xd0] sm:$0xff] %v1036
          %1096 = vst [vmem:[#allocation3 + $0xd8] sm:$0xff] %v1065
          %1097 = vst [vmem:[#allocation3 + $0xe0] sm:$0xff] %v980
          %1098 = vst [vmem:[#allocation3 + $0xe8] sm:$0xff] %v1009
          %1099 = vst [vmem:[#allocation3 + $0xf0] sm:$0xff] %v1038
          %1100 = vst [vmem:[#allocation3 + $0xf8] sm:$0xff] %v1067
        $region72: #{fused_forward.1} parent=43 // pred_fallthru
          _
        %v1101 = vld [vmem:[#allocation3] sm:$0xff]
        %v1102 = vld [vmem:[#allocation3 + $0x8] sm:$0xff]
        %v1103 = vld [vmem:[#allocation3 + $0x10] sm:$0xff]
        %v1104 = vld [vmem:[#allocation3 + $0x18] sm:$0xff]
        %v1105 = vld [vmem:[%s313] sm:$0xff]
        %v1106 = vld [vmem:[%s313 + $0x8] sm:$0xff]
        %v1107 = vld [vmem:[%s313 + $0x10] sm:$0xff]
        %v1108 = vld [vmem:[%s313 + $0x18] sm:$0xff]
        %v1109 = vld [vmem:[%s313 + $0x20] sm:$0xff]
        %v1110 = vld [vmem:[%s313 + $0x28] sm:$0xff]
        %v1111 = vld [vmem:[%s313 + $0x30] sm:$0xff]
        %v1112 = vld [vmem:[%s313 + $0x38] sm:$0xff]
        %v1113 = vld [vmem:[%s313 + $0x40] sm:$0xff]
        %v1114 = vld [vmem:[%s313 + $0x48] sm:$0xff]
        %v1115 = vld [vmem:[%s313 + $0x50] sm:$0xff]
        %v1116 = vld [vmem:[%s313 + $0x58] sm:$0xff]
        %v1117 = vld [vmem:[%s313 + $0x60] sm:$0xff]
        %v1118 = vld [vmem:[%s313 + $0x68] sm:$0xff]
        %v1119 = vld [vmem:[%s313 + $0x70] sm:$0xff]
        %v1120 = vld [vmem:[%s313 + $0x78] sm:$0xff]
        %v1121 = vld [vmem:[%s313 + $0x80] sm:$0xff]
        %v1122 = vld [vmem:[%s313 + $0x88] sm:$0xff]
        %v1123 = vld [vmem:[%s313 + $0x90] sm:$0xff]
        %v1124 = vld [vmem:[%s313 + $0x98] sm:$0xff]
        %v1125 = vld [vmem:[%s313 + $0xa0] sm:$0xff]
        %v1126 = vld [vmem:[%s313 + $0xa8] sm:$0xff]
        %v1127 = vld [vmem:[%s313 + $0xb0] sm:$0xff]
        %v1128 = vld [vmem:[%s313 + $0xb8] sm:$0xff]
        %v1129 = vld [vmem:[%s313 + $0xc0] sm:$0xff]
        %v1130 = vld [vmem:[%s313 + $0xc8] sm:$0xff]
        %v1131 = vld [vmem:[%s313 + $0xd0] sm:$0xff]
        %v1132 = vld [vmem:[%s313 + $0xd8] sm:$0xff]
        %v1133 = vld [vmem:[%s313 + $0xe0] sm:$0xff]
        %v1134 = vld [vmem:[%s313 + $0xe8] sm:$0xff]
        %v1135 = vld [vmem:[%s313 + $0xf0] sm:$0xff]
        %v1136 = vld [vmem:[%s313 + $0xf8] sm:$0xff]
        %v1169 = vunpack.c.l.b16 %v1105
        %v1170 = vunpack.c.h.b16 %v1105
        %v1171 = vunpack.c.l.b16 %v1106
        %v1172 = vunpack.c.h.b16 %v1106
        %v1173 = vunpack.c.l.b16 %v1107
        %v1174 = vunpack.c.h.b16 %v1107
        %v1175 = vunpack.c.l.b16 %v1108
        %v1176 = vunpack.c.h.b16 %v1108
        %v1177 = vunpack.c.l.b16 %v1109
        %v1178 = vunpack.c.h.b16 %v1109
        %v1179 = vunpack.c.l.b16 %v1110
        %v1180 = vunpack.c.h.b16 %v1110
        %v1181 = vunpack.c.l.b16 %v1111
        %v1182 = vunpack.c.h.b16 %v1111
        %v1183 = vunpack.c.l.b16 %v1112
        %v1184 = vunpack.c.h.b16 %v1112
        %v1185 = vunpack.c.l.b16 %v1113
        %v1186 = vunpack.c.h.b16 %v1113
        %v1187 = vunpack.c.l.b16 %v1114
        %v1188 = vunpack.c.h.b16 %v1114
        %v1189 = vunpack.c.l.b16 %v1115
        %v1190 = vunpack.c.h.b16 %v1115
        %v1191 = vunpack.c.l.b16 %v1116
        %v1192 = vunpack.c.h.b16 %v1116
        %v1193 = vunpack.c.l.b16 %v1117
        %v1194 = vunpack.c.h.b16 %v1117
        %v1195 = vunpack.c.l.b16 %v1118
        %v1196 = vunpack.c.h.b16 %v1118
        %v1197 = vunpack.c.l.b16 %v1119
        %v1198 = vunpack.c.h.b16 %v1119
        %v1199 = vunpack.c.l.b16 %v1120
        %v1200 = vunpack.c.h.b16 %v1120
        %v1201 = vunpack.c.l.b16 %v1121
        %v1202 = vunpack.c.h.b16 %v1121
        %v1203 = vunpack.c.l.b16 %v1122
        %v1204 = vunpack.c.h.b16 %v1122
        %v1205 = vunpack.c.l.b16 %v1123
        %v1206 = vunpack.c.h.b16 %v1123
        %v1207 = vunpack.c.l.b16 %v1124
        %v1208 = vunpack.c.h.b16 %v1124
        %v1209 = vunpack.c.l.b16 %v1125
        %v1210 = vunpack.c.h.b16 %v1125
        %v1211 = vunpack.c.l.b16 %v1126
        %v1212 = vunpack.c.h.b16 %v1126
        %v1213 = vunpack.c.l.b16 %v1127
        %v1214 = vunpack.c.h.b16 %v1127
        %v1215 = vunpack.c.l.b16 %v1128
        %v1216 = vunpack.c.h.b16 %v1128
        %v1217 = vunpack.c.l.b16 %v1129
        %v1218 = vunpack.c.h.b16 %v1129
        %v1219 = vunpack.c.l.b16 %v1130
        %v1220 = vunpack.c.h.b16 %v1130
        %v1221 = vunpack.c.l.b16 %v1131
        %v1222 = vunpack.c.h.b16 %v1131
        %v1223 = vunpack.c.l.b16 %v1132
        %v1224 = vunpack.c.h.b16 %v1132
        %v1225 = vunpack.c.l.b16 %v1133
        %v1226 = vunpack.c.h.b16 %v1133
        %v1227 = vunpack.c.l.b16 %v1134
        %v1228 = vunpack.c.h.b16 %v1134
        %v1229 = vunpack.c.l.b16 %v1135
        %v1230 = vunpack.c.h.b16 %v1135
        %v1231 = vunpack.c.l.b16 %v1136
        %v1232 = vunpack.c.h.b16 %v1136
        %v1233 = vpack.c.b16 %v1173, %v1169
        %v1234 = vpack.c.b16 %v1174, %v1170
        %v1235 = vpack.c.b16 %v1175, %v1171
        %v1236 = vpack.c.b16 %v1176, %v1172
        %v1237 = vpack.c.b16 %v1181, %v1177
        %v1238 = vpack.c.b16 %v1182, %v1178
        %v1239 = vpack.c.b16 %v1183, %v1179
        %v1240 = vpack.c.b16 %v1184, %v1180
        %v1241 = vpack.c.b16 %v1189, %v1185
        %v1242 = vpack.c.b16 %v1190, %v1186
        %v1243 = vpack.c.b16 %v1191, %v1187
        %v1244 = vpack.c.b16 %v1192, %v1188
        %v1245 = vpack.c.b16 %v1197, %v1193
        %v1246 = vpack.c.b16 %v1198, %v1194
        %v1247 = vpack.c.b16 %v1199, %v1195
        %v1248 = vpack.c.b16 %v1200, %v1196
        %v1249 = vpack.c.b16 %v1205, %v1201
        %v1250 = vpack.c.b16 %v1206, %v1202
        %v1251 = vpack.c.b16 %v1207, %v1203
        %v1252 = vpack.c.b16 %v1208, %v1204
        %v1253 = vpack.c.b16 %v1213, %v1209
        %v1254 = vpack.c.b16 %v1214, %v1210
        %v1255 = vpack.c.b16 %v1215, %v1211
        %v1256 = vpack.c.b16 %v1216, %v1212
        %v1257 = vpack.c.b16 %v1221, %v1217
        %v1258 = vpack.c.b16 %v1222, %v1218
        %v1259 = vpack.c.b16 %v1223, %v1219
        %v1260 = vpack.c.b16 %v1224, %v1220
        %v1261 = vpack.c.b16 %v1229, %v1225
        %v1262 = vpack.c.b16 %v1230, %v1226
        %v1263 = vpack.c.b16 %v1231, %v1227
        %v1264 = vpack.c.b16 %v1232, %v1228
        %1297 = vmatpush.bf16.msra.mxu0 %v1261
        %1298 = vmatpush.bf16.msra.mxu0 %v1257
        %1299 = vmatpush.bf16.msra.mxu0 %v1253
        %1300 = vmatpush.bf16.msra.mxu0 %v1249
        %1301 = vmatpush.bf16.msra.mxu0 %v1245
        %1302 = vmatpush.bf16.msra.mxu0 %v1241
        %1303 = vmatpush.bf16.msra.mxu0 %v1237
        %1304 = vmatpush.bf16.msra.mxu0 %v1233
        %1305 = vmatmul.bf16.gmra.mxu0 0
        %v1306 = vpop.f32.mrf.mxu0
        %v1307 = vadd.f32 0.0, %v1306
        %v1308 = vpop.f32.mrf.mxu0
        %1309 = vdwg.mxu0
        %1310 = vmatpush.bf16.msra.mxu0 %v1262
        %1311 = vmatpush.bf16.msra.mxu0 %v1258
        %1312 = vmatpush.bf16.msra.mxu0 %v1254
        %1313 = vmatpush.bf16.msra.mxu0 %v1250
        %1314 = vmatpush.bf16.msra.mxu0 %v1246
        %1315 = vmatpush.bf16.msra.mxu0 %v1242
        %1316 = vmatpush.bf16.msra.mxu0 %v1238
        %1317 = vmatpush.bf16.msra.mxu0 %v1234
        %1318 = vmatmul.bf16.gmra.mxu0 0
        %v1319 = vpop.f32.mrf.mxu0
        %v1320 = vadd.f32 0.0, %v1319
        %v1321 = vpop.f32.mrf.mxu0
        %1322 = vdwg.mxu0
        %1323 = vmatpush.bf16.msra.mxu0 %v1263
        %1324 = vmatpush.bf16.msra.mxu0 %v1259
        %1325 = vmatpush.bf16.msra.mxu0 %v1255
        %1326 = vmatpush.bf16.msra.mxu0 %v1251
        %1327 = vmatpush.bf16.msra.mxu0 %v1247
        %1328 = vmatpush.bf16.msra.mxu0 %v1243
        %1329 = vmatpush.bf16.msra.mxu0 %v1239
        %1330 = vmatpush.bf16.msra.mxu0 %v1235
        %1331 = vmatmul.bf16.gmra.mxu0 0
        %v1332 = vpop.f32.mrf.mxu0
        %v1333 = vadd.f32 0.0, %v1332
        %v1334 = vpop.f32.mrf.mxu0
        %1335 = vdwg.mxu0
        %1336 = vmatpush.bf16.msra.mxu0 %v1264
        %1337 = vmatpush.bf16.msra.mxu0 %v1260
        %1338 = vmatpush.bf16.msra.mxu0 %v1256
        %1339 = vmatpush.bf16.msra.mxu0 %v1252
        %1340 = vmatpush.bf16.msra.mxu0 %v1248
        %1341 = vmatpush.bf16.msra.mxu0 %v1244
        %1342 = vmatpush.bf16.msra.mxu0 %v1240
        %1343 = vmatpush.bf16.msra.mxu0 %v1236
        %1344 = vmatmul.bf16.gmra.mxu0 0
        %v1345 = vpop.f32.mrf.mxu0
        %v1346 = vadd.f32 0.0, %v1345
        %v1347 = vpop.f32.mrf.mxu0
        %1348 = vdwg.mxu0
        %v1349 = vadd.f32 %v1101, %v1307
        %v1350 = vadd.f32 %v1102, %v1320
        %v1351 = vadd.f32 %v1103, %v1333
        %v1352 = vadd.f32 %v1104, %v1346
        %v1353 = vxor.u32 %v1349, 2147483648
        %v1354 = vxor.u32 %v1350, 2147483648
        %v1355 = vxor.u32 %v1351, 2147483648
        %v1356 = vmul.f32 %v1353, 1.442695
        %v1357 = vpow.pop %v1356
        %v1358 = vmul.f32 %v1354, 1.442695
        %v1359 = vpow.pop %v1358
        %v1360 = vmul.f32 %v1355, 1.442695
        %v1361 = vpow.pop %v1360
        %v1362 = vadd.f32 %v1357, 1.0
        %v1363 = vadd.f32 %v1359, 1.0
        %v1364 = vadd.f32 %v1361, 1.0
        %v1365 = vrcp.pop %v1362
        %v1366 = vmul.f32 %v1362, %v1365
        %v1367 = vsub.f32 1.0, %v1366
        %v1368 = vmul.f32 %v1365, %v1367
        %v1369 = vadd.f32 %v1365, %v1368
        %vm1370 = vweird.f32 %v1362
        %vm1371 = vweird.f32 %v1365
        %vm1372 = vmor %vm1370, %vm1371
        %v1373 = vsel %vm1372, %v1365, %v1369
        %v1374 = vand.u32 2147483647, %v1362
        %vm1375 = vcmp.eq.f32.partialorder %v1374, 8.507059e+37
        %v1376 = vand.u32 %v1362, 2147483648
        %v1377 = vor.u32 1.1754944e-38, %v1376
        %v1378 = vsel %vm1375, %v1377, %v1373
        %v1379 = vmul.f32 1.0, %v1378
        %v1380 = vrcp.pop %v1363
        %v1381 = vmul.f32 %v1363, %v1380
        %v1382 = vsub.f32 1.0, %v1381
        %v1383 = vmul.f32 %v1380, %v1382
        %v1384 = vadd.f32 %v1380, %v1383
        %vm1385 = vweird.f32 %v1363
        %vm1386 = vweird.f32 %v1380
        %vm1387 = vmor %vm1385, %vm1386
        %v1388 = vsel %vm1387, %v1380, %v1384
        %v1389 = vand.u32 2147483647, %v1363
        %vm1390 = vcmp.eq.f32.partialorder %v1389, 8.507059e+37
        %v1391 = vand.u32 %v1363, 2147483648
        %v1392 = vor.u32 1.1754944e-38, %v1391
        %v1393 = vsel %vm1390, %v1392, %v1388
        %v1394 = vmul.f32 1.0, %v1393
        %v1395 = vrcp.pop %v1364
        %v1396 = vmul.f32 %v1364, %v1395
        %v1397 = vsub.f32 1.0, %v1396
        %v1398 = vmul.f32 %v1395, %v1397
        %v1399 = vadd.f32 %v1395, %v1398
        %vm1400 = vweird.f32 %v1364
        %vm1401 = vweird.f32 %v1395
        %vm1402 = vmor %vm1400, %vm1401
        %v1403 = vsel %vm1402, %v1395, %v1399
        %v1404 = vand.u32 2147483647, %v1364
        %vm1405 = vcmp.eq.f32.partialorder %v1404, 8.507059e+37
        %v1406 = vand.u32 %v1364, 2147483648
        %v1407 = vor.u32 1.1754944e-38, %v1406
        %v1408 = vsel %vm1405, %v1407, %v1403
        %v1409 = vmul.f32 1.0, %v1408
        %v1410 = vtanh.pop %v1352
        %v1411 = vmul.f32 %v1394, 0.0
        %v1412 = vmul.f32 %v1379, %v1410
        %v1413 = vadd.f32 %v1411, %v1412
        %v1414 = vtanh.pop %v1413
        %v1415 = vmul.f32 %v1409, %v1414
        %1416 = vst [vmem:[#allocation2] sm:$0xff] %v1415
        %v1417 = vld [vmem:[#allocation3 + $0x20] sm:$0xff]
        %v1418 = vld [vmem:[#allocation3 + $0x28] sm:$0xff]
        %v1419 = vld [vmem:[#allocation3 + $0x30] sm:$0xff]
        %v1420 = vld [vmem:[#allocation3 + $0x38] sm:$0xff]
        %v1421 = vpack.c.bf16 %v1415, %v1415
        %v1422 = vld [vmem:[%s313] sm:$0xff]
        %v1423 = vld [vmem:[%s313 + $0x8] sm:$0xff]
        %v1424 = vld [vmem:[%s313 + $0x10] sm:$0xff]
        %v1425 = vld [vmem:[%s313 + $0x18] sm:$0xff]
        %v1426 = vld [vmem:[%s313 + $0x20] sm:$0xff]
        %v1427 = vld [vmem:[%s313 + $0x28] sm:$0xff]
        %v1428 = vld [vmem:[%s313 + $0x30] sm:$0xff]
        %v1429 = vld [vmem:[%s313 + $0x38] sm:$0xff]
        %v1430 = vld [vmem:[%s313 + $0x40] sm:$0xff]
        %v1431 = vld [vmem:[%s313 + $0x48] sm:$0xff]
        %v1432 = vld [vmem:[%s313 + $0x50] sm:$0xff]
        %v1433 = vld [vmem:[%s313 + $0x58] sm:$0xff]
        %v1434 = vld [vmem:[%s313 + $0x60] sm:$0xff]
        %v1435 = vld [vmem:[%s313 + $0x68] sm:$0xff]
        %v1436 = vld [vmem:[%s313 + $0x70] sm:$0xff]
        %v1437 = vld [vmem:[%s313 + $0x78] sm:$0xff]
        %v1438 = vld [vmem:[%s313 + $0x80] sm:$0xff]
        %v1439 = vld [vmem:[%s313 + $0x88] sm:$0xff]
        %v1440 = vld [vmem:[%s313 + $0x90] sm:$0xff]
        %v1441 = vld [vmem:[%s313 + $0x98] sm:$0xff]
        %v1442 = vld [vmem:[%s313 + $0xa0] sm:$0xff]
        %v1443 = vld [vmem:[%s313 + $0xa8] sm:$0xff]
        %v1444 = vld [vmem:[%s313 + $0xb0] sm:$0xff]
        %v1445 = vld [vmem:[%s313 + $0xb8] sm:$0xff]
        %v1446 = vld [vmem:[%s313 + $0xc0] sm:$0xff]
        %v1447 = vld [vmem:[%s313 + $0xc8] sm:$0xff]
        %v1448 = vld [vmem:[%s313 + $0xd0] sm:$0xff]
        %v1449 = vld [vmem:[%s313 + $0xd8] sm:$0xff]
        %v1450 = vld [vmem:[%s313 + $0xe0] sm:$0xff]
        %v1451 = vld [vmem:[%s313 + $0xe8] sm:$0xff]
        %v1452 = vld [vmem:[%s313 + $0xf0] sm:$0xff]
        %v1453 = vld [vmem:[%s313 + $0xf8] sm:$0xff]
        %v1486 = vunpack.c.l.b16 %v1422
        %v1487 = vunpack.c.h.b16 %v1422
        %v1488 = vunpack.c.l.b16 %v1423
        %v1489 = vunpack.c.h.b16 %v1423
        %v1490 = vunpack.c.l.b16 %v1424
        %v1491 = vunpack.c.h.b16 %v1424
        %v1492 = vunpack.c.l.b16 %v1425
        %v1493 = vunpack.c.h.b16 %v1425
        %v1494 = vunpack.c.l.b16 %v1426
        %v1495 = vunpack.c.h.b16 %v1426
        %v1496 = vunpack.c.l.b16 %v1427
        %v1497 = vunpack.c.h.b16 %v1427
        %v1498 = vunpack.c.l.b16 %v1428
        %v1499 = vunpack.c.h.b16 %v1428
        %v1500 = vunpack.c.l.b16 %v1429
        %v1501 = vunpack.c.h.b16 %v1429
        %v1502 = vunpack.c.l.b16 %v1430
        %v1503 = vunpack.c.h.b16 %v1430
        %v1504 = vunpack.c.l.b16 %v1431
        %v1505 = vunpack.c.h.b16 %v1431
        %v1506 = vunpack.c.l.b16 %v1432
        %v1507 = vunpack.c.h.b16 %v1432
        %v1508 = vunpack.c.l.b16 %v1433
        %v1509 = vunpack.c.h.b16 %v1433
        %v1510 = vunpack.c.l.b16 %v1434
        %v1511 = vunpack.c.h.b16 %v1434
        %v1512 = vunpack.c.l.b16 %v1435
        %v1513 = vunpack.c.h.b16 %v1435
        %v1514 = vunpack.c.l.b16 %v1436
        %v1515 = vunpack.c.h.b16 %v1436
        %v1516 = vunpack.c.l.b16 %v1437
        %v1517 = vunpack.c.h.b16 %v1437
        %v1518 = vunpack.c.l.b16 %v1438
        %v1519 = vunpack.c.h.b16 %v1438
        %v1520 = vunpack.c.l.b16 %v1439
        %v1521 = vunpack.c.h.b16 %v1439
        %v1522 = vunpack.c.l.b16 %v1440
        %v1523 = vunpack.c.h.b16 %v1440
        %v1524 = vunpack.c.l.b16 %v1441
        %v1525 = vunpack.c.h.b16 %v1441
        %v1526 = vunpack.c.l.b16 %v1442
        %v1527 = vunpack.c.h.b16 %v1442
        %v1528 = vunpack.c.l.b16 %v1443
        %v1529 = vunpack.c.h.b16 %v1443
        %v1530 = vunpack.c.l.b16 %v1444
        %v1531 = vunpack.c.h.b16 %v1444
        %v1532 = vunpack.c.l.b16 %v1445
        %v1533 = vunpack.c.h.b16 %v1445
        %v1534 = vunpack.c.l.b16 %v1446
        %v1535 = vunpack.c.h.b16 %v1446
        %v1536 = vunpack.c.l.b16 %v1447
        %v1537 = vunpack.c.h.b16 %v1447
        %v1538 = vunpack.c.l.b16 %v1448
        %v1539 = vunpack.c.h.b16 %v1448
        %v1540 = vunpack.c.l.b16 %v1449
        %v1541 = vunpack.c.h.b16 %v1449
        %v1542 = vunpack.c.l.b16 %v1450
        %v1543 = vunpack.c.h.b16 %v1450
        %v1544 = vunpack.c.l.b16 %v1451
        %v1545 = vunpack.c.h.b16 %v1451
        %v1546 = vunpack.c.l.b16 %v1452
        %v1547 = vunpack.c.h.b16 %v1452
        %v1548 = vunpack.c.l.b16 %v1453
        %v1549 = vunpack.c.h.b16 %v1453
        %v1550 = vpack.c.b16 %v1490, %v1486
        %v1551 = vpack.c.b16 %v1491, %v1487
        %v1552 = vpack.c.b16 %v1492, %v1488
        %v1553 = vpack.c.b16 %v1493, %v1489
        %v1554 = vpack.c.b16 %v1498, %v1494
        %v1555 = vpack.c.b16 %v1499, %v1495
        %v1556 = vpack.c.b16 %v1500, %v1496
        %v1557 = vpack.c.b16 %v1501, %v1497
        %v1558 = vpack.c.b16 %v1506, %v1502
        %v1559 = vpack.c.b16 %v1507, %v1503
        %v1560 = vpack.c.b16 %v1508, %v1504
        %v1561 = vpack.c.b16 %v1509, %v1505
        %v1562 = vpack.c.b16 %v1514, %v1510
        %v1563 = vpack.c.b16 %v1515, %v1511
        %v1564 = vpack.c.b16 %v1516, %v1512
        %v1565 = vpack.c.b16 %v1517, %v1513
        %v1566 = vpack.c.b16 %v1522, %v1518
        %v1567 = vpack.c.b16 %v1523, %v1519
        %v1568 = vpack.c.b16 %v1524, %v1520
        %v1569 = vpack.c.b16 %v1525, %v1521
        %v1570 = vpack.c.b16 %v1530, %v1526
        %v1571 = vpack.c.b16 %v1531, %v1527
        %v1572 = vpack.c.b16 %v1532, %v1528
        %v1573 = vpack.c.b16 %v1533, %v1529
        %v1574 = vpack.c.b16 %v1538, %v1534
        %v1575 = vpack.c.b16 %v1539, %v1535
        %v1576 = vpack.c.b16 %v1540, %v1536
        %v1577 = vpack.c.b16 %v1541, %v1537
        %v1578 = vpack.c.b16 %v1546, %v1542
        %v1579 = vpack.c.b16 %v1547, %v1543
        %v1580 = vpack.c.b16 %v1548, %v1544
        %v1581 = vpack.c.b16 %v1549, %v1545
        %1614 = vmatpush.bf16.msra.mxu0 %v1578
        %1615 = vmatpush.bf16.msra.mxu0 %v1574
        %1616 = vmatpush.bf16.msra.mxu0 %v1570
        %1617 = vmatpush.bf16.msra.mxu0 %v1566
        %1618 = vmatpush.bf16.msra.mxu0 %v1562
        %1619 = vmatpush.bf16.msra.mxu0 %v1558
        %1620 = vmatpush.bf16.msra.mxu0 %v1554
        %1621 = vmatpush.bf16.msra.mxu0 %v1550
        %1622 = vmatmul.bf16.gmra.mxu0 %v1421
        %v1623 = vpop.f32.mrf.mxu0
        %v1624 = vadd.f32 0.0, %v1623
        %v1625 = vpop.f32.mrf.mxu0
        %1626 = vdwg.mxu0
        %1627 = vmatpush.bf16.msra.mxu0 %v1579
        %1628 = vmatpush.bf16.msra.mxu0 %v1575
        %1629 = vmatpush.bf16.msra.mxu0 %v1571
        %1630 = vmatpush.bf16.msra.mxu0 %v1567
        %1631 = vmatpush.bf16.msra.mxu0 %v1563
        %1632 = vmatpush.bf16.msra.mxu0 %v1559
        %1633 = vmatpush.bf16.msra.mxu0 %v1555
        %1634 = vmatpush.bf16.msra.mxu0 %v1551
        %1635 = vmatmul.bf16.gmra.mxu0 %v1421
        %v1636 = vpop.f32.mrf.mxu0
        %v1637 = vadd.f32 0.0, %v1636
        %v1638 = vpop.f32.mrf.mxu0
        %1639 = vdwg.mxu0
        %1640 = vmatpush.bf16.msra.mxu0 %v1580
        %1641 = vmatpush.bf16.msra.mxu0 %v1576
        %1642 = vmatpush.bf16.msra.mxu0 %v1572
        %1643 = vmatpush.bf16.msra.mxu0 %v1568
        %1644 = vmatpush.bf16.msra.mxu0 %v1564
        %1645 = vmatpush.bf16.msra.mxu0 %v1560
        %1646 = vmatpush.bf16.msra.mxu0 %v1556
        %1647 = vmatpush.bf16.msra.mxu0 %v1552
        %1648 = vmatmul.bf16.gmra.mxu0 %v1421
        %v1649 = vpop.f32.mrf.mxu0
        %v1650 = vadd.f32 0.0, %v1649
        %v1651 = vpop.f32.mrf.mxu0
        %1652 = vdwg.mxu0
        %1653 = vmatpush.bf16.msra.mxu0 %v1581
        %1654 = vmatpush.bf16.msra.mxu0 %v1577
        %1655 = vmatpush.bf16.msra.mxu0 %v1573
        %1656 = vmatpush.bf16.msra.mxu0 %v1569
        %1657 = vmatpush.bf16.msra.mxu0 %v1565
        %1658 = vmatpush.bf16.msra.mxu0 %v1561
        %1659 = vmatpush.bf16.msra.mxu0 %v1557
        %1660 = vmatpush.bf16.msra.mxu0 %v1553
        %1661 = vmatmul.bf16.gmra.mxu0 %v1421
        %v1662 = vpop.f32.mrf.mxu0
        %v1663 = vadd.f32 0.0, %v1662
        %v1664 = vpop.f32.mrf.mxu0
        %1665 = vdwg.mxu0
        %v1666 = vadd.f32 %v1417, %v1624
        %v1667 = vadd.f32 %v1418, %v1637
        %v1668 = vadd.f32 %v1419, %v1650
        %v1669 = vadd.f32 %v1420, %v1663
        %v1670 = vxor.u32 %v1666, 2147483648
        %v1671 = vxor.u32 %v1667, 2147483648
        %v1672 = vxor.u32 %v1668, 2147483648
        %v1673 = vmul.f32 %v1670, 1.442695
        %v1674 = vpow.pop %v1673
        %v1675 = vmul.f32 %v1671, 1.442695
        %v1676 = vpow.pop %v1675
        %v1677 = vmul.f32 %v1672, 1.442695
        %v1678 = vpow.pop %v1677
        %v1679 = vadd.f32 %v1674, 1.0
        %v1680 = vadd.f32 %v1676, 1.0
        %v1681 = vadd.f32 %v1678, 1.0
        %v1682 = vrcp.pop %v1679
        %v1683 = vmul.f32 %v1679, %v1682
        %v1684 = vsub.f32 1.0, %v1683
        %v1685 = vmul.f32 %v1682, %v1684
        %v1686 = vadd.f32 %v1682, %v1685
        %vm1687 = vweird.f32 %v1679
        %vm1688 = vweird.f32 %v1682
        %vm1689 = vmor %vm1687, %vm1688
        %v1690 = vsel %vm1689, %v1682, %v1686
        %v1691 = vand.u32 2147483647, %v1679
        %vm1692 = vcmp.eq.f32.partialorder %v1691, 8.507059e+37
        %v1693 = vand.u32 %v1679, 2147483648
        %v1694 = vor.u32 1.1754944e-38, %v1693
        %v1695 = vsel %vm1692, %v1694, %v1690
        %v1696 = vmul.f32 1.0, %v1695
        %v1697 = vrcp.pop %v1680
        %v1698 = vmul.f32 %v1680, %v1697
        %v1699 = vsub.f32 1.0, %v1698
        %v1700 = vmul.f32 %v1697, %v1699
        %v1701 = vadd.f32 %v1697, %v1700
        %vm1702 = vweird.f32 %v1680
        %vm1703 = vweird.f32 %v1697
        %vm1704 = vmor %vm1702, %vm1703
        %v1705 = vsel %vm1704, %v1697, %v1701
        %v1706 = vand.u32 2147483647, %v1680
        %vm1707 = vcmp.eq.f32.partialorder %v1706, 8.507059e+37
        %v1708 = vand.u32 %v1680, 2147483648
        %v1709 = vor.u32 1.1754944e-38, %v1708
        %v1710 = vsel %vm1707, %v1709, %v1705
        %v1711 = vmul.f32 1.0, %v1710
        %v1712 = vrcp.pop %v1681
        %v1713 = vmul.f32 %v1681, %v1712
        %v1714 = vsub.f32 1.0, %v1713
        %v1715 = vmul.f32 %v1712, %v1714
        %v1716 = vadd.f32 %v1712, %v1715
        %vm1717 = vweird.f32 %v1681
        %vm1718 = vweird.f32 %v1712
        %vm1719 = vmor %vm1717, %vm1718
        %v1720 = vsel %vm1719, %v1712, %v1716
        %v1721 = vand.u32 2147483647, %v1681
        %vm1722 = vcmp.eq.f32.partialorder %v1721, 8.507059e+37
        %v1723 = vand.u32 %v1681, 2147483648
        %v1724 = vor.u32 1.1754944e-38, %v1723
        %v1725 = vsel %vm1722, %v1724, %v1720
        %v1726 = vmul.f32 1.0, %v1725
        %v1727 = vtanh.pop %v1669
        %v1728 = vmul.f32 %v1711, %v1413
        %v1729 = vmul.f32 %v1696, %v1727
        %v1730 = vadd.f32 %v1728, %v1729
        %v1731 = vtanh.pop %v1730
        %v1732 = vmul.f32 %v1726, %v1731
        %1733 = vst [vmem:[#allocation2 + $0x8] sm:$0xff] %v1732
        %v1734 = vld [vmem:[#allocation3 + $0x40] sm:$0xff]
        %v1735 = vld [vmem:[#allocation3 + $0x48] sm:$0xff]
        %v1736 = vld [vmem:[#allocation3 + $0x50] sm:$0xff]
        %v1737 = vld [vmem:[#allocation3 + $0x58] sm:$0xff]
        %v1738 = vpack.c.bf16 %v1732, %v1732
        %v1739 = vld [vmem:[%s313] sm:$0xff]
        %v1740 = vld [vmem:[%s313 + $0x8] sm:$0xff]
        %v1741 = vld [vmem:[%s313 + $0x10] sm:$0xff]
        %v1742 = vld [vmem:[%s313 + $0x18] sm:$0xff]
        %v1743 = vld [vmem:[%s313 + $0x20] sm:$0xff]
        %v1744 = vld [vmem:[%s313 + $0x28] sm:$0xff]
        %v1745 = vld [vmem:[%s313 + $0x30] sm:$0xff]
        %v1746 = vld [vmem:[%s313 + $0x38] sm:$0xff]
        %v1747 = vld [vmem:[%s313 + $0x40] sm:$0xff]
        %v1748 = vld [vmem:[%s313 + $0x48] sm:$0xff]
        %v1749 = vld [vmem:[%s313 + $0x50] sm:$0xff]
        %v1750 = vld [vmem:[%s313 + $0x58] sm:$0xff]
        %v1751 = vld [vmem:[%s313 + $0x60] sm:$0xff]
        %v1752 = vld [vmem:[%s313 + $0x68] sm:$0xff]
        %v1753 = vld [vmem:[%s313 + $0x70] sm:$0xff]
        %v1754 = vld [vmem:[%s313 + $0x78] sm:$0xff]
        %v1755 = vld [vmem:[%s313 + $0x80] sm:$0xff]
        %v1756 = vld [vmem:[%s313 + $0x88] sm:$0xff]
        %v1757 = vld [vmem:[%s313 + $0x90] sm:$0xff]
        %v1758 = vld [vmem:[%s313 + $0x98] sm:$0xff]
        %v1759 = vld [vmem:[%s313 + $0xa0] sm:$0xff]
        %v1760 = vld [vmem:[%s313 + $0xa8] sm:$0xff]
        %v1761 = vld [vmem:[%s313 + $0xb0] sm:$0xff]
        %v1762 = vld [vmem:[%s313 + $0xb8] sm:$0xff]
        %v1763 = vld [vmem:[%s313 + $0xc0] sm:$0xff]
        %v1764 = vld [vmem:[%s313 + $0xc8] sm:$0xff]
        %v1765 = vld [vmem:[%s313 + $0xd0] sm:$0xff]
        %v1766 = vld [vmem:[%s313 + $0xd8] sm:$0xff]
        %v1767 = vld [vmem:[%s313 + $0xe0] sm:$0xff]
        %v1768 = vld [vmem:[%s313 + $0xe8] sm:$0xff]
        %v1769 = vld [vmem:[%s313 + $0xf0] sm:$0xff]
        %v1770 = vld [vmem:[%s313 + $0xf8] sm:$0xff]
        %v1803 = vunpack.c.l.b16 %v1739
        %v1804 = vunpack.c.h.b16 %v1739
        %v1805 = vunpack.c.l.b16 %v1740
        %v1806 = vunpack.c.h.b16 %v1740
        %v1807 = vunpack.c.l.b16 %v1741
        %v1808 = vunpack.c.h.b16 %v1741
        %v1809 = vunpack.c.l.b16 %v1742
        %v1810 = vunpack.c.h.b16 %v1742
        %v1811 = vunpack.c.l.b16 %v1743
        %v1812 = vunpack.c.h.b16 %v1743
        %v1813 = vunpack.c.l.b16 %v1744
        %v1814 = vunpack.c.h.b16 %v1744
        %v1815 = vunpack.c.l.b16 %v1745
        %v1816 = vunpack.c.h.b16 %v1745
        %v1817 = vunpack.c.l.b16 %v1746
        %v1818 = vunpack.c.h.b16 %v1746
        %v1819 = vunpack.c.l.b16 %v1747
        %v1820 = vunpack.c.h.b16 %v1747
        %v1821 = vunpack.c.l.b16 %v1748
        %v1822 = vunpack.c.h.b16 %v1748
        %v1823 = vunpack.c.l.b16 %v1749
        %v1824 = vunpack.c.h.b16 %v1749
        %v1825 = vunpack.c.l.b16 %v1750
        %v1826 = vunpack.c.h.b16 %v1750
        %v1827 = vunpack.c.l.b16 %v1751
        %v1828 = vunpack.c.h.b16 %v1751
        %v1829 = vunpack.c.l.b16 %v1752
        %v1830 = vunpack.c.h.b16 %v1752
        %v1831 = vunpack.c.l.b16 %v1753
        %v1832 = vunpack.c.h.b16 %v1753
        %v1833 = vunpack.c.l.b16 %v1754
        %v1834 = vunpack.c.h.b16 %v1754
        %v1835 = vunpack.c.l.b16 %v1755
        %v1836 = vunpack.c.h.b16 %v1755
        %v1837 = vunpack.c.l.b16 %v1756
        %v1838 = vunpack.c.h.b16 %v1756
        %v1839 = vunpack.c.l.b16 %v1757
        %v1840 = vunpack.c.h.b16 %v1757
        %v1841 = vunpack.c.l.b16 %v1758
        %v1842 = vunpack.c.h.b16 %v1758
        %v1843 = vunpack.c.l.b16 %v1759
        %v1844 = vunpack.c.h.b16 %v1759
        %v1845 = vunpack.c.l.b16 %v1760
        %v1846 = vunpack.c.h.b16 %v1760
        %v1847 = vunpack.c.l.b16 %v1761
        %v1848 = vunpack.c.h.b16 %v1761
        %v1849 = vunpack.c.l.b16 %v1762
        %v1850 = vunpack.c.h.b16 %v1762
        %v1851 = vunpack.c.l.b16 %v1763
        %v1852 = vunpack.c.h.b16 %v1763
        %v1853 = vunpack.c.l.b16 %v1764
        %v1854 = vunpack.c.h.b16 %v1764
        %v1855 = vunpack.c.l.b16 %v1765
        %v1856 = vunpack.c.h.b16 %v1765
        %v1857 = vunpack.c.l.b16 %v1766
        %v1858 = vunpack.c.h.b16 %v1766
        %v1859 = vunpack.c.l.b16 %v1767
        %v1860 = vunpack.c.h.b16 %v1767
        %v1861 = vunpack.c.l.b16 %v1768
        %v1862 = vunpack.c.h.b16 %v1768
        %v1863 = vunpack.c.l.b16 %v1769
        %v1864 = vunpack.c.h.b16 %v1769
        %v1865 = vunpack.c.l.b16 %v1770
        %v1866 = vunpack.c.h.b16 %v1770
        %v1867 = vpack.c.b16 %v1807, %v1803
        %v1868 = vpack.c.b16 %v1808, %v1804
        %v1869 = vpack.c.b16 %v1809, %v1805
        %v1870 = vpack.c.b16 %v1810, %v1806
        %v1871 = vpack.c.b16 %v1815, %v1811
        %v1872 = vpack.c.b16 %v1816, %v1812
        %v1873 = vpack.c.b16 %v1817, %v1813
        %v1874 = vpack.c.b16 %v1818, %v1814
        %v1875 = vpack.c.b16 %v1823, %v1819
        %v1876 = vpack.c.b16 %v1824, %v1820
        %v1877 = vpack.c.b16 %v1825, %v1821
        %v1878 = vpack.c.b16 %v1826, %v1822
        %v1879 = vpack.c.b16 %v1831, %v1827
        %v1880 = vpack.c.b16 %v1832, %v1828
        %v1881 = vpack.c.b16 %v1833, %v1829
        %v1882 = vpack.c.b16 %v1834, %v1830
        %v1883 = vpack.c.b16 %v1839, %v1835
        %v1884 = vpack.c.b16 %v1840, %v1836
        %v1885 = vpack.c.b16 %v1841, %v1837
        %v1886 = vpack.c.b16 %v1842, %v1838
        %v1887 = vpack.c.b16 %v1847, %v1843
        %v1888 = vpack.c.b16 %v1848, %v1844
        %v1889 = vpack.c.b16 %v1849, %v1845
        %v1890 = vpack.c.b16 %v1850, %v1846
        %v1891 = vpack.c.b16 %v1855, %v1851
        %v1892 = vpack.c.b16 %v1856, %v1852
        %v1893 = vpack.c.b16 %v1857, %v1853
        %v1894 = vpack.c.b16 %v1858, %v1854
        %v1895 = vpack.c.b16 %v1863, %v1859
        %v1896 = vpack.c.b16 %v1864, %v1860
        %v1897 = vpack.c.b16 %v1865, %v1861
        %v1898 = vpack.c.b16 %v1866, %v1862
        %1931 = vmatpush.bf16.msra.mxu0 %v1895
        %1932 = vmatpush.bf16.msra.mxu0 %v1891
        %1933 = vmatpush.bf16.msra.mxu0 %v1887
        %1934 = vmatpush.bf16.msra.mxu0 %v1883
        %1935 = vmatpush.bf16.msra.mxu0 %v1879
        %1936 = vmatpush.bf16.msra.mxu0 %v1875
        %1937 = vmatpush.bf16.msra.mxu0 %v1871
        %1938 = vmatpush.bf16.msra.mxu0 %v1867
        %1939 = vmatmul.bf16.gmra.mxu0 %v1738
        %v1940 = vpop.f32.mrf.mxu0
        %v1941 = vadd.f32 0.0, %v1940
        %v1942 = vpop.f32.mrf.mxu0
        %1943 = vdwg.mxu0
        %1944 = vmatpush.bf16.msra.mxu0 %v1896
        %1945 = vmatpush.bf16.msra.mxu0 %v1892
        %1946 = vmatpush.bf16.msra.mxu0 %v1888
        %1947 = vmatpush.bf16.msra.mxu0 %v1884
        %1948 = vmatpush.bf16.msra.mxu0 %v1880
        %1949 = vmatpush.bf16.msra.mxu0 %v1876
        %1950 = vmatpush.bf16.msra.mxu0 %v1872
        %1951 = vmatpush.bf16.msra.mxu0 %v1868
        %1952 = vmatmul.bf16.gmra.mxu0 %v1738
        %v1953 = vpop.f32.mrf.mxu0
        %v1954 = vadd.f32 0.0, %v1953
        %v1955 = vpop.f32.mrf.mxu0
        %1956 = vdwg.mxu0
        %1957 = vmatpush.bf16.msra.mxu0 %v1897
        %1958 = vmatpush.bf16.msra.mxu0 %v1893
        %1959 = vmatpush.bf16.msra.mxu0 %v1889
        %1960 = vmatpush.bf16.msra.mxu0 %v1885
        %1961 = vmatpush.bf16.msra.mxu0 %v1881
        %1962 = vmatpush.bf16.msra.mxu0 %v1877
        %1963 = vmatpush.bf16.msra.mxu0 %v1873
        %1964 = vmatpush.bf16.msra.mxu0 %v1869
        %1965 = vmatmul.bf16.gmra.mxu0 %v1738
        %v1966 = vpop.f32.mrf.mxu0
        %v1967 = vadd.f32 0.0, %v1966
        %v1968 = vpop.f32.mrf.mxu0
        %1969 = vdwg.mxu0
        %1970 = vmatpush.bf16.msra.mxu0 %v1898
        %1971 = vmatpush.bf16.msra.mxu0 %v1894
        %1972 = vmatpush.bf16.msra.mxu0 %v1890
        %1973 = vmatpush.bf16.msra.mxu0 %v1886
        %1974 = vmatpush.bf16.msra.mxu0 %v1882
        %1975 = vmatpush.bf16.msra.mxu0 %v1878
        %1976 = vmatpush.bf16.msra.mxu0 %v1874
        %1977 = vmatpush.bf16.msra.mxu0 %v1870
        %1978 = vmatmul.bf16.gmra.mxu0 %v1738
        %v1979 = vpop.f32.mrf.mxu0
        %v1980 = vadd.f32 0.0, %v1979
        %v1981 = vpop.f32.mrf.mxu0
        %1982 = vdwg.mxu0
        %v1983 = vadd.f32 %v1734, %v1941
        %v1984 = vadd.f32 %v1735, %v1954
        %v1985 = vadd.f32 %v1736, %v1967
        %v1986 = vadd.f32 %v1737, %v1980
        %v1987 = vxor.u32 %v1983, 2147483648
        %v1988 = vxor.u32 %v1984, 2147483648
        %v1989 = vxor.u32 %v1985, 2147483648
        %v1990 = vmul.f32 %v1987, 1.442695
        %v1991 = vpow.pop %v1990
        %v1992 = vmul.f32 %v1988, 1.442695
        %v1993 = vpow.pop %v1992
        %v1994 = vmul.f32 %v1989, 1.442695
        %v1995 = vpow.pop %v1994
        %v1996 = vadd.f32 %v1991, 1.0
        %v1997 = vadd.f32 %v1993, 1.0
        %v1998 = vadd.f32 %v1995, 1.0
        %v1999 = vrcp.pop %v1996
        %v2000 = vmul.f32 %v1996, %v1999
        %v2001 = vsub.f32 1.0, %v2000
        %v2002 = vmul.f32 %v1999, %v2001
        %v2003 = vadd.f32 %v1999, %v2002
        %vm2004 = vweird.f32 %v1996
        %vm2005 = vweird.f32 %v1999
        %vm2006 = vmor %vm2004, %vm2005
        %v2007 = vsel %vm2006, %v1999, %v2003
        %v2008 = vand.u32 2147483647, %v1996
        %vm2009 = vcmp.eq.f32.partialorder %v2008, 8.507059e+37
        %v2010 = vand.u32 %v1996, 2147483648
        %v2011 = vor.u32 1.1754944e-38, %v2010
        %v2012 = vsel %vm2009, %v2011, %v2007
        %v2013 = vmul.f32 1.0, %v2012
        %v2014 = vrcp.pop %v1997
        %v2015 = vmul.f32 %v1997, %v2014
        %v2016 = vsub.f32 1.0, %v2015
        %v2017 = vmul.f32 %v2014, %v2016
        %v2018 = vadd.f32 %v2014, %v2017
        %vm2019 = vweird.f32 %v1997
        %vm2020 = vweird.f32 %v2014
        %vm2021 = vmor %vm2019, %vm2020
        %v2022 = vsel %vm2021, %v2014, %v2018
        %v2023 = vand.u32 2147483647, %v1997
        %vm2024 = vcmp.eq.f32.partialorder %v2023, 8.507059e+37
        %v2025 = vand.u32 %v1997, 2147483648
        %v2026 = vor.u32 1.1754944e-38, %v2025
        %v2027 = vsel %vm2024, %v2026, %v2022
        %v2028 = vmul.f32 1.0, %v2027
        %v2029 = vrcp.pop %v1998
        %v2030 = vmul.f32 %v1998, %v2029
        %v2031 = vsub.f32 1.0, %v2030
        %v2032 = vmul.f32 %v2029, %v2031
        %v2033 = vadd.f32 %v2029, %v2032
        %vm2034 = vweird.f32 %v1998
        %vm2035 = vweird.f32 %v2029
        %vm2036 = vmor %vm2034, %vm2035
        %v2037 = vsel %vm2036, %v2029, %v2033
        %v2038 = vand.u32 2147483647, %v1998
        %vm2039 = vcmp.eq.f32.partialorder %v2038, 8.507059e+37
        %v2040 = vand.u32 %v1998, 2147483648
        %v2041 = vor.u32 1.1754944e-38, %v2040
        %v2042 = vsel %vm2039, %v2041, %v2037
        %v2043 = vmul.f32 1.0, %v2042
        %v2044 = vtanh.pop %v1986
        %v2045 = vmul.f32 %v2028, %v1730
        %v2046 = vmul.f32 %v2013, %v2044
        %v2047 = vadd.f32 %v2045, %v2046
        %v2048 = vtanh.pop %v2047
        %v2049 = vmul.f32 %v2043, %v2048
        %2050 = vst [vmem:[#allocation2 + $0x10] sm:$0xff] %v2049
        %v2051 = vld [vmem:[#allocation3 + $0x60] sm:$0xff]
        %v2052 = vld [vmem:[#allocation3 + $0x68] sm:$0xff]
        %v2053 = vld [vmem:[#allocation3 + $0x70] sm:$0xff]
        %v2054 = vld [vmem:[#allocation3 + $0x78] sm:$0xff]
        %v2055 = vpack.c.bf16 %v2049, %v2049
        %v2056 = vld [vmem:[%s313] sm:$0xff]
        %v2057 = vld [vmem:[%s313 + $0x8] sm:$0xff]
        %v2058 = vld [vmem:[%s313 + $0x10] sm:$0xff]
        %v2059 = vld [vmem:[%s313 + $0x18] sm:$0xff]
        %v2060 = vld [vmem:[%s313 + $0x20] sm:$0xff]
        %v2061 = vld [vmem:[%s313 + $0x28] sm:$0xff]
        %v2062 = vld [vmem:[%s313 + $0x30] sm:$0xff]
        %v2063 = vld [vmem:[%s313 + $0x38] sm:$0xff]
        %v2064 = vld [vmem:[%s313 + $0x40] sm:$0xff]
        %v2065 = vld [vmem:[%s313 + $0x48] sm:$0xff]
        %v2066 = vld [vmem:[%s313 + $0x50] sm:$0xff]
        %v2067 = vld [vmem:[%s313 + $0x58] sm:$0xff]
        %v2068 = vld [vmem:[%s313 + $0x60] sm:$0xff]
        %v2069 = vld [vmem:[%s313 + $0x68] sm:$0xff]
        %v2070 = vld [vmem:[%s313 + $0x70] sm:$0xff]
        %v2071 = vld [vmem:[%s313 + $0x78] sm:$0xff]
        %v2072 = vld [vmem:[%s313 + $0x80] sm:$0xff]
        %v2073 = vld [vmem:[%s313 + $0x88] sm:$0xff]
        %v2074 = vld [vmem:[%s313 + $0x90] sm:$0xff]
        %v2075 = vld [vmem:[%s313 + $0x98] sm:$0xff]
        %v2076 = vld [vmem:[%s313 + $0xa0] sm:$0xff]
        %v2077 = vld [vmem:[%s313 + $0xa8] sm:$0xff]
        %v2078 = vld [vmem:[%s313 + $0xb0] sm:$0xff]
        %v2079 = vld [vmem:[%s313 + $0xb8] sm:$0xff]
        %v2080 = vld [vmem:[%s313 + $0xc0] sm:$0xff]
        %v2081 = vld [vmem:[%s313 + $0xc8] sm:$0xff]
        %v2082 = vld [vmem:[%s313 + $0xd0] sm:$0xff]
        %v2083 = vld [vmem:[%s313 + $0xd8] sm:$0xff]
        %v2084 = vld [vmem:[%s313 + $0xe0] sm:$0xff]
        %v2085 = vld [vmem:[%s313 + $0xe8] sm:$0xff]
        %v2086 = vld [vmem:[%s313 + $0xf0] sm:$0xff]
        %v2087 = vld [vmem:[%s313 + $0xf8] sm:$0xff]
        %v2120 = vunpack.c.l.b16 %v2056
        %v2121 = vunpack.c.h.b16 %v2056
        %v2122 = vunpack.c.l.b16 %v2057
        %v2123 = vunpack.c.h.b16 %v2057
        %v2124 = vunpack.c.l.b16 %v2058
        %v2125 = vunpack.c.h.b16 %v2058
        %v2126 = vunpack.c.l.b16 %v2059
        %v2127 = vunpack.c.h.b16 %v2059
        %v2128 = vunpack.c.l.b16 %v2060
        %v2129 = vunpack.c.h.b16 %v2060
        %v2130 = vunpack.c.l.b16 %v2061
        %v2131 = vunpack.c.h.b16 %v2061
        %v2132 = vunpack.c.l.b16 %v2062
        %v2133 = vunpack.c.h.b16 %v2062
        %v2134 = vunpack.c.l.b16 %v2063
        %v2135 = vunpack.c.h.b16 %v2063
        %v2136 = vunpack.c.l.b16 %v2064
        %v2137 = vunpack.c.h.b16 %v2064
        %v2138 = vunpack.c.l.b16 %v2065
        %v2139 = vunpack.c.h.b16 %v2065
        %v2140 = vunpack.c.l.b16 %v2066
        %v2141 = vunpack.c.h.b16 %v2066
        %v2142 = vunpack.c.l.b16 %v2067
        %v2143 = vunpack.c.h.b16 %v2067
        %v2144 = vunpack.c.l.b16 %v2068
        %v2145 = vunpack.c.h.b16 %v2068
        %v2146 = vunpack.c.l.b16 %v2069
        %v2147 = vunpack.c.h.b16 %v2069
        %v2148 = vunpack.c.l.b16 %v2070
        %v2149 = vunpack.c.h.b16 %v2070
        %v2150 = vunpack.c.l.b16 %v2071
        %v2151 = vunpack.c.h.b16 %v2071
        %v2152 = vunpack.c.l.b16 %v2072
        %v2153 = vunpack.c.h.b16 %v2072
        %v2154 = vunpack.c.l.b16 %v2073
        %v2155 = vunpack.c.h.b16 %v2073
        %v2156 = vunpack.c.l.b16 %v2074
        %v2157 = vunpack.c.h.b16 %v2074
        %v2158 = vunpack.c.l.b16 %v2075
        %v2159 = vunpack.c.h.b16 %v2075
        %v2160 = vunpack.c.l.b16 %v2076
        %v2161 = vunpack.c.h.b16 %v2076
        %v2162 = vunpack.c.l.b16 %v2077
        %v2163 = vunpack.c.h.b16 %v2077
        %v2164 = vunpack.c.l.b16 %v2078
        %v2165 = vunpack.c.h.b16 %v2078
        %v2166 = vunpack.c.l.b16 %v2079
        %v2167 = vunpack.c.h.b16 %v2079
        %v2168 = vunpack.c.l.b16 %v2080
        %v2169 = vunpack.c.h.b16 %v2080
        %v2170 = vunpack.c.l.b16 %v2081
        %v2171 = vunpack.c.h.b16 %v2081
        %v2172 = vunpack.c.l.b16 %v2082
        %v2173 = vunpack.c.h.b16 %v2082
        %v2174 = vunpack.c.l.b16 %v2083
        %v2175 = vunpack.c.h.b16 %v2083
        %v2176 = vunpack.c.l.b16 %v2084
        %v2177 = vunpack.c.h.b16 %v2084
        %v2178 = vunpack.c.l.b16 %v2085
        %v2179 = vunpack.c.h.b16 %v2085
        %v2180 = vunpack.c.l.b16 %v2086
        %v2181 = vunpack.c.h.b16 %v2086
        %v2182 = vunpack.c.l.b16 %v2087
        %v2183 = vunpack.c.h.b16 %v2087
        %v2184 = vpack.c.b16 %v2124, %v2120
        %v2185 = vpack.c.b16 %v2125, %v2121
        %v2186 = vpack.c.b16 %v2126, %v2122
        %v2187 = vpack.c.b16 %v2127, %v2123
        %v2188 = vpack.c.b16 %v2132, %v2128
        %v2189 = vpack.c.b16 %v2133, %v2129
        %v2190 = vpack.c.b16 %v2134, %v2130
        %v2191 = vpack.c.b16 %v2135, %v2131
        %v2192 = vpack.c.b16 %v2140, %v2136
        %v2193 = vpack.c.b16 %v2141, %v2137
        %v2194 = vpack.c.b16 %v2142, %v2138
        %v2195 = vpack.c.b16 %v2143, %v2139
        %v2196 = vpack.c.b16 %v2148, %v2144
        %v2197 = vpack.c.b16 %v2149, %v2145
        %v2198 = vpack.c.b16 %v2150, %v2146
        %v2199 = vpack.c.b16 %v2151, %v2147
        %v2200 = vpack.c.b16 %v2156, %v2152
        %v2201 = vpack.c.b16 %v2157, %v2153
        %v2202 = vpack.c.b16 %v2158, %v2154
        %v2203 = vpack.c.b16 %v2159, %v2155
        %v2204 = vpack.c.b16 %v2164, %v2160
        %v2205 = vpack.c.b16 %v2165, %v2161
        %v2206 = vpack.c.b16 %v2166, %v2162
        %v2207 = vpack.c.b16 %v2167, %v2163
        %v2208 = vpack.c.b16 %v2172, %v2168
        %v2209 = vpack.c.b16 %v2173, %v2169
        %v2210 = vpack.c.b16 %v2174, %v2170
        %v2211 = vpack.c.b16 %v2175, %v2171
        %v2212 = vpack.c.b16 %v2180, %v2176
        %v2213 = vpack.c.b16 %v2181, %v2177
        %v2214 = vpack.c.b16 %v2182, %v2178
        %v2215 = vpack.c.b16 %v2183, %v2179
        %2248 = vmatpush.bf16.msra.mxu0 %v2212
        %2249 = vmatpush.bf16.msra.mxu0 %v2208
        %2250 = vmatpush.bf16.msra.mxu0 %v2204
        %2251 = vmatpush.bf16.msra.mxu0 %v2200
        %2252 = vmatpush.bf16.msra.mxu0 %v2196
        %2253 = vmatpush.bf16.msra.mxu0 %v2192
        %2254 = vmatpush.bf16.msra.mxu0 %v2188
        %2255 = vmatpush.bf16.msra.mxu0 %v2184
        %2256 = vmatmul.bf16.gmra.mxu0 %v2055
        %v2257 = vpop.f32.mrf.mxu0
        %v2258 = vadd.f32 0.0, %v2257
        %v2259 = vpop.f32.mrf.mxu0
        %2260 = vdwg.mxu0
        %2261 = vmatpush.bf16.msra.mxu0 %v2213
        %2262 = vmatpush.bf16.msra.mxu0 %v2209
        %2263 = vmatpush.bf16.msra.mxu0 %v2205
        %2264 = vmatpush.bf16.msra.mxu0 %v2201
        %2265 = vmatpush.bf16.msra.mxu0 %v2197
        %2266 = vmatpush.bf16.msra.mxu0 %v2193
        %2267 = vmatpush.bf16.msra.mxu0 %v2189
        %2268 = vmatpush.bf16.msra.mxu0 %v2185
        %2269 = vmatmul.bf16.gmra.mxu0 %v2055
        %v2270 = vpop.f32.mrf.mxu0
        %v2271 = vadd.f32 0.0, %v2270
        %v2272 = vpop.f32.mrf.mxu0
        %2273 = vdwg.mxu0
        %2274 = vmatpush.bf16.msra.mxu0 %v2214
        %2275 = vmatpush.bf16.msra.mxu0 %v2210
        %2276 = vmatpush.bf16.msra.mxu0 %v2206
        %2277 = vmatpush.bf16.msra.mxu0 %v2202
        %2278 = vmatpush.bf16.msra.mxu0 %v2198
        %2279 = vmatpush.bf16.msra.mxu0 %v2194
        %2280 = vmatpush.bf16.msra.mxu0 %v2190
        %2281 = vmatpush.bf16.msra.mxu0 %v2186
        %2282 = vmatmul.bf16.gmra.mxu0 %v2055
        %v2283 = vpop.f32.mrf.mxu0
        %v2284 = vadd.f32 0.0, %v2283
        %v2285 = vpop.f32.mrf.mxu0
        %2286 = vdwg.mxu0
        %2287 = vmatpush.bf16.msra.mxu0 %v2215
        %2288 = vmatpush.bf16.msra.mxu0 %v2211
        %2289 = vmatpush.bf16.msra.mxu0 %v2207
        %2290 = vmatpush.bf16.msra.mxu0 %v2203
        %2291 = vmatpush.bf16.msra.mxu0 %v2199
        %2292 = vmatpush.bf16.msra.mxu0 %v2195
        %2293 = vmatpush.bf16.msra.mxu0 %v2191
        %2294 = vmatpush.bf16.msra.mxu0 %v2187
        %2295 = vmatmul.bf16.gmra.mxu0 %v2055
        %v2296 = vpop.f32.mrf.mxu0
        %v2297 = vadd.f32 0.0, %v2296
        %v2298 = vpop.f32.mrf.mxu0
        %2299 = vdwg.mxu0
        %v2300 = vadd.f32 %v2051, %v2258
        %v2301 = vadd.f32 %v2052, %v2271
        %v2302 = vadd.f32 %v2053, %v2284
        %v2303 = vadd.f32 %v2054, %v2297
        %v2304 = vxor.u32 %v2300, 2147483648
        %v2305 = vxor.u32 %v2301, 2147483648
        %v2306 = vxor.u32 %v2302, 2147483648
        %v2307 = vmul.f32 %v2304, 1.442695
        %v2308 = vpow.pop %v2307
        %v2309 = vmul.f32 %v2305, 1.442695
        %v2310 = vpow.pop %v2309
        %v2311 = vmul.f32 %v2306, 1.442695
        %v2312 = vpow.pop %v2311
        %v2313 = vadd.f32 %v2308, 1.0
        %v2314 = vadd.f32 %v2310, 1.0
        %v2315 = vadd.f32 %v2312, 1.0
        %v2316 = vrcp.pop %v2313
        %v2317 = vmul.f32 %v2313, %v2316
        %v2318 = vsub.f32 1.0, %v2317
        %v2319 = vmul.f32 %v2316, %v2318
        %v2320 = vadd.f32 %v2316, %v2319
        %vm2321 = vweird.f32 %v2313
        %vm2322 = vweird.f32 %v2316
        %vm2323 = vmor %vm2321, %vm2322
        %v2324 = vsel %vm2323, %v2316, %v2320
        %v2325 = vand.u32 2147483647, %v2313
        %vm2326 = vcmp.eq.f32.partialorder %v2325, 8.507059e+37
        %v2327 = vand.u32 %v2313, 2147483648
        %v2328 = vor.u32 1.1754944e-38, %v2327
        %v2329 = vsel %vm2326, %v2328, %v2324
        %v2330 = vmul.f32 1.0, %v2329
        %v2331 = vrcp.pop %v2314
        %v2332 = vmul.f32 %v2314, %v2331
        %v2333 = vsub.f32 1.0, %v2332
        %v2334 = vmul.f32 %v2331, %v2333
        %v2335 = vadd.f32 %v2331, %v2334
        %vm2336 = vweird.f32 %v2314
        %vm2337 = vweird.f32 %v2331
        %vm2338 = vmor %vm2336, %vm2337
        %v2339 = vsel %vm2338, %v2331, %v2335
        %v2340 = vand.u32 2147483647, %v2314
        %vm2341 = vcmp.eq.f32.partialorder %v2340, 8.507059e+37
        %v2342 = vand.u32 %v2314, 2147483648
        %v2343 = vor.u32 1.1754944e-38, %v2342
        %v2344 = vsel %vm2341, %v2343, %v2339
        %v2345 = vmul.f32 1.0, %v2344
        %v2346 = vrcp.pop %v2315
        %v2347 = vmul.f32 %v2315, %v2346
        %v2348 = vsub.f32 1.0, %v2347
        %v2349 = vmul.f32 %v2346, %v2348
        %v2350 = vadd.f32 %v2346, %v2349
        %vm2351 = vweird.f32 %v2315
        %vm2352 = vweird.f32 %v2346
        %vm2353 = vmor %vm2351, %vm2352
        %v2354 = vsel %vm2353, %v2346, %v2350
        %v2355 = vand.u32 2147483647, %v2315
        %vm2356 = vcmp.eq.f32.partialorder %v2355, 8.507059e+37
        %v2357 = vand.u32 %v2315, 2147483648
        %v2358 = vor.u32 1.1754944e-38, %v2357
        %v2359 = vsel %vm2356, %v2358, %v2354
        %v2360 = vmul.f32 1.0, %v2359
        %v2361 = vtanh.pop %v2303
        %v2362 = vmul.f32 %v2345, %v2047
        %v2363 = vmul.f32 %v2330, %v2361
        %v2364 = vadd.f32 %v2362, %v2363
        %v2365 = vtanh.pop %v2364
        %v2366 = vmul.f32 %v2360, %v2365
        %2367 = vst [vmem:[#allocation2 + $0x18] sm:$0xff] %v2366
        %v2368 = vld [vmem:[#allocation3 + $0x80] sm:$0xff]
        %v2369 = vld [vmem:[#allocation3 + $0x88] sm:$0xff]
        %v2370 = vld [vmem:[#allocation3 + $0x90] sm:$0xff]
        %v2371 = vld [vmem:[#allocation3 + $0x98] sm:$0xff]
        %v2372 = vpack.c.bf16 %v2366, %v2366
        %v2373 = vld [vmem:[%s313] sm:$0xff]
        %v2374 = vld [vmem:[%s313 + $0x8] sm:$0xff]
        %v2375 = vld [vmem:[%s313 + $0x10] sm:$0xff]
        %v2376 = vld [vmem:[%s313 + $0x18] sm:$0xff]
        %v2377 = vld [vmem:[%s313 + $0x20] sm:$0xff]
        %v2378 = vld [vmem:[%s313 + $0x28] sm:$0xff]
        %v2379 = vld [vmem:[%s313 + $0x30] sm:$0xff]
        %v2380 = vld [vmem:[%s313 + $0x38] sm:$0xff]
        %v2381 = vld [vmem:[%s313 + $0x40] sm:$0xff]
        %v2382 = vld [vmem:[%s313 + $0x48] sm:$0xff]
        %v2383 = vld [vmem:[%s313 + $0x50] sm:$0xff]
        %v2384 = vld [vmem:[%s313 + $0x58] sm:$0xff]
        %v2385 = vld [vmem:[%s313 + $0x60] sm:$0xff]
        %v2386 = vld [vmem:[%s313 + $0x68] sm:$0xff]
        %v2387 = vld [vmem:[%s313 + $0x70] sm:$0xff]
        %v2388 = vld [vmem:[%s313 + $0x78] sm:$0xff]
        %v2389 = vld [vmem:[%s313 + $0x80] sm:$0xff]
        %v2390 = vld [vmem:[%s313 + $0x88] sm:$0xff]
        %v2391 = vld [vmem:[%s313 + $0x90] sm:$0xff]
        %v2392 = vld [vmem:[%s313 + $0x98] sm:$0xff]
        %v2393 = vld [vmem:[%s313 + $0xa0] sm:$0xff]
        %v2394 = vld [vmem:[%s313 + $0xa8] sm:$0xff]
        %v2395 = vld [vmem:[%s313 + $0xb0] sm:$0xff]
        %v2396 = vld [vmem:[%s313 + $0xb8] sm:$0xff]
        %v2397 = vld [vmem:[%s313 + $0xc0] sm:$0xff]
        %v2398 = vld [vmem:[%s313 + $0xc8] sm:$0xff]
        %v2399 = vld [vmem:[%s313 + $0xd0] sm:$0xff]
        %v2400 = vld [vmem:[%s313 + $0xd8] sm:$0xff]
        %v2401 = vld [vmem:[%s313 + $0xe0] sm:$0xff]
        %v2402 = vld [vmem:[%s313 + $0xe8] sm:$0xff]
        %v2403 = vld [vmem:[%s313 + $0xf0] sm:$0xff]
        %v2404 = vld [vmem:[%s313 + $0xf8] sm:$0xff]
        %v2437 = vunpack.c.l.b16 %v2373
        %v2438 = vunpack.c.h.b16 %v2373
        %v2439 = vunpack.c.l.b16 %v2374
        %v2440 = vunpack.c.h.b16 %v2374
        %v2441 = vunpack.c.l.b16 %v2375
        %v2442 = vunpack.c.h.b16 %v2375
        %v2443 = vunpack.c.l.b16 %v2376
        %v2444 = vunpack.c.h.b16 %v2376
        %v2445 = vunpack.c.l.b16 %v2377
        %v2446 = vunpack.c.h.b16 %v2377
        %v2447 = vunpack.c.l.b16 %v2378
        %v2448 = vunpack.c.h.b16 %v2378
        %v2449 = vunpack.c.l.b16 %v2379
        %v2450 = vunpack.c.h.b16 %v2379
        %v2451 = vunpack.c.l.b16 %v2380
        %v2452 = vunpack.c.h.b16 %v2380
        %v2453 = vunpack.c.l.b16 %v2381
        %v2454 = vunpack.c.h.b16 %v2381
        %v2455 = vunpack.c.l.b16 %v2382
        %v2456 = vunpack.c.h.b16 %v2382
        %v2457 = vunpack.c.l.b16 %v2383
        %v2458 = vunpack.c.h.b16 %v2383
        %v2459 = vunpack.c.l.b16 %v2384
        %v2460 = vunpack.c.h.b16 %v2384
        %v2461 = vunpack.c.l.b16 %v2385
        %v2462 = vunpack.c.h.b16 %v2385
        %v2463 = vunpack.c.l.b16 %v2386
        %v2464 = vunpack.c.h.b16 %v2386
        %v2465 = vunpack.c.l.b16 %v2387
        %v2466 = vunpack.c.h.b16 %v2387
        %v2467 = vunpack.c.l.b16 %v2388
        %v2468 = vunpack.c.h.b16 %v2388
        %v2469 = vunpack.c.l.b16 %v2389
        %v2470 = vunpack.c.h.b16 %v2389
        %v2471 = vunpack.c.l.b16 %v2390
        %v2472 = vunpack.c.h.b16 %v2390
        %v2473 = vunpack.c.l.b16 %v2391
        %v2474 = vunpack.c.h.b16 %v2391
        %v2475 = vunpack.c.l.b16 %v2392
        %v2476 = vunpack.c.h.b16 %v2392
        %v2477 = vunpack.c.l.b16 %v2393
        %v2478 = vunpack.c.h.b16 %v2393
        %v2479 = vunpack.c.l.b16 %v2394
        %v2480 = vunpack.c.h.b16 %v2394
        %v2481 = vunpack.c.l.b16 %v2395
        %v2482 = vunpack.c.h.b16 %v2395
        %v2483 = vunpack.c.l.b16 %v2396
        %v2484 = vunpack.c.h.b16 %v2396
        %v2485 = vunpack.c.l.b16 %v2397
        %v2486 = vunpack.c.h.b16 %v2397
        %v2487 = vunpack.c.l.b16 %v2398
        %v2488 = vunpack.c.h.b16 %v2398
        %v2489 = vunpack.c.l.b16 %v2399
        %v2490 = vunpack.c.h.b16 %v2399
        %v2491 = vunpack.c.l.b16 %v2400
        %v2492 = vunpack.c.h.b16 %v2400
        %v2493 = vunpack.c.l.b16 %v2401
        %v2494 = vunpack.c.h.b16 %v2401
        %v2495 = vunpack.c.l.b16 %v2402
        %v2496 = vunpack.c.h.b16 %v2402
        %v2497 = vunpack.c.l.b16 %v2403
        %v2498 = vunpack.c.h.b16 %v2403
        %v2499 = vunpack.c.l.b16 %v2404
        %v2500 = vunpack.c.h.b16 %v2404
        %v2501 = vpack.c.b16 %v2441, %v2437
        %v2502 = vpack.c.b16 %v2442, %v2438
        %v2503 = vpack.c.b16 %v2443, %v2439
        %v2504 = vpack.c.b16 %v2444, %v2440
        %v2505 = vpack.c.b16 %v2449, %v2445
        %v2506 = vpack.c.b16 %v2450, %v2446
        %v2507 = vpack.c.b16 %v2451, %v2447
        %v2508 = vpack.c.b16 %v2452, %v2448
        %v2509 = vpack.c.b16 %v2457, %v2453
        %v2510 = vpack.c.b16 %v2458, %v2454
        %v2511 = vpack.c.b16 %v2459, %v2455
        %v2512 = vpack.c.b16 %v2460, %v2456
        %v2513 = vpack.c.b16 %v2465, %v2461
        %v2514 = vpack.c.b16 %v2466, %v2462
        %v2515 = vpack.c.b16 %v2467, %v2463
        %v2516 = vpack.c.b16 %v2468, %v2464
        %v2517 = vpack.c.b16 %v2473, %v2469
        %v2518 = vpack.c.b16 %v2474, %v2470
        %v2519 = vpack.c.b16 %v2475, %v2471
        %v2520 = vpack.c.b16 %v2476, %v2472
        %v2521 = vpack.c.b16 %v2481, %v2477
        %v2522 = vpack.c.b16 %v2482, %v2478
        %v2523 = vpack.c.b16 %v2483, %v2479
        %v2524 = vpack.c.b16 %v2484, %v2480
        %v2525 = vpack.c.b16 %v2489, %v2485
        %v2526 = vpack.c.b16 %v2490, %v2486
        %v2527 = vpack.c.b16 %v2491, %v2487
        %v2528 = vpack.c.b16 %v2492, %v2488
        %v2529 = vpack.c.b16 %v2497, %v2493
        %v2530 = vpack.c.b16 %v2498, %v2494
        %v2531 = vpack.c.b16 %v2499, %v2495
        %v2532 = vpack.c.b16 %v2500, %v2496
        %2565 = vmatpush.bf16.msra.mxu0 %v2529
        %2566 = vmatpush.bf16.msra.mxu0 %v2525
        %2567 = vmatpush.bf16.msra.mxu0 %v2521
        %2568 = vmatpush.bf16.msra.mxu0 %v2517
        %2569 = vmatpush.bf16.msra.mxu0 %v2513
        %2570 = vmatpush.bf16.msra.mxu0 %v2509
        %2571 = vmatpush.bf16.msra.mxu0 %v2505
        %2572 = vmatpush.bf16.msra.mxu0 %v2501
        %2573 = vmatmul.bf16.gmra.mxu0 %v2372
        %v2574 = vpop.f32.mrf.mxu0
        %v2575 = vadd.f32 0.0, %v2574
        %v2576 = vpop.f32.mrf.mxu0
        %2577 = vdwg.mxu0
        %2578 = vmatpush.bf16.msra.mxu0 %v2530
        %2579 = vmatpush.bf16.msra.mxu0 %v2526
        %2580 = vmatpush.bf16.msra.mxu0 %v2522
        %2581 = vmatpush.bf16.msra.mxu0 %v2518
        %2582 = vmatpush.bf16.msra.mxu0 %v2514
        %2583 = vmatpush.bf16.msra.mxu0 %v2510
        %2584 = vmatpush.bf16.msra.mxu0 %v2506
        %2585 = vmatpush.bf16.msra.mxu0 %v2502
        %2586 = vmatmul.bf16.gmra.mxu0 %v2372
        %v2587 = vpop.f32.mrf.mxu0
        %v2588 = vadd.f32 0.0, %v2587
        %v2589 = vpop.f32.mrf.mxu0
        %2590 = vdwg.mxu0
        %2591 = vmatpush.bf16.msra.mxu0 %v2531
        %2592 = vmatpush.bf16.msra.mxu0 %v2527
        %2593 = vmatpush.bf16.msra.mxu0 %v2523
        %2594 = vmatpush.bf16.msra.mxu0 %v2519
        %2595 = vmatpush.bf16.msra.mxu0 %v2515
        %2596 = vmatpush.bf16.msra.mxu0 %v2511
        %2597 = vmatpush.bf16.msra.mxu0 %v2507
        %2598 = vmatpush.bf16.msra.mxu0 %v2503
        %2599 = vmatmul.bf16.gmra.mxu0 %v2372
        %v2600 = vpop.f32.mrf.mxu0
        %v2601 = vadd.f32 0.0, %v2600
        %v2602 = vpop.f32.mrf.mxu0
        %2603 = vdwg.mxu0
        %2604 = vmatpush.bf16.msra.mxu0 %v2532
        %2605 = vmatpush.bf16.msra.mxu0 %v2528
        %2606 = vmatpush.bf16.msra.mxu0 %v2524
        %2607 = vmatpush.bf16.msra.mxu0 %v2520
        %2608 = vmatpush.bf16.msra.mxu0 %v2516
        %2609 = vmatpush.bf16.msra.mxu0 %v2512
        %2610 = vmatpush.bf16.msra.mxu0 %v2508
        %2611 = vmatpush.bf16.msra.mxu0 %v2504
        %2612 = vmatmul.bf16.gmra.mxu0 %v2372
        %v2613 = vpop.f32.mrf.mxu0
        %v2614 = vadd.f32 0.0, %v2613
        %v2615 = vpop.f32.mrf.mxu0
        %2616 = vdwg.mxu0
        %v2617 = vadd.f32 %v2368, %v2575
        %v2618 = vadd.f32 %v2369, %v2588
        %v2619 = vadd.f32 %v2370, %v2601
        %v2620 = vadd.f32 %v2371, %v2614
        %v2621 = vxor.u32 %v2617, 2147483648
        %v2622 = vxor.u32 %v2618, 2147483648
        %v2623 = vxor.u32 %v2619, 2147483648
        %v2624 = vmul.f32 %v2621, 1.442695
        %v2625 = vpow.pop %v2624
        %v2626 = vmul.f32 %v2622, 1.442695
        %v2627 = vpow.pop %v2626
        %v2628 = vmul.f32 %v2623, 1.442695
        %v2629 = vpow.pop %v2628
        %v2630 = vadd.f32 %v2625, 1.0
        %v2631 = vadd.f32 %v2627, 1.0
        %v2632 = vadd.f32 %v2629, 1.0
        %v2633 = vrcp.pop %v2630
        %v2634 = vmul.f32 %v2630, %v2633
        %v2635 = vsub.f32 1.0, %v2634
        %v2636 = vmul.f32 %v2633, %v2635
        %v2637 = vadd.f32 %v2633, %v2636
        %vm2638 = vweird.f32 %v2630
        %vm2639 = vweird.f32 %v2633
        %vm2640 = vmor %vm2638, %vm2639
        %v2641 = vsel %vm2640, %v2633, %v2637
        %v2642 = vand.u32 2147483647, %v2630
        %vm2643 = vcmp.eq.f32.partialorder %v2642, 8.507059e+37
        %v2644 = vand.u32 %v2630, 2147483648
        %v2645 = vor.u32 1.1754944e-38, %v2644
        %v2646 = vsel %vm2643, %v2645, %v2641
        %v2647 = vmul.f32 1.0, %v2646
        %v2648 = vrcp.pop %v2631
        %v2649 = vmul.f32 %v2631, %v2648
        %v2650 = vsub.f32 1.0, %v2649
        %v2651 = vmul.f32 %v2648, %v2650
        %v2652 = vadd.f32 %v2648, %v2651
        %vm2653 = vweird.f32 %v2631
        %vm2654 = vweird.f32 %v2648
        %vm2655 = vmor %vm2653, %vm2654
        %v2656 = vsel %vm2655, %v2648, %v2652
        %v2657 = vand.u32 2147483647, %v2631
        %vm2658 = vcmp.eq.f32.partialorder %v2657, 8.507059e+37
        %v2659 = vand.u32 %v2631, 2147483648
        %v2660 = vor.u32 1.1754944e-38, %v2659
        %v2661 = vsel %vm2658, %v2660, %v2656
        %v2662 = vmul.f32 1.0, %v2661
        %v2663 = vrcp.pop %v2632
        %v2664 = vmul.f32 %v2632, %v2663
        %v2665 = vsub.f32 1.0, %v2664
        %v2666 = vmul.f32 %v2663, %v2665
        %v2667 = vadd.f32 %v2663, %v2666
        %vm2668 = vweird.f32 %v2632
        %vm2669 = vweird.f32 %v2663
        %vm2670 = vmor %vm2668, %vm2669
        %v2671 = vsel %vm2670, %v2663, %v2667
        %v2672 = vand.u32 2147483647, %v2632
        %vm2673 = vcmp.eq.f32.partialorder %v2672, 8.507059e+37
        %v2674 = vand.u32 %v2632, 2147483648
        %v2675 = vor.u32 1.1754944e-38, %v2674
        %v2676 = vsel %vm2673, %v2675, %v2671
        %v2677 = vmul.f32 1.0, %v2676
        %v2678 = vtanh.pop %v2620
        %v2679 = vmul.f32 %v2662, %v2364
        %v2680 = vmul.f32 %v2647, %v2678
        %v2681 = vadd.f32 %v2679, %v2680
        %v2682 = vtanh.pop %v2681
        %v2683 = vmul.f32 %v2677, %v2682
        %2684 = vst [vmem:[#allocation2 + $0x20] sm:$0xff] %v2683
        %v2685 = vld [vmem:[#allocation3 + $0xa0] sm:$0xff]
        %v2686 = vld [vmem:[#allocation3 + $0xa8] sm:$0xff]
        %v2687 = vld [vmem:[#allocation3 + $0xb0] sm:$0xff]
        %v2688 = vld [vmem:[#allocation3 + $0xb8] sm:$0xff]
        %v2689 = vpack.c.bf16 %v2683, %v2683
        %v2690 = vld [vmem:[%s313] sm:$0xff]
        %v2691 = vld [vmem:[%s313 + $0x8] sm:$0xff]
        %v2692 = vld [vmem:[%s313 + $0x10] sm:$0xff]
        %v2693 = vld [vmem:[%s313 + $0x18] sm:$0xff]
        %v2694 = vld [vmem:[%s313 + $0x20] sm:$0xff]
        %v2695 = vld [vmem:[%s313 + $0x28] sm:$0xff]
        %v2696 = vld [vmem:[%s313 + $0x30] sm:$0xff]
        %v2697 = vld [vmem:[%s313 + $0x38] sm:$0xff]
        %v2698 = vld [vmem:[%s313 + $0x40] sm:$0xff]
        %v2699 = vld [vmem:[%s313 + $0x48] sm:$0xff]
        %v2700 = vld [vmem:[%s313 + $0x50] sm:$0xff]
        %v2701 = vld [vmem:[%s313 + $0x58] sm:$0xff]
        %v2702 = vld [vmem:[%s313 + $0x60] sm:$0xff]
        %v2703 = vld [vmem:[%s313 + $0x68] sm:$0xff]
        %v2704 = vld [vmem:[%s313 + $0x70] sm:$0xff]
        %v2705 = vld [vmem:[%s313 + $0x78] sm:$0xff]
        %v2706 = vld [vmem:[%s313 + $0x80] sm:$0xff]
        %v2707 = vld [vmem:[%s313 + $0x88] sm:$0xff]
        %v2708 = vld [vmem:[%s313 + $0x90] sm:$0xff]
        %v2709 = vld [vmem:[%s313 + $0x98] sm:$0xff]
        %v2710 = vld [vmem:[%s313 + $0xa0] sm:$0xff]
        %v2711 = vld [vmem:[%s313 + $0xa8] sm:$0xff]
        %v2712 = vld [vmem:[%s313 + $0xb0] sm:$0xff]
        %v2713 = vld [vmem:[%s313 + $0xb8] sm:$0xff]
        %v2714 = vld [vmem:[%s313 + $0xc0] sm:$0xff]
        %v2715 = vld [vmem:[%s313 + $0xc8] sm:$0xff]
        %v2716 = vld [vmem:[%s313 + $0xd0] sm:$0xff]
        %v2717 = vld [vmem:[%s313 + $0xd8] sm:$0xff]
        %v2718 = vld [vmem:[%s313 + $0xe0] sm:$0xff]
        %v2719 = vld [vmem:[%s313 + $0xe8] sm:$0xff]
        %v2720 = vld [vmem:[%s313 + $0xf0] sm:$0xff]
        %v2721 = vld [vmem:[%s313 + $0xf8] sm:$0xff]
        %v2754 = vunpack.c.l.b16 %v2690
        %v2755 = vunpack.c.h.b16 %v2690
        %v2756 = vunpack.c.l.b16 %v2691
        %v2757 = vunpack.c.h.b16 %v2691
        %v2758 = vunpack.c.l.b16 %v2692
        %v2759 = vunpack.c.h.b16 %v2692
        %v2760 = vunpack.c.l.b16 %v2693
        %v2761 = vunpack.c.h.b16 %v2693
        %v2762 = vunpack.c.l.b16 %v2694
        %v2763 = vunpack.c.h.b16 %v2694
        %v2764 = vunpack.c.l.b16 %v2695
        %v2765 = vunpack.c.h.b16 %v2695
        %v2766 = vunpack.c.l.b16 %v2696
        %v2767 = vunpack.c.h.b16 %v2696
        %v2768 = vunpack.c.l.b16 %v2697
        %v2769 = vunpack.c.h.b16 %v2697
        %v2770 = vunpack.c.l.b16 %v2698
        %v2771 = vunpack.c.h.b16 %v2698
        %v2772 = vunpack.c.l.b16 %v2699
        %v2773 = vunpack.c.h.b16 %v2699
        %v2774 = vunpack.c.l.b16 %v2700
        %v2775 = vunpack.c.h.b16 %v2700
        %v2776 = vunpack.c.l.b16 %v2701
        %v2777 = vunpack.c.h.b16 %v2701
        %v2778 = vunpack.c.l.b16 %v2702
        %v2779 = vunpack.c.h.b16 %v2702
        %v2780 = vunpack.c.l.b16 %v2703
        %v2781 = vunpack.c.h.b16 %v2703
        %v2782 = vunpack.c.l.b16 %v2704
        %v2783 = vunpack.c.h.b16 %v2704
        %v2784 = vunpack.c.l.b16 %v2705
        %v2785 = vunpack.c.h.b16 %v2705
        %v2786 = vunpack.c.l.b16 %v2706
        %v2787 = vunpack.c.h.b16 %v2706
        %v2788 = vunpack.c.l.b16 %v2707
        %v2789 = vunpack.c.h.b16 %v2707
        %v2790 = vunpack.c.l.b16 %v2708
        %v2791 = vunpack.c.h.b16 %v2708
        %v2792 = vunpack.c.l.b16 %v2709
        %v2793 = vunpack.c.h.b16 %v2709
        %v2794 = vunpack.c.l.b16 %v2710
        %v2795 = vunpack.c.h.b16 %v2710
        %v2796 = vunpack.c.l.b16 %v2711
        %v2797 = vunpack.c.h.b16 %v2711
        %v2798 = vunpack.c.l.b16 %v2712
        %v2799 = vunpack.c.h.b16 %v2712
        %v2800 = vunpack.c.l.b16 %v2713
        %v2801 = vunpack.c.h.b16 %v2713
        %v2802 = vunpack.c.l.b16 %v2714
        %v2803 = vunpack.c.h.b16 %v2714
        %v2804 = vunpack.c.l.b16 %v2715
        %v2805 = vunpack.c.h.b16 %v2715
        %v2806 = vunpack.c.l.b16 %v2716
        %v2807 = vunpack.c.h.b16 %v2716
        %v2808 = vunpack.c.l.b16 %v2717
        %v2809 = vunpack.c.h.b16 %v2717
        %v2810 = vunpack.c.l.b16 %v2718
        %v2811 = vunpack.c.h.b16 %v2718
        %v2812 = vunpack.c.l.b16 %v2719
        %v2813 = vunpack.c.h.b16 %v2719
        %v2814 = vunpack.c.l.b16 %v2720
        %v2815 = vunpack.c.h.b16 %v2720
        %v2816 = vunpack.c.l.b16 %v2721
        %v2817 = vunpack.c.h.b16 %v2721
        %v2818 = vpack.c.b16 %v2758, %v2754
        %v2819 = vpack.c.b16 %v2759, %v2755
        %v2820 = vpack.c.b16 %v2760, %v2756
        %v2821 = vpack.c.b16 %v2761, %v2757
        %v2822 = vpack.c.b16 %v2766, %v2762
        %v2823 = vpack.c.b16 %v2767, %v2763
        %v2824 = vpack.c.b16 %v2768, %v2764
        %v2825 = vpack.c.b16 %v2769, %v2765
        %v2826 = vpack.c.b16 %v2774, %v2770
        %v2827 = vpack.c.b16 %v2775, %v2771
        %v2828 = vpack.c.b16 %v2776, %v2772
        %v2829 = vpack.c.b16 %v2777, %v2773
        %v2830 = vpack.c.b16 %v2782, %v2778
        %v2831 = vpack.c.b16 %v2783, %v2779
        %v2832 = vpack.c.b16 %v2784, %v2780
        %v2833 = vpack.c.b16 %v2785, %v2781
        %v2834 = vpack.c.b16 %v2790, %v2786
        %v2835 = vpack.c.b16 %v2791, %v2787
        %v2836 = vpack.c.b16 %v2792, %v2788
        %v2837 = vpack.c.b16 %v2793, %v2789
        %v2838 = vpack.c.b16 %v2798, %v2794
        %v2839 = vpack.c.b16 %v2799, %v2795
        %v2840 = vpack.c.b16 %v2800, %v2796
        %v2841 = vpack.c.b16 %v2801, %v2797
        %v2842 = vpack.c.b16 %v2806, %v2802
        %v2843 = vpack.c.b16 %v2807, %v2803
        %v2844 = vpack.c.b16 %v2808, %v2804
        %v2845 = vpack.c.b16 %v2809, %v2805
        %v2846 = vpack.c.b16 %v2814, %v2810
        %v2847 = vpack.c.b16 %v2815, %v2811
        %v2848 = vpack.c.b16 %v2816, %v2812
        %v2849 = vpack.c.b16 %v2817, %v2813
        %2882 = vmatpush.bf16.msra.mxu0 %v2846
        %2883 = vmatpush.bf16.msra.mxu0 %v2842
        %2884 = vmatpush.bf16.msra.mxu0 %v2838
        %2885 = vmatpush.bf16.msra.mxu0 %v2834
        %2886 = vmatpush.bf16.msra.mxu0 %v2830
        %2887 = vmatpush.bf16.msra.mxu0 %v2826
        %2888 = vmatpush.bf16.msra.mxu0 %v2822
        %2889 = vmatpush.bf16.msra.mxu0 %v2818
        %2890 = vmatmul.bf16.gmra.mxu0 %v2689
        %v2891 = vpop.f32.mrf.mxu0
        %v2892 = vadd.f32 0.0, %v2891
        %v2893 = vpop.f32.mrf.mxu0
        %2894 = vdwg.mxu0
        %2895 = vmatpush.bf16.msra.mxu0 %v2847
        %2896 = vmatpush.bf16.msra.mxu0 %v2843
        %2897 = vmatpush.bf16.msra.mxu0 %v2839
        %2898 = vmatpush.bf16.msra.mxu0 %v2835
        %2899 = vmatpush.bf16.msra.mxu0 %v2831
        %2900 = vmatpush.bf16.msra.mxu0 %v2827
        %2901 = vmatpush.bf16.msra.mxu0 %v2823
        %2902 = vmatpush.bf16.msra.mxu0 %v2819
        %2903 = vmatmul.bf16.gmra.mxu0 %v2689
        %v2904 = vpop.f32.mrf.mxu0
        %v2905 = vadd.f32 0.0, %v2904
        %v2906 = vpop.f32.mrf.mxu0
        %2907 = vdwg.mxu0
        %2908 = vmatpush.bf16.msra.mxu0 %v2848
        %2909 = vmatpush.bf16.msra.mxu0 %v2844
        %2910 = vmatpush.bf16.msra.mxu0 %v2840
        %2911 = vmatpush.bf16.msra.mxu0 %v2836
        %2912 = vmatpush.bf16.msra.mxu0 %v2832
        %2913 = vmatpush.bf16.msra.mxu0 %v2828
        %2914 = vmatpush.bf16.msra.mxu0 %v2824
        %2915 = vmatpush.bf16.msra.mxu0 %v2820
        %2916 = vmatmul.bf16.gmra.mxu0 %v2689
        %v2917 = vpop.f32.mrf.mxu0
        %v2918 = vadd.f32 0.0, %v2917
        %v2919 = vpop.f32.mrf.mxu0
        %2920 = vdwg.mxu0
        %2921 = vmatpush.bf16.msra.mxu0 %v2849
        %2922 = vmatpush.bf16.msra.mxu0 %v2845
        %2923 = vmatpush.bf16.msra.mxu0 %v2841
        %2924 = vmatpush.bf16.msra.mxu0 %v2837
        %2925 = vmatpush.bf16.msra.mxu0 %v2833
        %2926 = vmatpush.bf16.msra.mxu0 %v2829
        %2927 = vmatpush.bf16.msra.mxu0 %v2825
        %2928 = vmatpush.bf16.msra.mxu0 %v2821
        %2929 = vmatmul.bf16.gmra.mxu0 %v2689
        %v2930 = vpop.f32.mrf.mxu0
        %v2931 = vadd.f32 0.0, %v2930
        %v2932 = vpop.f32.mrf.mxu0
        %2933 = vdwg.mxu0
        %v2934 = vadd.f32 %v2685, %v2892
        %v2935 = vadd.f32 %v2686, %v2905
        %v2936 = vadd.f32 %v2687, %v2918
        %v2937 = vadd.f32 %v2688, %v2931
        %v2938 = vxor.u32 %v2934, 2147483648
        %v2939 = vxor.u32 %v2935, 2147483648
        %v2940 = vxor.u32 %v2936, 2147483648
        %v2941 = vmul.f32 %v2938, 1.442695
        %v2942 = vpow.pop %v2941
        %v2943 = vmul.f32 %v2939, 1.442695
        %v2944 = vpow.pop %v2943
        %v2945 = vmul.f32 %v2940, 1.442695
        %v2946 = vpow.pop %v2945
        %v2947 = vadd.f32 %v2942, 1.0
        %v2948 = vadd.f32 %v2944, 1.0
        %v2949 = vadd.f32 %v2946, 1.0
        %v2950 = vrcp.pop %v2947
        %v2951 = vmul.f32 %v2947, %v2950
        %v2952 = vsub.f32 1.0, %v2951
        %v2953 = vmul.f32 %v2950, %v2952
        %v2954 = vadd.f32 %v2950, %v2953
        %vm2955 = vweird.f32 %v2947
        %vm2956 = vweird.f32 %v2950
        %vm2957 = vmor %vm2955, %vm2956
        %v2958 = vsel %vm2957, %v2950, %v2954
        %v2959 = vand.u32 2147483647, %v2947
        %vm2960 = vcmp.eq.f32.partialorder %v2959, 8.507059e+37
        %v2961 = vand.u32 %v2947, 2147483648
        %v2962 = vor.u32 1.1754944e-38, %v2961
        %v2963 = vsel %vm2960, %v2962, %v2958
        %v2964 = vmul.f32 1.0, %v2963
        %v2965 = vrcp.pop %v2948
        %v2966 = vmul.f32 %v2948, %v2965
        %v2967 = vsub.f32 1.0, %v2966
        %v2968 = vmul.f32 %v2965, %v2967
        %v2969 = vadd.f32 %v2965, %v2968
        %vm2970 = vweird.f32 %v2948
        %vm2971 = vweird.f32 %v2965
        %vm2972 = vmor %vm2970, %vm2971
        %v2973 = vsel %vm2972, %v2965, %v2969
        %v2974 = vand.u32 2147483647, %v2948
        %vm2975 = vcmp.eq.f32.partialorder %v2974, 8.507059e+37
        %v2976 = vand.u32 %v2948, 2147483648
        %v2977 = vor.u32 1.1754944e-38, %v2976
        %v2978 = vsel %vm2975, %v2977, %v2973
        %v2979 = vmul.f32 1.0, %v2978
        %v2980 = vrcp.pop %v2949
        %v2981 = vmul.f32 %v2949, %v2980
        %v2982 = vsub.f32 1.0, %v2981
        %v2983 = vmul.f32 %v2980, %v2982
        %v2984 = vadd.f32 %v2980, %v2983
        %vm2985 = vweird.f32 %v2949
        %vm2986 = vweird.f32 %v2980
        %vm2987 = vmor %vm2985, %vm2986
        %v2988 = vsel %vm2987, %v2980, %v2984
        %v2989 = vand.u32 2147483647, %v2949
        %vm2990 = vcmp.eq.f32.partialorder %v2989, 8.507059e+37
        %v2991 = vand.u32 %v2949, 2147483648
        %v2992 = vor.u32 1.1754944e-38, %v2991
        %v2993 = vsel %vm2990, %v2992, %v2988
        %v2994 = vmul.f32 1.0, %v2993
        %v2995 = vtanh.pop %v2937
        %v2996 = vmul.f32 %v2979, %v2681
        %v2997 = vmul.f32 %v2964, %v2995
        %v2998 = vadd.f32 %v2996, %v2997
        %v2999 = vtanh.pop %v2998
        %v3000 = vmul.f32 %v2994, %v2999
        %3001 = vst [vmem:[#allocation2 + $0x28] sm:$0xff] %v3000
        %v3002 = vld [vmem:[#allocation3 + $0xc0] sm:$0xff]
        %v3003 = vld [vmem:[#allocation3 + $0xc8] sm:$0xff]
        %v3004 = vld [vmem:[#allocation3 + $0xd0] sm:$0xff]
        %v3005 = vld [vmem:[#allocation3 + $0xd8] sm:$0xff]
        %v3006 = vpack.c.bf16 %v3000, %v3000
        %v3007 = vld [vmem:[%s313] sm:$0xff]
        %v3008 = vld [vmem:[%s313 + $0x8] sm:$0xff]
        %v3009 = vld [vmem:[%s313 + $0x10] sm:$0xff]
        %v3010 = vld [vmem:[%s313 + $0x18] sm:$0xff]
        %v3011 = vld [vmem:[%s313 + $0x20] sm:$0xff]
        %v3012 = vld [vmem:[%s313 + $0x28] sm:$0xff]
        %v3013 = vld [vmem:[%s313 + $0x30] sm:$0xff]
        %v3014 = vld [vmem:[%s313 + $0x38] sm:$0xff]
        %v3015 = vld [vmem:[%s313 + $0x40] sm:$0xff]
        %v3016 = vld [vmem:[%s313 + $0x48] sm:$0xff]
        %v3017 = vld [vmem:[%s313 + $0x50] sm:$0xff]
        %v3018 = vld [vmem:[%s313 + $0x58] sm:$0xff]
        %v3019 = vld [vmem:[%s313 + $0x60] sm:$0xff]
        %v3020 = vld [vmem:[%s313 + $0x68] sm:$0xff]
        %v3021 = vld [vmem:[%s313 + $0x70] sm:$0xff]
        %v3022 = vld [vmem:[%s313 + $0x78] sm:$0xff]
        %v3023 = vld [vmem:[%s313 + $0x80] sm:$0xff]
        %v3024 = vld [vmem:[%s313 + $0x88] sm:$0xff]
        %v3025 = vld [vmem:[%s313 + $0x90] sm:$0xff]
        %v3026 = vld [vmem:[%s313 + $0x98] sm:$0xff]
        %v3027 = vld [vmem:[%s313 + $0xa0] sm:$0xff]
        %v3028 = vld [vmem:[%s313 + $0xa8] sm:$0xff]
        %v3029 = vld [vmem:[%s313 + $0xb0] sm:$0xff]
        %v3030 = vld [vmem:[%s313 + $0xb8] sm:$0xff]
        %v3031 = vld [vmem:[%s313 + $0xc0] sm:$0xff]
        %v3032 = vld [vmem:[%s313 + $0xc8] sm:$0xff]
        %v3033 = vld [vmem:[%s313 + $0xd0] sm:$0xff]
        %v3034 = vld [vmem:[%s313 + $0xd8] sm:$0xff]
        %v3035 = vld [vmem:[%s313 + $0xe0] sm:$0xff]
        %v3036 = vld [vmem:[%s313 + $0xe8] sm:$0xff]
        %v3037 = vld [vmem:[%s313 + $0xf0] sm:$0xff]
        %v3038 = vld [vmem:[%s313 + $0xf8] sm:$0xff]
        %v3071 = vunpack.c.l.b16 %v3007
        %v3072 = vunpack.c.h.b16 %v3007
        %v3073 = vunpack.c.l.b16 %v3008
        %v3074 = vunpack.c.h.b16 %v3008
        %v3075 = vunpack.c.l.b16 %v3009
        %v3076 = vunpack.c.h.b16 %v3009
        %v3077 = vunpack.c.l.b16 %v3010
        %v3078 = vunpack.c.h.b16 %v3010
        %v3079 = vunpack.c.l.b16 %v3011
        %v3080 = vunpack.c.h.b16 %v3011
        %v3081 = vunpack.c.l.b16 %v3012
        %v3082 = vunpack.c.h.b16 %v3012
        %v3083 = vunpack.c.l.b16 %v3013
        %v3084 = vunpack.c.h.b16 %v3013
        %v3085 = vunpack.c.l.b16 %v3014
        %v3086 = vunpack.c.h.b16 %v3014
        %v3087 = vunpack.c.l.b16 %v3015
        %v3088 = vunpack.c.h.b16 %v3015
        %v3089 = vunpack.c.l.b16 %v3016
        %v3090 = vunpack.c.h.b16 %v3016
        %v3091 = vunpack.c.l.b16 %v3017
        %v3092 = vunpack.c.h.b16 %v3017
        %v3093 = vunpack.c.l.b16 %v3018
        %v3094 = vunpack.c.h.b16 %v3018
        %v3095 = vunpack.c.l.b16 %v3019
        %v3096 = vunpack.c.h.b16 %v3019
        %v3097 = vunpack.c.l.b16 %v3020
        %v3098 = vunpack.c.h.b16 %v3020
        %v3099 = vunpack.c.l.b16 %v3021
        %v3100 = vunpack.c.h.b16 %v3021
        %v3101 = vunpack.c.l.b16 %v3022
        %v3102 = vunpack.c.h.b16 %v3022
        %v3103 = vunpack.c.l.b16 %v3023
        %v3104 = vunpack.c.h.b16 %v3023
        %v3105 = vunpack.c.l.b16 %v3024
        %v3106 = vunpack.c.h.b16 %v3024
        %v3107 = vunpack.c.l.b16 %v3025
        %v3108 = vunpack.c.h.b16 %v3025
        %v3109 = vunpack.c.l.b16 %v3026
        %v3110 = vunpack.c.h.b16 %v3026
        %v3111 = vunpack.c.l.b16 %v3027
        %v3112 = vunpack.c.h.b16 %v3027
        %v3113 = vunpack.c.l.b16 %v3028
        %v3114 = vunpack.c.h.b16 %v3028
        %v3115 = vunpack.c.l.b16 %v3029
        %v3116 = vunpack.c.h.b16 %v3029
        %v3117 = vunpack.c.l.b16 %v3030
        %v3118 = vunpack.c.h.b16 %v3030
        %v3119 = vunpack.c.l.b16 %v3031
        %v3120 = vunpack.c.h.b16 %v3031
        %v3121 = vunpack.c.l.b16 %v3032
        %v3122 = vunpack.c.h.b16 %v3032
        %v3123 = vunpack.c.l.b16 %v3033
        %v3124 = vunpack.c.h.b16 %v3033
        %v3125 = vunpack.c.l.b16 %v3034
        %v3126 = vunpack.c.h.b16 %v3034
        %v3127 = vunpack.c.l.b16 %v3035
        %v3128 = vunpack.c.h.b16 %v3035
        %v3129 = vunpack.c.l.b16 %v3036
        %v3130 = vunpack.c.h.b16 %v3036
        %v3131 = vunpack.c.l.b16 %v3037
        %v3132 = vunpack.c.h.b16 %v3037
        %v3133 = vunpack.c.l.b16 %v3038
        %v3134 = vunpack.c.h.b16 %v3038
        %v3135 = vpack.c.b16 %v3075, %v3071
        %v3136 = vpack.c.b16 %v3076, %v3072
        %v3137 = vpack.c.b16 %v3077, %v3073
        %v3138 = vpack.c.b16 %v3078, %v3074
        %v3139 = vpack.c.b16 %v3083, %v3079
        %v3140 = vpack.c.b16 %v3084, %v3080
        %v3141 = vpack.c.b16 %v3085, %v3081
        %v3142 = vpack.c.b16 %v3086, %v3082
        %v3143 = vpack.c.b16 %v3091, %v3087
        %v3144 = vpack.c.b16 %v3092, %v3088
        %v3145 = vpack.c.b16 %v3093, %v3089
        %v3146 = vpack.c.b16 %v3094, %v3090
        %v3147 = vpack.c.b16 %v3099, %v3095
        %v3148 = vpack.c.b16 %v3100, %v3096
        %v3149 = vpack.c.b16 %v3101, %v3097
        %v3150 = vpack.c.b16 %v3102, %v3098
        %v3151 = vpack.c.b16 %v3107, %v3103
        %v3152 = vpack.c.b16 %v3108, %v3104
        %v3153 = vpack.c.b16 %v3109, %v3105
        %v3154 = vpack.c.b16 %v3110, %v3106
        %v3155 = vpack.c.b16 %v3115, %v3111
        %v3156 = vpack.c.b16 %v3116, %v3112
        %v3157 = vpack.c.b16 %v3117, %v3113
        %v3158 = vpack.c.b16 %v3118, %v3114
        %v3159 = vpack.c.b16 %v3123, %v3119
        %v3160 = vpack.c.b16 %v3124, %v3120
        %v3161 = vpack.c.b16 %v3125, %v3121
        %v3162 = vpack.c.b16 %v3126, %v3122
        %v3163 = vpack.c.b16 %v3131, %v3127
        %v3164 = vpack.c.b16 %v3132, %v3128
        %v3165 = vpack.c.b16 %v3133, %v3129
        %v3166 = vpack.c.b16 %v3134, %v3130
        %3199 = vmatpush.bf16.msra.mxu0 %v3163
        %3200 = vmatpush.bf16.msra.mxu0 %v3159
        %3201 = vmatpush.bf16.msra.mxu0 %v3155
        %3202 = vmatpush.bf16.msra.mxu0 %v3151
        %3203 = vmatpush.bf16.msra.mxu0 %v3147
        %3204 = vmatpush.bf16.msra.mxu0 %v3143
        %3205 = vmatpush.bf16.msra.mxu0 %v3139
        %3206 = vmatpush.bf16.msra.mxu0 %v3135
        %3207 = vmatmul.bf16.gmra.mxu0 %v3006
        %v3208 = vpop.f32.mrf.mxu0
        %v3209 = vadd.f32 0.0, %v3208
        %v3210 = vpop.f32.mrf.mxu0
        %3211 = vdwg.mxu0
        %3212 = vmatpush.bf16.msra.mxu0 %v3164
        %3213 = vmatpush.bf16.msra.mxu0 %v3160
        %3214 = vmatpush.bf16.msra.mxu0 %v3156
        %3215 = vmatpush.bf16.msra.mxu0 %v3152
        %3216 = vmatpush.bf16.msra.mxu0 %v3148
        %3217 = vmatpush.bf16.msra.mxu0 %v3144
        %3218 = vmatpush.bf16.msra.mxu0 %v3140
        %3219 = vmatpush.bf16.msra.mxu0 %v3136
        %3220 = vmatmul.bf16.gmra.mxu0 %v3006
        %v3221 = vpop.f32.mrf.mxu0
        %v3222 = vadd.f32 0.0, %v3221
        %v3223 = vpop.f32.mrf.mxu0
        %3224 = vdwg.mxu0
        %3225 = vmatpush.bf16.msra.mxu0 %v3165
        %3226 = vmatpush.bf16.msra.mxu0 %v3161
        %3227 = vmatpush.bf16.msra.mxu0 %v3157
        %3228 = vmatpush.bf16.msra.mxu0 %v3153
        %3229 = vmatpush.bf16.msra.mxu0 %v3149
        %3230 = vmatpush.bf16.msra.mxu0 %v3145
        %3231 = vmatpush.bf16.msra.mxu0 %v3141
        %3232 = vmatpush.bf16.msra.mxu0 %v3137
        %3233 = vmatmul.bf16.gmra.mxu0 %v3006
        %v3234 = vpop.f32.mrf.mxu0
        %v3235 = vadd.f32 0.0, %v3234
        %v3236 = vpop.f32.mrf.mxu0
        %3237 = vdwg.mxu0
        %3238 = vmatpush.bf16.msra.mxu0 %v3166
        %3239 = vmatpush.bf16.msra.mxu0 %v3162
        %3240 = vmatpush.bf16.msra.mxu0 %v3158
        %3241 = vmatpush.bf16.msra.mxu0 %v3154
        %3242 = vmatpush.bf16.msra.mxu0 %v3150
        %3243 = vmatpush.bf16.msra.mxu0 %v3146
        %3244 = vmatpush.bf16.msra.mxu0 %v3142
        %3245 = vmatpush.bf16.msra.mxu0 %v3138
        %3246 = vmatmul.bf16.gmra.mxu0 %v3006
        %v3247 = vpop.f32.mrf.mxu0
        %v3248 = vadd.f32 0.0, %v3247
        %v3249 = vpop.f32.mrf.mxu0
        %3250 = vdwg.mxu0
        %v3251 = vadd.f32 %v3002, %v3209
        %v3252 = vadd.f32 %v3003, %v3222
        %v3253 = vadd.f32 %v3004, %v3235
        %v3254 = vadd.f32 %v3005, %v3248
        %v3255 = vxor.u32 %v3251, 2147483648
        %v3256 = vxor.u32 %v3252, 2147483648
        %v3257 = vxor.u32 %v3253, 2147483648
        %v3258 = vmul.f32 %v3255, 1.442695
        %v3259 = vpow.pop %v3258
        %v3260 = vmul.f32 %v3256, 1.442695
        %v3261 = vpow.pop %v3260
        %v3262 = vmul.f32 %v3257, 1.442695
        %v3263 = vpow.pop %v3262
        %v3264 = vadd.f32 %v3259, 1.0
        %v3265 = vadd.f32 %v3261, 1.0
        %v3266 = vadd.f32 %v3263, 1.0
        %v3267 = vrcp.pop %v3264
        %v3268 = vmul.f32 %v3264, %v3267
        %v3269 = vsub.f32 1.0, %v3268
        %v3270 = vmul.f32 %v3267, %v3269
        %v3271 = vadd.f32 %v3267, %v3270
        %vm3272 = vweird.f32 %v3264
        %vm3273 = vweird.f32 %v3267
        %vm3274 = vmor %vm3272, %vm3273
        %v3275 = vsel %vm3274, %v3267, %v3271
        %v3276 = vand.u32 2147483647, %v3264
        %vm3277 = vcmp.eq.f32.partialorder %v3276, 8.507059e+37
        %v3278 = vand.u32 %v3264, 2147483648
        %v3279 = vor.u32 1.1754944e-38, %v3278
        %v3280 = vsel %vm3277, %v3279, %v3275
        %v3281 = vmul.f32 1.0, %v3280
        %v3282 = vrcp.pop %v3265
        %v3283 = vmul.f32 %v3265, %v3282
        %v3284 = vsub.f32 1.0, %v3283
        %v3285 = vmul.f32 %v3282, %v3284
        %v3286 = vadd.f32 %v3282, %v3285
        %vm3287 = vweird.f32 %v3265
        %vm3288 = vweird.f32 %v3282
        %vm3289 = vmor %vm3287, %vm3288
        %v3290 = vsel %vm3289, %v3282, %v3286
        %v3291 = vand.u32 2147483647, %v3265
        %vm3292 = vcmp.eq.f32.partialorder %v3291, 8.507059e+37
        %v3293 = vand.u32 %v3265, 2147483648
        %v3294 = vor.u32 1.1754944e-38, %v3293
        %v3295 = vsel %vm3292, %v3294, %v3290
        %v3296 = vmul.f32 1.0, %v3295
        %v3297 = vrcp.pop %v3266
        %v3298 = vmul.f32 %v3266, %v3297
        %v3299 = vsub.f32 1.0, %v3298
        %v3300 = vmul.f32 %v3297, %v3299
        %v3301 = vadd.f32 %v3297, %v3300
        %vm3302 = vweird.f32 %v3266
        %vm3303 = vweird.f32 %v3297
        %vm3304 = vmor %vm3302, %vm3303
        %v3305 = vsel %vm3304, %v3297, %v3301
        %v3306 = vand.u32 2147483647, %v3266
        %vm3307 = vcmp.eq.f32.partialorder %v3306, 8.507059e+37
        %v3308 = vand.u32 %v3266, 2147483648
        %v3309 = vor.u32 1.1754944e-38, %v3308
        %v3310 = vsel %vm3307, %v3309, %v3305
        %v3311 = vmul.f32 1.0, %v3310
        %v3312 = vtanh.pop %v3254
        %v3313 = vmul.f32 %v3296, %v2998
        %v3314 = vmul.f32 %v3281, %v3312
        %v3315 = vadd.f32 %v3313, %v3314
        %v3316 = vtanh.pop %v3315
        %v3317 = vmul.f32 %v3311, %v3316
        %3318 = vst [vmem:[#allocation2 + $0x30] sm:$0xff] %v3317
        %v3319 = vld [vmem:[#allocation3 + $0xe0] sm:$0xff]
        %v3320 = vld [vmem:[#allocation3 + $0xe8] sm:$0xff]
        %v3321 = vld [vmem:[#allocation3 + $0xf0] sm:$0xff]
        %v3322 = vld [vmem:[#allocation3 + $0xf8] sm:$0xff]
        %v3323 = vpack.c.bf16 %v3317, %v3317
        %v3324 = vld [vmem:[%s313] sm:$0xff]
        %v3325 = vld [vmem:[%s313 + $0x8] sm:$0xff]
        %v3326 = vld [vmem:[%s313 + $0x10] sm:$0xff]
        %v3327 = vld [vmem:[%s313 + $0x18] sm:$0xff]
        %v3328 = vld [vmem:[%s313 + $0x20] sm:$0xff]
        %v3329 = vld [vmem:[%s313 + $0x28] sm:$0xff]
        %v3330 = vld [vmem:[%s313 + $0x30] sm:$0xff]
        %v3331 = vld [vmem:[%s313 + $0x38] sm:$0xff]
        %v3332 = vld [vmem:[%s313 + $0x40] sm:$0xff]
        %v3333 = vld [vmem:[%s313 + $0x48] sm:$0xff]
        %v3334 = vld [vmem:[%s313 + $0x50] sm:$0xff]
        %v3335 = vld [vmem:[%s313 + $0x58] sm:$0xff]
        %v3336 = vld [vmem:[%s313 + $0x60] sm:$0xff]
        %v3337 = vld [vmem:[%s313 + $0x68] sm:$0xff]
        %v3338 = vld [vmem:[%s313 + $0x70] sm:$0xff]
        %v3339 = vld [vmem:[%s313 + $0x78] sm:$0xff]
        %v3340 = vld [vmem:[%s313 + $0x80] sm:$0xff]
        %v3341 = vld [vmem:[%s313 + $0x88] sm:$0xff]
        %v3342 = vld [vmem:[%s313 + $0x90] sm:$0xff]
        %v3343 = vld [vmem:[%s313 + $0x98] sm:$0xff]
        %v3344 = vld [vmem:[%s313 + $0xa0] sm:$0xff]
        %v3345 = vld [vmem:[%s313 + $0xa8] sm:$0xff]
        %v3346 = vld [vmem:[%s313 + $0xb0] sm:$0xff]
        %v3347 = vld [vmem:[%s313 + $0xb8] sm:$0xff]
        %v3348 = vld [vmem:[%s313 + $0xc0] sm:$0xff]
        %v3349 = vld [vmem:[%s313 + $0xc8] sm:$0xff]
        %v3350 = vld [vmem:[%s313 + $0xd0] sm:$0xff]
        %v3351 = vld [vmem:[%s313 + $0xd8] sm:$0xff]
        %v3352 = vld [vmem:[%s313 + $0xe0] sm:$0xff]
        %v3353 = vld [vmem:[%s313 + $0xe8] sm:$0xff]
        %v3354 = vld [vmem:[%s313 + $0xf0] sm:$0xff]
        %v3355 = vld [vmem:[%s313 + $0xf8] sm:$0xff]
        %v3388 = vunpack.c.l.b16 %v3324
        %v3389 = vunpack.c.h.b16 %v3324
        %v3390 = vunpack.c.l.b16 %v3325
        %v3391 = vunpack.c.h.b16 %v3325
        %v3392 = vunpack.c.l.b16 %v3326
        %v3393 = vunpack.c.h.b16 %v3326
        %v3394 = vunpack.c.l.b16 %v3327
        %v3395 = vunpack.c.h.b16 %v3327
        %v3396 = vunpack.c.l.b16 %v3328
        %v3397 = vunpack.c.h.b16 %v3328
        %v3398 = vunpack.c.l.b16 %v3329
        %v3399 = vunpack.c.h.b16 %v3329
        %v3400 = vunpack.c.l.b16 %v3330
        %v3401 = vunpack.c.h.b16 %v3330
        %v3402 = vunpack.c.l.b16 %v3331
        %v3403 = vunpack.c.h.b16 %v3331
        %v3404 = vunpack.c.l.b16 %v3332
        %v3405 = vunpack.c.h.b16 %v3332
        %v3406 = vunpack.c.l.b16 %v3333
        %v3407 = vunpack.c.h.b16 %v3333
        %v3408 = vunpack.c.l.b16 %v3334
        %v3409 = vunpack.c.h.b16 %v3334
        %v3410 = vunpack.c.l.b16 %v3335
        %v3411 = vunpack.c.h.b16 %v3335
        %v3412 = vunpack.c.l.b16 %v3336
        %v3413 = vunpack.c.h.b16 %v3336
        %v3414 = vunpack.c.l.b16 %v3337
        %v3415 = vunpack.c.h.b16 %v3337
        %v3416 = vunpack.c.l.b16 %v3338
        %v3417 = vunpack.c.h.b16 %v3338
        %v3418 = vunpack.c.l.b16 %v3339
        %v3419 = vunpack.c.h.b16 %v3339
        %v3420 = vunpack.c.l.b16 %v3340
        %v3421 = vunpack.c.h.b16 %v3340
        %v3422 = vunpack.c.l.b16 %v3341
        %v3423 = vunpack.c.h.b16 %v3341
        %v3424 = vunpack.c.l.b16 %v3342
        %v3425 = vunpack.c.h.b16 %v3342
        %v3426 = vunpack.c.l.b16 %v3343
        %v3427 = vunpack.c.h.b16 %v3343
        %v3428 = vunpack.c.l.b16 %v3344
        %v3429 = vunpack.c.h.b16 %v3344
        %v3430 = vunpack.c.l.b16 %v3345
        %v3431 = vunpack.c.h.b16 %v3345
        %v3432 = vunpack.c.l.b16 %v3346
        %v3433 = vunpack.c.h.b16 %v3346
        %v3434 = vunpack.c.l.b16 %v3347
        %v3435 = vunpack.c.h.b16 %v3347
        %v3436 = vunpack.c.l.b16 %v3348
        %v3437 = vunpack.c.h.b16 %v3348
        %v3438 = vunpack.c.l.b16 %v3349
        %v3439 = vunpack.c.h.b16 %v3349
        %v3440 = vunpack.c.l.b16 %v3350
        %v3441 = vunpack.c.h.b16 %v3350
        %v3442 = vunpack.c.l.b16 %v3351
        %v3443 = vunpack.c.h.b16 %v3351
        %v3444 = vunpack.c.l.b16 %v3352
        %v3445 = vunpack.c.h.b16 %v3352
        %v3446 = vunpack.c.l.b16 %v3353
        %v3447 = vunpack.c.h.b16 %v3353
        %v3448 = vunpack.c.l.b16 %v3354
        %v3449 = vunpack.c.h.b16 %v3354
        %v3450 = vunpack.c.l.b16 %v3355
        %v3451 = vunpack.c.h.b16 %v3355
        %v3452 = vpack.c.b16 %v3392, %v3388
        %v3453 = vpack.c.b16 %v3393, %v3389
        %v3454 = vpack.c.b16 %v3394, %v3390
        %v3455 = vpack.c.b16 %v3395, %v3391
        %v3456 = vpack.c.b16 %v3400, %v3396
        %v3457 = vpack.c.b16 %v3401, %v3397
        %v3458 = vpack.c.b16 %v3402, %v3398
        %v3459 = vpack.c.b16 %v3403, %v3399
        %v3460 = vpack.c.b16 %v3408, %v3404
        %v3461 = vpack.c.b16 %v3409, %v3405
        %v3462 = vpack.c.b16 %v3410, %v3406
        %v3463 = vpack.c.b16 %v3411, %v3407
        %v3464 = vpack.c.b16 %v3416, %v3412
        %v3465 = vpack.c.b16 %v3417, %v3413
        %v3466 = vpack.c.b16 %v3418, %v3414
        %v3467 = vpack.c.b16 %v3419, %v3415
        %v3468 = vpack.c.b16 %v3424, %v3420
        %v3469 = vpack.c.b16 %v3425, %v3421
        %v3470 = vpack.c.b16 %v3426, %v3422
        %v3471 = vpack.c.b16 %v3427, %v3423
        %v3472 = vpack.c.b16 %v3432, %v3428
        %v3473 = vpack.c.b16 %v3433, %v3429
        %v3474 = vpack.c.b16 %v3434, %v3430
        %v3475 = vpack.c.b16 %v3435, %v3431
        %v3476 = vpack.c.b16 %v3440, %v3436
        %v3477 = vpack.c.b16 %v3441, %v3437
        %v3478 = vpack.c.b16 %v3442, %v3438
        %v3479 = vpack.c.b16 %v3443, %v3439
        %v3480 = vpack.c.b16 %v3448, %v3444
        %v3481 = vpack.c.b16 %v3449, %v3445
        %v3482 = vpack.c.b16 %v3450, %v3446
        %v3483 = vpack.c.b16 %v3451, %v3447
        %3516 = vmatpush.bf16.msra.mxu0 %v3480
        %3517 = vmatpush.bf16.msra.mxu0 %v3476
        %3518 = vmatpush.bf16.msra.mxu0 %v3472
        %3519 = vmatpush.bf16.msra.mxu0 %v3468
        %3520 = vmatpush.bf16.msra.mxu0 %v3464
        %3521 = vmatpush.bf16.msra.mxu0 %v3460
        %3522 = vmatpush.bf16.msra.mxu0 %v3456
        %3523 = vmatpush.bf16.msra.mxu0 %v3452
        %3524 = vmatmul.bf16.gmra.mxu0 %v3323
        %v3525 = vpop.f32.mrf.mxu0
        %v3526 = vadd.f32 0.0, %v3525
        %v3527 = vpop.f32.mrf.mxu0
        %3528 = vdwg.mxu0
        %3529 = vmatpush.bf16.msra.mxu0 %v3481
        %3530 = vmatpush.bf16.msra.mxu0 %v3477
        %3531 = vmatpush.bf16.msra.mxu0 %v3473
        %3532 = vmatpush.bf16.msra.mxu0 %v3469
        %3533 = vmatpush.bf16.msra.mxu0 %v3465
        %3534 = vmatpush.bf16.msra.mxu0 %v3461
        %3535 = vmatpush.bf16.msra.mxu0 %v3457
        %3536 = vmatpush.bf16.msra.mxu0 %v3453
        %3537 = vmatmul.bf16.gmra.mxu0 %v3323
        %v3538 = vpop.f32.mrf.mxu0
        %v3539 = vadd.f32 0.0, %v3538
        %v3540 = vpop.f32.mrf.mxu0
        %3541 = vdwg.mxu0
        %3542 = vmatpush.bf16.msra.mxu0 %v3482
        %3543 = vmatpush.bf16.msra.mxu0 %v3478
        %3544 = vmatpush.bf16.msra.mxu0 %v3474
        %3545 = vmatpush.bf16.msra.mxu0 %v3470
        %3546 = vmatpush.bf16.msra.mxu0 %v3466
        %3547 = vmatpush.bf16.msra.mxu0 %v3462
        %3548 = vmatpush.bf16.msra.mxu0 %v3458
        %3549 = vmatpush.bf16.msra.mxu0 %v3454
        %3550 = vmatmul.bf16.gmra.mxu0 %v3323
        %v3551 = vpop.f32.mrf.mxu0
        %v3552 = vadd.f32 0.0, %v3551
        %v3553 = vpop.f32.mrf.mxu0
        %3554 = vdwg.mxu0
        %3555 = vmatpush.bf16.msra.mxu0 %v3483
        %3556 = vmatpush.bf16.msra.mxu0 %v3479
        %3557 = vmatpush.bf16.msra.mxu0 %v3475
        %3558 = vmatpush.bf16.msra.mxu0 %v3471
        %3559 = vmatpush.bf16.msra.mxu0 %v3467
        %3560 = vmatpush.bf16.msra.mxu0 %v3463
        %3561 = vmatpush.bf16.msra.mxu0 %v3459
        %3562 = vmatpush.bf16.msra.mxu0 %v3455
        %3563 = vmatmul.bf16.gmra.mxu0 %v3323
        %v3564 = vpop.f32.mrf.mxu0
        %v3565 = vadd.f32 0.0, %v3564
        %v3566 = vpop.f32.mrf.mxu0
        %3567 = vdwg.mxu0
        %v3568 = vadd.f32 %v3319, %v3526
        %v3569 = vadd.f32 %v3320, %v3539
        %v3570 = vadd.f32 %v3321, %v3552
        %v3571 = vadd.f32 %v3322, %v3565
        %v3572 = vxor.u32 %v3568, 2147483648
        %v3573 = vxor.u32 %v3569, 2147483648
        %v3574 = vxor.u32 %v3570, 2147483648
        %v3575 = vmul.f32 %v3572, 1.442695
        %v3576 = vpow.pop %v3575
        %v3577 = vmul.f32 %v3573, 1.442695
        %v3578 = vpow.pop %v3577
        %v3579 = vmul.f32 %v3574, 1.442695
        %v3580 = vpow.pop %v3579
        %v3581 = vadd.f32 %v3576, 1.0
        %v3582 = vadd.f32 %v3578, 1.0
        %v3583 = vadd.f32 %v3580, 1.0
        %v3584 = vrcp.pop %v3581
        %v3585 = vmul.f32 %v3581, %v3584
        %v3586 = vsub.f32 1.0, %v3585
        %v3587 = vmul.f32 %v3584, %v3586
        %v3588 = vadd.f32 %v3584, %v3587
        %vm3589 = vweird.f32 %v3581
        %vm3590 = vweird.f32 %v3584
        %vm3591 = vmor %vm3589, %vm3590
        %v3592 = vsel %vm3591, %v3584, %v3588
        %v3593 = vand.u32 2147483647, %v3581
        %vm3594 = vcmp.eq.f32.partialorder %v3593, 8.507059e+37
        %v3595 = vand.u32 %v3581, 2147483648
        %v3596 = vor.u32 1.1754944e-38, %v3595
        %v3597 = vsel %vm3594, %v3596, %v3592
        %v3598 = vmul.f32 1.0, %v3597
        %v3599 = vrcp.pop %v3582
        %v3600 = vmul.f32 %v3582, %v3599
        %v3601 = vsub.f32 1.0, %v3600
        %v3602 = vmul.f32 %v3599, %v3601
        %v3603 = vadd.f32 %v3599, %v3602
        %vm3604 = vweird.f32 %v3582
        %vm3605 = vweird.f32 %v3599
        %vm3606 = vmor %vm3604, %vm3605
        %v3607 = vsel %vm3606, %v3599, %v3603
        %v3608 = vand.u32 2147483647, %v3582
        %vm3609 = vcmp.eq.f32.partialorder %v3608, 8.507059e+37
        %v3610 = vand.u32 %v3582, 2147483648
        %v3611 = vor.u32 1.1754944e-38, %v3610
        %v3612 = vsel %vm3609, %v3611, %v3607
        %v3613 = vmul.f32 1.0, %v3612
        %v3614 = vrcp.pop %v3583
        %v3615 = vmul.f32 %v3583, %v3614
        %v3616 = vsub.f32 1.0, %v3615
        %v3617 = vmul.f32 %v3614, %v3616
        %v3618 = vadd.f32 %v3614, %v3617
        %vm3619 = vweird.f32 %v3583
        %vm3620 = vweird.f32 %v3614
        %vm3621 = vmor %vm3619, %vm3620
        %v3622 = vsel %vm3621, %v3614, %v3618
        %v3623 = vand.u32 2147483647, %v3583
        %vm3624 = vcmp.eq.f32.partialorder %v3623, 8.507059e+37
        %v3625 = vand.u32 %v3583, 2147483648
        %v3626 = vor.u32 1.1754944e-38, %v3625
        %v3627 = vsel %vm3624, %v3626, %v3622
        %v3628 = vmul.f32 1.0, %v3627
        %v3629 = vtanh.pop %v3571
        %v3630 = vmul.f32 %v3613, %v3315
        %v3631 = vmul.f32 %v3598, %v3629
        %v3632 = vadd.f32 %v3630, %v3631
        %v3633 = vtanh.pop %v3632
        %v3634 = vmul.f32 %v3628, %v3633
        %3635 = vst [vmem:[#allocation2 + $0x38] sm:$0xff] %v3634
        %p3636 = scmp.eq.s32.totalorder %s24, 8
        // Predicated region
        $region73: #{fused_forward.1} parent=43 // pred_check
          %p3637 = pneg %p3636
        $region74: #{fused_forward.1} parent=43 // pred_check_branch
          %3639 = sbr.rel (%p3637) target = $region76
        $region75: #{fused_forward.1} parent=43 // pred_region
          %v3640 = vld [vmem:[#allocation2] sm:$0xff]
          %v3641 = vld [vmem:[#allocation2 + $0x8] sm:$0xff]
          %v3642 = vld [vmem:[#allocation2 + $0x10] sm:$0xff]
          %v3643 = vld [vmem:[#allocation2 + $0x18] sm:$0xff]
          %v3644 = vld [vmem:[#allocation2 + $0x20] sm:$0xff]
          %v3645 = vld [vmem:[#allocation2 + $0x28] sm:$0xff]
          %v3646 = vld [vmem:[#allocation2 + $0x30] sm:$0xff]
          %v3647 = vld [vmem:[#allocation2 + $0x38] sm:$0xff]
          %v3648 = vpack.c.bf16 %v3641, %v3640
          %v3649 = vpack.c.bf16 %v3643, %v3642
          %v3650 = vpack.c.bf16 %v3645, %v3644
          %v3651 = vpack.c.bf16 %v3647, %v3646
          %v3652 = vld [vmem:[#allocation9] sm:$0xf]
          %v3653 = vld [vmem:[#allocation9 + $0x4] sm:$0xf]
          %v3654 = vld [vmem:[#allocation9 + $0x8] sm:$0xf]
          %v3655 = vld [vmem:[#allocation9 + $0xc] sm:$0xf]
          %v3656 = vld [vmem:[#allocation9 + $0x10] sm:$0xf]
          %v3657 = vld [vmem:[#allocation9 + $0x14] sm:$0xf]
          %v3658 = vld [vmem:[#allocation9 + $0x18] sm:$0xf]
          %v3659 = vld [vmem:[#allocation9 + $0x1c] sm:$0xf]
          %v3660 = vld [vmem:[#allocation9 + $0x20] sm:$0xf]
          %v3661 = vld [vmem:[#allocation9 + $0x24] sm:$0xf]
          %v3662 = vld [vmem:[#allocation9 + $0x28] sm:$0xf]
          %v3663 = vld [vmem:[#allocation9 + $0x2c] sm:$0xf]
          %v3664 = vld [vmem:[#allocation9 + $0x30] sm:$0xf]
          %v3665 = vld [vmem:[#allocation9 + $0x34] sm:$0xf]
          %v3666 = vld [vmem:[#allocation9 + $0x38] sm:$0xf]
          %v3667 = vld [vmem:[#allocation9 + $0x3c] sm:$0xf]
          %v3668 = vld [vmem:[#allocation11] sm:$0x1]
          %v3670 = vperm.slane %v3668, 0
          %v3688 = vunpack.c.l.b16 %v3652
          %v3689 = vunpack.c.l.b16 %v3653
          %v3690 = vunpack.c.l.b16 %v3654
          %v3691 = vunpack.c.l.b16 %v3655
          %v3692 = vunpack.c.l.b16 %v3656
          %v3693 = vunpack.c.l.b16 %v3657
          %v3694 = vunpack.c.l.b16 %v3658
          %v3695 = vunpack.c.l.b16 %v3659
          %v3696 = vunpack.c.l.b16 %v3660
          %v3697 = vunpack.c.l.b16 %v3661
          %v3698 = vunpack.c.l.b16 %v3662
          %v3699 = vunpack.c.l.b16 %v3663
          %v3700 = vunpack.c.l.b16 %v3664
          %v3701 = vunpack.c.l.b16 %v3665
          %v3702 = vunpack.c.l.b16 %v3666
          %v3703 = vunpack.c.l.b16 %v3667
          %v3704 = vpack.c.b16 %v3689, %v3688
          %v3705 = vpack.c.b16 %v3691, %v3690
          %v3706 = vpack.c.b16 %v3693, %v3692
          %v3707 = vpack.c.b16 %v3695, %v3694
          %v3708 = vpack.c.b16 %v3697, %v3696
          %v3709 = vpack.c.b16 %v3699, %v3698
          %v3710 = vpack.c.b16 %v3701, %v3700
          %v3711 = vpack.c.b16 %v3703, %v3702
          %3720 = vmatpush.bf16.msra.mxu0 %v3711
          %3721 = vmatpush.bf16.msra.mxu0 %v3710
          %3722 = vmatpush.bf16.msra.mxu0 %v3709
          %3723 = vmatpush.bf16.msra.mxu0 %v3708
          %3724 = vmatpush.bf16.msra.mxu0 %v3707
          %3725 = vmatpush.bf16.msra.mxu0 %v3706
          %3726 = vmatpush.bf16.msra.mxu0 %v3705
          %3727 = vmatpush.bf16.msra.mxu0 %v3704
          %3728 = vmatmul.bf16.gmra.mxu0 %v3648
          %v3729 = vpop.f32.mrf.mxu0
          %v3730 = vadd.f32 %v3670, %v3729
          %v3731 = vpop.f32.mrf.mxu0
          %v3732 = vadd.f32 %v3670, %v3731
          %3733 = vmatmul.bf16.gmra.mxu0 %v3649
          %v3734 = vpop.f32.mrf.mxu0
          %v3735 = vadd.f32 %v3670, %v3734
          %v3736 = vpop.f32.mrf.mxu0
          %v3737 = vadd.f32 %v3670, %v3736
          %3738 = vmatmul.bf16.gmra.mxu0 %v3650
          %v3739 = vpop.f32.mrf.mxu0
          %v3740 = vadd.f32 %v3670, %v3739
          %v3741 = vpop.f32.mrf.mxu0
          %v3742 = vadd.f32 %v3670, %v3741
          %3743 = vmatmul.bf16.gmra.mxu0 %v3651
          %v3744 = vpop.f32.mrf.mxu0
          %v3745 = vadd.f32 %v3670, %v3744
          %v3746 = vpop.f32.mrf.mxu0
          %v3747 = vadd.f32 %v3670, %v3746
          %3748 = vdwg.mxu0
          %3749 = vst [vmem:[%s6] sm:$0xff] %v3730
          %3750 = vst [vmem:[%s6 + $0x8] sm:$0xff] %v3732
          %3751 = vst [vmem:[%s6 + $0x10] sm:$0xff] %v3735
          %3752 = vst [vmem:[%s6 + $0x18] sm:$0xff] %v3737
          %3753 = vst [vmem:[%s6 + $0x20] sm:$0xff] %v3740
          %3754 = vst [vmem:[%s6 + $0x28] sm:$0xff] %v3742
          %3755 = vst [vmem:[%s6 + $0x30] sm:$0xff] %v3745
          %3756 = vst [vmem:[%s6 + $0x38] sm:$0xff] %v3747
        $region76: #{fused_forward.1} parent=43 // pred_fallthru
          _
        // Predicated region
        $region77: #{fused_forward.1} parent=43 // pred_check
          %p3757 = pneg %p178
        $region78: #{fused_forward.1} parent=43 // pred_check_branch
          %3759 = sbr.rel (%p3757) target = $region80
        $region79: #{fused_forward.1} parent=43 // pred_region
          _
        $region80: #{fused_forward.1} parent=43 // pred_fallthru
          _
        // Predicated region
        $region81: #{fused_forward.1} parent=43 // pred_check
          %p3760 = pneg %p178
        $region82: #{fused_forward.1} parent=43 // pred_check_branch
          %3762 = sbr.rel (%p3760) target = $region84
        $region83: #{fused_forward.1} parent=43 // pred_region
          _
        $region84: #{fused_forward.1} parent=43 // pred_fallthru
          _
      $region44: #{fused_forward.1} parent=5 // pred_fallthru
        _
      %p3763 = scmp.le.s32.totalorder 2, %s19
      // Predicated region
      $region85: #{fused_forward.1} parent=5 // pred_check
        %p3764 = pneg %p3763
      $region86: #{fused_forward.1} parent=5 // pred_check_branch
        %3766 = sbr.rel (%p3764) target = $region88
      $region87: #{fused_forward.1} parent=5 // pred_region
        %s3767 = ssub.s32 %s19, 2
      $region88: #{fused_forward.1} parent=5 // pred_fallthru
        _
    $region6: #{fused_forward.1} parent=1 // loop_footer
      %s23 = sadd.s32 1, %s19
    $region7: #{fused_forward.1} parent=1 // loop_footer_branch
      %18 = sbr.rel target = $region3
    $region8: #{fused_forward.1} parent=1 // loop_exit
      _
    %3768 = vsyncpa [#allocation5], 1
    %s3769 = scalar_lea.sflag [#allocation5], 1
    %3770 = vsyncpa %s3769, 1
    %3771 = vsyncpa [#allocation7], 1
    %s3772 = scalar_lea.sflag [#allocation7], 1
    %3773 = vsyncpa %s3772, 1
    %3774 = vsyncpa [#allocation10], 1

</llo_original>
